<compile_context>
chip_gen: v5e
topology: v5e:2x2
jax: 0.10.0
libtpu: 0.0.40
codegen_flags: <defaults>
</compile_context>

<pallas_src>
import functools

import jax
import jax.numpy as jnp
from jax.experimental import pallas as pl
from jax.experimental.pallas import tpu as pltpu


# ----------------------------------------------------------------------------
# Fused kernel: segmentor -> entropy/cat -> discriminators -> hinge partials
# ----------------------------------------------------------------------------
def _fused_kernel(seg_w1, seg_b1, seg_wh, seg_bh,          # SMEM segmentor
                  dm_w1, dm_b1, dm_w2, dm_b2,              # SMEM disc_main
                  da_w1, da_b1, da_w2, da_b2,              # SMEM disc_aux (folded)
                  xs_ref, xts_ref,                         # VMEM (n, C, tr, 128)
                  ent_s_ref, ent_ts_ref, loss_ref,         # VMEM outputs
                  *, n, c_in, hidden):
    # --- prologue: read every weight scalar from SMEM exactly once ----------
    # (shared by both streams; avoids repeated SMEM scalar loads per use)
    w1 = [[seg_w1[k, c] for c in range(c_in)] for k in range(hidden)]
    b1 = [seg_b1[k] for k in range(hidden)]
    wh = [[seg_wh[h, k] for k in range(hidden)] for h in range(2)]
    bh = [seg_bh[h] for h in range(2)]
    wm1 = [[dm_w1[k, j] for j in range(2)] for k in range(hidden)]
    bm1 = [dm_b1[k] for k in range(hidden)]
    wm2 = [dm_w2[k] for k in range(hidden)]
    bm2 = dm_b2[0]
    wa1 = [da_w1[k] for k in range(hidden)]
    ba1 = [da_b1[k] for k in range(hidden)]
    wa2 = [da_w2[k] for k in range(hidden)]
    ba2 = da_b2[0]

    def run_stream(x_ref, ent_ref):
        # per-channel slabs, fully (sublane, lane)-packed: (n, tr, 128)
        ch = [x_ref[:, c] for c in range(c_in)]

        # segmentor hidden 1x1 conv + ReLU, fused directly into both sigmoid
        # head accumulators (aux, main) -- hid_k never materialized as a list.
        acc_aux = None
        acc_main = None
        for k in range(hidden):
            a = b1[k] + w1[k][0] * ch[0]
            for c in range(1, c_in):
                a = a + w1[k][c] * ch[c]
            hk = jnp.maximum(a, 0.0)                       # relu
            if acc_aux is None:
                acc_aux, acc_main = wh[0][k] * hk, wh[1][k] * hk
            else:
                acc_aux = acc_aux + wh[0][k] * hk
                acc_main = acc_main + wh[1][k] * hk
        p_aux = jax.nn.sigmoid(acc_aux + bh[0])
        p_main = jax.nn.sigmoid(acc_main + bh[1])

        # prob2entropy(cat([p, 1-p], dim=1)); c = 2 -> / log2(2) == 1
        q_main = 1.0 - p_main
        e0 = -p_main * jnp.log2(p_main + 1e-30)
        e1 = -q_main * jnp.log2(q_main + 1e-30)
        ent_ref[...] = e0 + e1        # torch.sum(prob2entropy(...), 1, keepdim)

        # discriminators: 1x1 conv (leaky relu) + 1x1 conv.
        #  - disc_main input: prob2entropy(cat) channels (e0, e1)
        #  - disc_aux  input: cat([p_aux, 1-p_aux]); the (1-p) channel is
        #    pre-folded into wa1/ba1 in the wrapper -> single-input conv.
        dm = None
        da = None
        for k in range(hidden):
            am = bm1[k] + wm1[k][0] * e0 + wm1[k][1] * e1
            am = jnp.maximum(am, 0.2 * am)                 # leaky relu (2 ops)
            aa = ba1[k] + wa1[k] * p_aux
            aa = jnp.maximum(aa, 0.2 * aa)
            if dm is None:
                dm, da = wm2[k] * am, wa2[k] * aa
            else:
                dm = dm + wm2[k] * am
                da = da + wa2[k] * aa
        return dm + bm2, da + ba2                          # (n, tr, 128) each

    # --- stream S (real): finish it (incl. hinge partials) before TS --------
    dS_main, dS_aux = run_stream(xs_ref, ent_s_ref)
    rS_main = jnp.sum(jnp.maximum(1.0 - dS_main, 0.0), axis=1)   # (n, 128)
    rS_aux = jnp.sum(jnp.maximum(1.0 - dS_aux, 0.0), axis=1)

    # --- stream TS (fake) ----------------------------------------------------
    dT_main, dT_aux = run_stream(xts_ref, ent_ts_ref)
    fT_main = jnp.sum(jnp.maximum(1.0 + dT_main, 0.0), axis=1)
    fT_aux = jnp.sum(jnp.maximum(1.0 + dT_aux, 0.0), axis=1)
    gT_main = -jnp.sum(dT_main, axis=1)
    gT_aux = -jnp.sum(dT_aux, axis=1)

    # one lane-dense (4n, 128) partial-sum slab, single unmasked store.
    # Rows: [0:n) D_main, [n:2n) D_aux, [2n:3n) G_main, [3n:4n) G_aux.
    # 1/HW, 0.5 and lambda scaling are applied once in the wrapper.
    loss_ref[...] = jnp.concatenate(
        [rS_main + fT_main, rS_aux + fT_aux, gT_main, gT_aux], axis=0)


def _pick_tile_rows(rows, target=128):
    """Largest multiple of 8 <= target dividing `rows` (or full `rows`)."""
    if rows <= target:
        return rows
    t = (target // 8) * 8
    while t >= 8:
        if rows % t == 0:
            return t
        t -= 8
    return rows   # no multiple-of-8 divisor: fall back to the full extent


def _forward_pallas(params, xs4, xts4, *, n, c, rows, tile_rows):
    hidden = params["seg_b1"].shape[0]
    num_tiles = rows // tile_rows

    # fold the aux discriminator's (1 - p_aux) input channel into its weights:
    #   w0*p + w1*(1-p) + b == (w0 - w1)*p + (b + w1)
    da_w1 = params["disc_aux_w1"][:, 0] - params["disc_aux_w1"][:, 1]
    da_b1 = params["disc_aux_b1"] + params["disc_aux_w1"][:, 1]

    smem = pl.BlockSpec(memory_space=pltpu.MemorySpace.SMEM)
    x_spec = pl.BlockSpec((n, c, tile_rows, 128), lambda i: (0, 0, i, 0))
    ent_spec = pl.BlockSpec((n, tile_rows, 128), lambda i: (0, i, 0))
    loss_spec = pl.BlockSpec((None, 4 * n, 128), lambda i: (i, 0, 0))

    kernel = functools.partial(_fused_kernel, n=n, c_in=c, hidden=hidden)
    return pl.pallas_call(
        kernel,
        out_shape=(
            jax.ShapeDtypeStruct((n, rows, 128), jnp.float32),       # ent S
            jax.ShapeDtypeStruct((n, rows, 128), jnp.float32),       # ent TS
            jax.ShapeDtypeStruct((num_tiles, 4 * n, 128), jnp.float32),
        ),
        grid=(num_tiles,),
        in_specs=[smem] * 12 + [x_spec, x_spec],
        out_specs=(ent_spec, ent_spec, loss_spec),
        compiler_params=pltpu.CompilerParams(
            dimension_semantics=("parallel",),
            vmem_limit_bytes=32 * 1024 * 1024),
    )(params["seg_w1"], params["seg_b1"], params["seg_whead"], params["seg_bhead"],
      params["disc_main_w1"], params["disc_main_b1"],
      params["disc_main_w2"], params["disc_main_b2"],
      da_w1, da_b1, params["disc_aux_w2"], params["disc_aux_b2"],
      xs4, xts4)


# ----------------------------------------------------------------------------
# Deterministic parameter construction (synthetic segmentor + discriminators)
# ----------------------------------------------------------------------------
def make_params(key, c_in=4, hidden=8):
    ks = jax.random.split(key, 6)
    p = {}
    # segmentor: 1x1 conv (c_in->hidden, relu) + two sigmoid heads
    # (row 0 = aux head, row 1 = main head)
    p["seg_w1"] = 0.2 * jax.random.normal(ks[0], (hidden, c_in), jnp.float32)
    p["seg_b1"] = jnp.zeros((hidden,), jnp.float32)
    p["seg_whead"] = 0.2 * jax.random.normal(ks[1], (2, hidden), jnp.float32)
    p["seg_bhead"] = jnp.zeros((2,), jnp.float32)
    # disc_main: 1x1 conv (2->hidden, lrelu) + 1x1 conv (hidden->1)
    p["disc_main_w1"] = 0.2 * jax.random.normal(ks[2], (hidden, 2), jnp.float32)
    p["disc_main_b1"] = jnp.zeros((hidden,), jnp.float32)
    p["disc_main_w2"] = 0.2 * jax.random.normal(ks[3], (hidden,), jnp.float32)
    p["disc_main_b2"] = jnp.zeros((1,), jnp.float32)
    # disc_aux: same structure
    p["disc_aux_w1"] = 0.2 * jax.random.normal(ks[4], (hidden, 2), jnp.float32)
    p["disc_aux_b1"] = jnp.zeros((hidden,), jnp.float32)
    p["disc_aux_w2"] = 0.2 * jax.random.normal(ks[5], (hidden,), jnp.float32)
    p["disc_aux_b2"] = jnp.zeros((1,), jnp.float32)
    return p


# ----------------------------------------------------------------------------
# Forward pass (inference: no optimizer, no masks -> no seg loss, no updates)
# ----------------------------------------------------------------------------
def segmentation_model_forward(params, x_S, x_T, x_TS,
                               lambda_disc_main=1.0, lambda_disc_aux=1.0):
    n, c, h, w = x_S.shape
    hw = h * w
    assert hw % 128 == 0, "H*W must be a multiple of 128"
    # TODO(synk): H*W not a multiple of 128 would need a padded/masked path.
    rows = hw // 128
    tile_rows = _pick_tile_rows(rows)

    # NCHW -> (N, C, HW//128, 128): pure reshape, no transpose / extra traffic.
    xs4 = x_S.reshape(n, c, rows, 128)
    xts4 = x_TS.reshape(n, c, rows, 128)

    ent_S, ent_TS, loss_part = _forward_pallas(
        params, xs4, xts4, n=n, c=c, rows=rows, tile_rows=tile_rows)

    # per-tile, per-lane partial sums -> per-sample spatial means (torch _reduce)
    loss_rows = jnp.sum(loss_part, axis=(0, 2)) * (1.0 / float(hw))   # (4n,)
    l_D_main = 0.5 * loss_rows[0 * n:1 * n]
    l_D_aux = 0.5 * loss_rows[1 * n:2 * n]
    l_gen_main = float(lambda_disc_main) * loss_rows[2 * n:3 * n]
    l_gen_aux = float(lambda_disc_aux) * loss_rows[3 * n:4 * n]
    l_D = l_D_main + l_D_aux        # _reduce over the D loss dict (per sample)
    l_G = l_gen_main + l_gen_aux    # _reduce over the G loss dict (per sample)

    entropy_SM_main = ent_S.reshape(n, 1, h, w)
    entropy_TSM_main = ent_TS.reshape(n, 1, h, w)

    outputs = {
        "x_SM": None,                       # mask_S is None
        "x_S": x_S,
        "x_SM_entropy": entropy_SM_main,
        "x_SM_main": None,                  # no masks -> packed preds are None
        "x_TM": None,                       # mask_T is None
        "x_T": x_T,
        "x_TS": x_TS,
        "x_TSM_entropy": entropy_TSM_main,
        "x_TSM_main": None,
        "l_G": l_G,
        "l_gen_main": l_gen_main,
        "l_gen_aux": l_gen_aux,
        "l_seg": None,                      # no masks -> no segmentation loss
        "l_D": l_D,
        "l_D_main": l_D_main,
        "l_D_aux": l_D_aux,
        "l_gradnorm_D": 0.0,                # no optimizer -> no updates
        "l_gradnorm_G": 0.0,
    }
    # TODO(synk): training path (optimizer steps, backward, grad norms, AMP
    # scaler and mask-based segmentation loss) needs autograd/optimizer state
    # and is out of scope for a forward-only Pallas kernel.
    return outputs


if __name__ == "__main__":
    key = jax.random.PRNGKey(0)
    k_p, k_s, k_t, k_ts = jax.random.split(key, 4)

    N, C, H, W = 2, 4, 16, 16
    params = make_params(k_p, c_in=C, hidden=8)

    x_S = jax.random.normal(k_s, (N, C, H, W), jnp.float32)
    x_T = jax.random.normal(k_t, (N, C, H, W), jnp.float32)
    x_TS = jax.random.normal(k_ts, (N, C, H, W), jnp.float32)

    fwd = jax.jit(segmentation_model_forward)
    outputs = fwd(params, x_S, x_T, x_TS)

    jax.block_until_ready(
        (outputs["x_SM_entropy"], outputs["x_TSM_entropy"],
         outputs["l_G"], outputs["l_D"]))
    print("KERNEL_OK")
</pallas_src>

<mosaic_0001>
module attributes {stable_mosaic.version = 11 : i64} {
  func.func @_fused_kernel(%arg0: i32, %arg1: memref<8x4xf32, #tpu.memory_space<smem>>, %arg2: memref<8xf32, #tpu.memory_space<smem>>, %arg3: memref<2x8xf32, #tpu.memory_space<smem>>, %arg4: memref<2xf32, #tpu.memory_space<smem>>, %arg5: memref<8x2xf32, #tpu.memory_space<smem>>, %arg6: memref<8xf32, #tpu.memory_space<smem>>, %arg7: memref<8xf32, #tpu.memory_space<smem>>, %arg8: memref<1xf32, #tpu.memory_space<smem>>, %arg9: memref<8xf32, #tpu.memory_space<smem>>, %arg10: memref<8xf32, #tpu.memory_space<smem>>, %arg11: memref<8xf32, #tpu.memory_space<smem>>, %arg12: memref<1xf32, #tpu.memory_space<smem>>, %arg13: memref<2x4x2x128xf32, #tpu.memory_space<vmem>>, %arg14: memref<2x4x2x128xf32, #tpu.memory_space<vmem>>, %arg15: memref<2x2x128xf32, #tpu.memory_space<vmem>>, %arg16: memref<2x2x128xf32, #tpu.memory_space<vmem>>, %arg17: memref<1x8x128xf32, #tpu.memory_space<vmem>>) attributes {dimension_semantics = [#tpu.dimension_semantics<parallel>], iteration_bounds = array<i64: 1>, scalar_prefetch = 0 : i64, scratch_operands = 0 : i64, tpu.core_type = #tpu.core_type<tc>, window_params = [{transform_indices = @transform_0, window_bounds = array<i64: 8, 4>}, {transform_indices = @transform_1, window_bounds = array<i64: 8>}, {transform_indices = @transform_2, window_bounds = array<i64: 2, 8>}, {transform_indices = @transform_3, window_bounds = array<i64: 2>}, {transform_indices = @transform_4, window_bounds = array<i64: 8, 2>}, {transform_indices = @transform_5, window_bounds = array<i64: 8>}, {transform_indices = @transform_6, window_bounds = array<i64: 8>}, {transform_indices = @transform_7, window_bounds = array<i64: 1>}, {transform_indices = @transform_8, window_bounds = array<i64: 8>}, {transform_indices = @transform_9, window_bounds = array<i64: 8>}, {transform_indices = @transform_10, window_bounds = array<i64: 8>}, {transform_indices = @transform_11, window_bounds = array<i64: 1>}, {transform_indices = @transform_12, window_bounds = array<i64: 2, 4, 2, 128>}, {transform_indices = @transform_13, window_bounds = array<i64: 2, 4, 2, 128>}, {transform_indices = @transform_14, window_bounds = array<i64: 2, 2, 128>}, {transform_indices = @transform_15, window_bounds = array<i64: 2, 2, 128>}, {transform_indices = @transform_16, window_bounds = array<i64: 1, 8, 128>}]} {
    %c0 = arith.constant 0 : index
    %c0_0 = arith.constant 0 : index
    %0 = memref.load %arg1[%c0, %c0_0] : memref<8x4xf32, #tpu.memory_space<smem>>
    %c0_1 = arith.constant 0 : index
    %c1 = arith.constant 1 : index
    %1 = memref.load %arg1[%c0_1, %c1] : memref<8x4xf32, #tpu.memory_space<smem>>
    %c0_2 = arith.constant 0 : index
    %c2 = arith.constant 2 : index
    %2 = memref.load %arg1[%c0_2, %c2] : memref<8x4xf32, #tpu.memory_space<smem>>
    %c0_3 = arith.constant 0 : index
    %c3 = arith.constant 3 : index
    %3 = memref.load %arg1[%c0_3, %c3] : memref<8x4xf32, #tpu.memory_space<smem>>
    %c1_4 = arith.constant 1 : index
    %c0_5 = arith.constant 0 : index
    %4 = memref.load %arg1[%c1_4, %c0_5] : memref<8x4xf32, #tpu.memory_space<smem>>
    %c1_6 = arith.constant 1 : index
    %c1_7 = arith.constant 1 : index
    %5 = memref.load %arg1[%c1_6, %c1_7] : memref<8x4xf32, #tpu.memory_space<smem>>
    %c1_8 = arith.constant 1 : index
    %c2_9 = arith.constant 2 : index
    %6 = memref.load %arg1[%c1_8, %c2_9] : memref<8x4xf32, #tpu.memory_space<smem>>
    %c1_10 = arith.constant 1 : index
    %c3_11 = arith.constant 3 : index
    %7 = memref.load %arg1[%c1_10, %c3_11] : memref<8x4xf32, #tpu.memory_space<smem>>
    %c2_12 = arith.constant 2 : index
    %c0_13 = arith.constant 0 : index
    %8 = memref.load %arg1[%c2_12, %c0_13] : memref<8x4xf32, #tpu.memory_space<smem>>
    %c2_14 = arith.constant 2 : index
    %c1_15 = arith.constant 1 : index
    %9 = memref.load %arg1[%c2_14, %c1_15] : memref<8x4xf32, #tpu.memory_space<smem>>
    %c2_16 = arith.constant 2 : index
    %c2_17 = arith.constant 2 : index
    %10 = memref.load %arg1[%c2_16, %c2_17] : memref<8x4xf32, #tpu.memory_space<smem>>
    %c2_18 = arith.constant 2 : index
    %c3_19 = arith.constant 3 : index
    %11 = memref.load %arg1[%c2_18, %c3_19] : memref<8x4xf32, #tpu.memory_space<smem>>
    %c3_20 = arith.constant 3 : index
    %c0_21 = arith.constant 0 : index
    %12 = memref.load %arg1[%c3_20, %c0_21] : memref<8x4xf32, #tpu.memory_space<smem>>
    %c3_22 = arith.constant 3 : index
    %c1_23 = arith.constant 1 : index
    %13 = memref.load %arg1[%c3_22, %c1_23] : memref<8x4xf32, #tpu.memory_space<smem>>
    %c3_24 = arith.constant 3 : index
    %c2_25 = arith.constant 2 : index
    %14 = memref.load %arg1[%c3_24, %c2_25] : memref<8x4xf32, #tpu.memory_space<smem>>
    %c3_26 = arith.constant 3 : index
    %c3_27 = arith.constant 3 : index
    %15 = memref.load %arg1[%c3_26, %c3_27] : memref<8x4xf32, #tpu.memory_space<smem>>
    %c4 = arith.constant 4 : index
    %c0_28 = arith.constant 0 : index
    %16 = memref.load %arg1[%c4, %c0_28] : memref<8x4xf32, #tpu.memory_space<smem>>
    %c4_29 = arith.constant 4 : index
    %c1_30 = arith.constant 1 : index
    %17 = memref.load %arg1[%c4_29, %c1_30] : memref<8x4xf32, #tpu.memory_space<smem>>
    %c4_31 = arith.constant 4 : index
    %c2_32 = arith.constant 2 : index
    %18 = memref.load %arg1[%c4_31, %c2_32] : memref<8x4xf32, #tpu.memory_space<smem>>
    %c4_33 = arith.constant 4 : index
    %c3_34 = arith.constant 3 : index
    %19 = memref.load %arg1[%c4_33, %c3_34] : memref<8x4xf32, #tpu.memory_space<smem>>
    %c5 = arith.constant 5 : index
    %c0_35 = arith.constant 0 : index
    %20 = memref.load %arg1[%c5, %c0_35] : memref<8x4xf32, #tpu.memory_space<smem>>
    %c5_36 = arith.constant 5 : index
    %c1_37 = arith.constant 1 : index
    %21 = memref.load %arg1[%c5_36, %c1_37] : memref<8x4xf32, #tpu.memory_space<smem>>
    %c5_38 = arith.constant 5 : index
    %c2_39 = arith.constant 2 : index
    %22 = memref.load %arg1[%c5_38, %c2_39] : memref<8x4xf32, #tpu.memory_space<smem>>
    %c5_40 = arith.constant 5 : index
    %c3_41 = arith.constant 3 : index
    %23 = memref.load %arg1[%c5_40, %c3_41] : memref<8x4xf32, #tpu.memory_space<smem>>
    %c6 = arith.constant 6 : index
    %c0_42 = arith.constant 0 : index
    %24 = memref.load %arg1[%c6, %c0_42] : memref<8x4xf32, #tpu.memory_space<smem>>
    %c6_43 = arith.constant 6 : index
    %c1_44 = arith.constant 1 : index
    %25 = memref.load %arg1[%c6_43, %c1_44] : memref<8x4xf32, #tpu.memory_space<smem>>
    %c6_45 = arith.constant 6 : index
    %c2_46 = arith.constant 2 : index
    %26 = memref.load %arg1[%c6_45, %c2_46] : memref<8x4xf32, #tpu.memory_space<smem>>
    %c6_47 = arith.constant 6 : index
    %c3_48 = arith.constant 3 : index
    %27 = memref.load %arg1[%c6_47, %c3_48] : memref<8x4xf32, #tpu.memory_space<smem>>
    %c7 = arith.constant 7 : index
    %c0_49 = arith.constant 0 : index
    %28 = memref.load %arg1[%c7, %c0_49] : memref<8x4xf32, #tpu.memory_space<smem>>
    %c7_50 = arith.constant 7 : index
    %c1_51 = arith.constant 1 : index
    %29 = memref.load %arg1[%c7_50, %c1_51] : memref<8x4xf32, #tpu.memory_space<smem>>
    %c7_52 = arith.constant 7 : index
    %c2_53 = arith.constant 2 : index
    %30 = memref.load %arg1[%c7_52, %c2_53] : memref<8x4xf32, #tpu.memory_space<smem>>
    %c7_54 = arith.constant 7 : index
    %c3_55 = arith.constant 3 : index
    %31 = memref.load %arg1[%c7_54, %c3_55] : memref<8x4xf32, #tpu.memory_space<smem>>
    %c0_56 = arith.constant 0 : index
    %32 = memref.load %arg2[%c0_56] : memref<8xf32, #tpu.memory_space<smem>>
    %c1_57 = arith.constant 1 : index
    %33 = memref.load %arg2[%c1_57] : memref<8xf32, #tpu.memory_space<smem>>
    %c2_58 = arith.constant 2 : index
    %34 = memref.load %arg2[%c2_58] : memref<8xf32, #tpu.memory_space<smem>>
    %c3_59 = arith.constant 3 : index
    %35 = memref.load %arg2[%c3_59] : memref<8xf32, #tpu.memory_space<smem>>
    %c4_60 = arith.constant 4 : index
    %36 = memref.load %arg2[%c4_60] : memref<8xf32, #tpu.memory_space<smem>>
    %c5_61 = arith.constant 5 : index
    %37 = memref.load %arg2[%c5_61] : memref<8xf32, #tpu.memory_space<smem>>
    %c6_62 = arith.constant 6 : index
    %38 = memref.load %arg2[%c6_62] : memref<8xf32, #tpu.memory_space<smem>>
    %c7_63 = arith.constant 7 : index
    %39 = memref.load %arg2[%c7_63] : memref<8xf32, #tpu.memory_space<smem>>
    %c0_64 = arith.constant 0 : index
    %c0_65 = arith.constant 0 : index
    %40 = memref.load %arg3[%c0_64, %c0_65] : memref<2x8xf32, #tpu.memory_space<smem>>
    %c0_66 = arith.constant 0 : index
    %c1_67 = arith.constant 1 : index
    %41 = memref.load %arg3[%c0_66, %c1_67] : memref<2x8xf32, #tpu.memory_space<smem>>
    %c0_68 = arith.constant 0 : index
    %c2_69 = arith.constant 2 : index
    %42 = memref.load %arg3[%c0_68, %c2_69] : memref<2x8xf32, #tpu.memory_space<smem>>
    %c0_70 = arith.constant 0 : index
    %c3_71 = arith.constant 3 : index
    %43 = memref.load %arg3[%c0_70, %c3_71] : memref<2x8xf32, #tpu.memory_space<smem>>
    %c0_72 = arith.constant 0 : index
    %c4_73 = arith.constant 4 : index
    %44 = memref.load %arg3[%c0_72, %c4_73] : memref<2x8xf32, #tpu.memory_space<smem>>
    %c0_74 = arith.constant 0 : index
    %c5_75 = arith.constant 5 : index
    %45 = memref.load %arg3[%c0_74, %c5_75] : memref<2x8xf32, #tpu.memory_space<smem>>
    %c0_76 = arith.constant 0 : index
    %c6_77 = arith.constant 6 : index
    %46 = memref.load %arg3[%c0_76, %c6_77] : memref<2x8xf32, #tpu.memory_space<smem>>
    %c0_78 = arith.constant 0 : index
    %c7_79 = arith.constant 7 : index
    %47 = memref.load %arg3[%c0_78, %c7_79] : memref<2x8xf32, #tpu.memory_space<smem>>
    %c1_80 = arith.constant 1 : index
    %c0_81 = arith.constant 0 : index
    %48 = memref.load %arg3[%c1_80, %c0_81] : memref<2x8xf32, #tpu.memory_space<smem>>
    %c1_82 = arith.constant 1 : index
    %c1_83 = arith.constant 1 : index
    %49 = memref.load %arg3[%c1_82, %c1_83] : memref<2x8xf32, #tpu.memory_space<smem>>
    %c1_84 = arith.constant 1 : index
    %c2_85 = arith.constant 2 : index
    %50 = memref.load %arg3[%c1_84, %c2_85] : memref<2x8xf32, #tpu.memory_space<smem>>
    %c1_86 = arith.constant 1 : index
    %c3_87 = arith.constant 3 : index
    %51 = memref.load %arg3[%c1_86, %c3_87] : memref<2x8xf32, #tpu.memory_space<smem>>
    %c1_88 = arith.constant 1 : index
    %c4_89 = arith.constant 4 : index
    %52 = memref.load %arg3[%c1_88, %c4_89] : memref<2x8xf32, #tpu.memory_space<smem>>
    %c1_90 = arith.constant 1 : index
    %c5_91 = arith.constant 5 : index
    %53 = memref.load %arg3[%c1_90, %c5_91] : memref<2x8xf32, #tpu.memory_space<smem>>
    %c1_92 = arith.constant 1 : index
    %c6_93 = arith.constant 6 : index
    %54 = memref.load %arg3[%c1_92, %c6_93] : memref<2x8xf32, #tpu.memory_space<smem>>
    %c1_94 = arith.constant 1 : index
    %c7_95 = arith.constant 7 : index
    %55 = memref.load %arg3[%c1_94, %c7_95] : memref<2x8xf32, #tpu.memory_space<smem>>
    %c0_96 = arith.constant 0 : index
    %56 = memref.load %arg4[%c0_96] : memref<2xf32, #tpu.memory_space<smem>>
    %c1_97 = arith.constant 1 : index
    %57 = memref.load %arg4[%c1_97] : memref<2xf32, #tpu.memory_space<smem>>
    %c0_98 = arith.constant 0 : index
    %c0_99 = arith.constant 0 : index
    %58 = memref.load %arg5[%c0_98, %c0_99] : memref<8x2xf32, #tpu.memory_space<smem>>
    %c0_100 = arith.constant 0 : index
    %c1_101 = arith.constant 1 : index
    %59 = memref.load %arg5[%c0_100, %c1_101] : memref<8x2xf32, #tpu.memory_space<smem>>
    %c1_102 = arith.constant 1 : index
    %c0_103 = arith.constant 0 : index
    %60 = memref.load %arg5[%c1_102, %c0_103] : memref<8x2xf32, #tpu.memory_space<smem>>
    %c1_104 = arith.constant 1 : index
    %c1_105 = arith.constant 1 : index
    %61 = memref.load %arg5[%c1_104, %c1_105] : memref<8x2xf32, #tpu.memory_space<smem>>
    %c2_106 = arith.constant 2 : index
    %c0_107 = arith.constant 0 : index
    %62 = memref.load %arg5[%c2_106, %c0_107] : memref<8x2xf32, #tpu.memory_space<smem>>
    %c2_108 = arith.constant 2 : index
    %c1_109 = arith.constant 1 : index
    %63 = memref.load %arg5[%c2_108, %c1_109] : memref<8x2xf32, #tpu.memory_space<smem>>
    %c3_110 = arith.constant 3 : index
    %c0_111 = arith.constant 0 : index
    %64 = memref.load %arg5[%c3_110, %c0_111] : memref<8x2xf32, #tpu.memory_space<smem>>
    %c3_112 = arith.constant 3 : index
    %c1_113 = arith.constant 1 : index
    %65 = memref.load %arg5[%c3_112, %c1_113] : memref<8x2xf32, #tpu.memory_space<smem>>
    %c4_114 = arith.constant 4 : index
    %c0_115 = arith.constant 0 : index
    %66 = memref.load %arg5[%c4_114, %c0_115] : memref<8x2xf32, #tpu.memory_space<smem>>
    %c4_116 = arith.constant 4 : index
    %c1_117 = arith.constant 1 : index
    %67 = memref.load %arg5[%c4_116, %c1_117] : memref<8x2xf32, #tpu.memory_space<smem>>
    %c5_118 = arith.constant 5 : index
    %c0_119 = arith.constant 0 : index
    %68 = memref.load %arg5[%c5_118, %c0_119] : memref<8x2xf32, #tpu.memory_space<smem>>
    %c5_120 = arith.constant 5 : index
    %c1_121 = arith.constant 1 : index
    %69 = memref.load %arg5[%c5_120, %c1_121] : memref<8x2xf32, #tpu.memory_space<smem>>
    %c6_122 = arith.constant 6 : index
    %c0_123 = arith.constant 0 : index
    %70 = memref.load %arg5[%c6_122, %c0_123] : memref<8x2xf32, #tpu.memory_space<smem>>
    %c6_124 = arith.constant 6 : index
    %c1_125 = arith.constant 1 : index
    %71 = memref.load %arg5[%c6_124, %c1_125] : memref<8x2xf32, #tpu.memory_space<smem>>
    %c7_126 = arith.constant 7 : index
    %c0_127 = arith.constant 0 : index
    %72 = memref.load %arg5[%c7_126, %c0_127] : memref<8x2xf32, #tpu.memory_space<smem>>
    %c7_128 = arith.constant 7 : index
    %c1_129 = arith.constant 1 : index
    %73 = memref.load %arg5[%c7_128, %c1_129] : memref<8x2xf32, #tpu.memory_space<smem>>
    %c0_130 = arith.constant 0 : index
    %74 = memref.load %arg6[%c0_130] : memref<8xf32, #tpu.memory_space<smem>>
    %c1_131 = arith.constant 1 : index
    %75 = memref.load %arg6[%c1_131] : memref<8xf32, #tpu.memory_space<smem>>
    %c2_132 = arith.constant 2 : index
    %76 = memref.load %arg6[%c2_132] : memref<8xf32, #tpu.memory_space<smem>>
    %c3_133 = arith.constant 3 : index
    %77 = memref.load %arg6[%c3_133] : memref<8xf32, #tpu.memory_space<smem>>
    %c4_134 = arith.constant 4 : index
    %78 = memref.load %arg6[%c4_134] : memref<8xf32, #tpu.memory_space<smem>>
    %c5_135 = arith.constant 5 : index
    %79 = memref.load %arg6[%c5_135] : memref<8xf32, #tpu.memory_space<smem>>
    %c6_136 = arith.constant 6 : index
    %80 = memref.load %arg6[%c6_136] : memref<8xf32, #tpu.memory_space<smem>>
    %c7_137 = arith.constant 7 : index
    %81 = memref.load %arg6[%c7_137] : memref<8xf32, #tpu.memory_space<smem>>
    %c0_138 = arith.constant 0 : index
    %82 = memref.load %arg7[%c0_138] : memref<8xf32, #tpu.memory_space<smem>>
    %c1_139 = arith.constant 1 : index
    %83 = memref.load %arg7[%c1_139] : memref<8xf32, #tpu.memory_space<smem>>
    %c2_140 = arith.constant 2 : index
    %84 = memref.load %arg7[%c2_140] : memref<8xf32, #tpu.memory_space<smem>>
    %c3_141 = arith.constant 3 : index
    %85 = memref.load %arg7[%c3_141] : memref<8xf32, #tpu.memory_space<smem>>
    %c4_142 = arith.constant 4 : index
    %86 = memref.load %arg7[%c4_142] : memref<8xf32, #tpu.memory_space<smem>>
    %c5_143 = arith.constant 5 : index
    %87 = memref.load %arg7[%c5_143] : memref<8xf32, #tpu.memory_space<smem>>
    %c6_144 = arith.constant 6 : index
    %88 = memref.load %arg7[%c6_144] : memref<8xf32, #tpu.memory_space<smem>>
    %c7_145 = arith.constant 7 : index
    %89 = memref.load %arg7[%c7_145] : memref<8xf32, #tpu.memory_space<smem>>
    %c0_146 = arith.constant 0 : index
    %90 = memref.load %arg8[%c0_146] : memref<1xf32, #tpu.memory_space<smem>>
    %c0_147 = arith.constant 0 : index
    %91 = memref.load %arg9[%c0_147] : memref<8xf32, #tpu.memory_space<smem>>
    %c1_148 = arith.constant 1 : index
    %92 = memref.load %arg9[%c1_148] : memref<8xf32, #tpu.memory_space<smem>>
    %c2_149 = arith.constant 2 : index
    %93 = memref.load %arg9[%c2_149] : memref<8xf32, #tpu.memory_space<smem>>
    %c3_150 = arith.constant 3 : index
    %94 = memref.load %arg9[%c3_150] : memref<8xf32, #tpu.memory_space<smem>>
    %c4_151 = arith.constant 4 : index
    %95 = memref.load %arg9[%c4_151] : memref<8xf32, #tpu.memory_space<smem>>
    %c5_152 = arith.constant 5 : index
    %96 = memref.load %arg9[%c5_152] : memref<8xf32, #tpu.memory_space<smem>>
    %c6_153 = arith.constant 6 : index
    %97 = memref.load %arg9[%c6_153] : memref<8xf32, #tpu.memory_space<smem>>
    %c7_154 = arith.constant 7 : index
    %98 = memref.load %arg9[%c7_154] : memref<8xf32, #tpu.memory_space<smem>>
    %c0_155 = arith.constant 0 : index
    %99 = memref.load %arg10[%c0_155] : memref<8xf32, #tpu.memory_space<smem>>
    %c1_156 = arith.constant 1 : index
    %100 = memref.load %arg10[%c1_156] : memref<8xf32, #tpu.memory_space<smem>>
    %c2_157 = arith.constant 2 : index
    %101 = memref.load %arg10[%c2_157] : memref<8xf32, #tpu.memory_space<smem>>
    %c3_158 = arith.constant 3 : index
    %102 = memref.load %arg10[%c3_158] : memref<8xf32, #tpu.memory_space<smem>>
    %c4_159 = arith.constant 4 : index
    %103 = memref.load %arg10[%c4_159] : memref<8xf32, #tpu.memory_space<smem>>
    %c5_160 = arith.constant 5 : index
    %104 = memref.load %arg10[%c5_160] : memref<8xf32, #tpu.memory_space<smem>>
    %c6_161 = arith.constant 6 : index
    %105 = memref.load %arg10[%c6_161] : memref<8xf32, #tpu.memory_space<smem>>
    %c7_162 = arith.constant 7 : index
    %106 = memref.load %arg10[%c7_162] : memref<8xf32, #tpu.memory_space<smem>>
    %c0_163 = arith.constant 0 : index
    %107 = memref.load %arg11[%c0_163] : memref<8xf32, #tpu.memory_space<smem>>
    %c1_164 = arith.constant 1 : index
    %108 = memref.load %arg11[%c1_164] : memref<8xf32, #tpu.memory_space<smem>>
    %c2_165 = arith.constant 2 : index
    %109 = memref.load %arg11[%c2_165] : memref<8xf32, #tpu.memory_space<smem>>
    %c3_166 = arith.constant 3 : index
    %110 = memref.load %arg11[%c3_166] : memref<8xf32, #tpu.memory_space<smem>>
    %c4_167 = arith.constant 4 : index
    %111 = memref.load %arg11[%c4_167] : memref<8xf32, #tpu.memory_space<smem>>
    %c5_168 = arith.constant 5 : index
    %112 = memref.load %arg11[%c5_168] : memref<8xf32, #tpu.memory_space<smem>>
    %c6_169 = arith.constant 6 : index
    %113 = memref.load %arg11[%c6_169] : memref<8xf32, #tpu.memory_space<smem>>
    %c7_170 = arith.constant 7 : index
    %114 = memref.load %arg11[%c7_170] : memref<8xf32, #tpu.memory_space<smem>>
    %c0_171 = arith.constant 0 : index
    %115 = memref.load %arg12[%c0_171] : memref<1xf32, #tpu.memory_space<smem>>
    %c0_172 = arith.constant 0 : index
    %c0_173 = arith.constant 0 : index
    %c0_174 = arith.constant 0 : index
    %c0_175 = arith.constant 0 : index
    %116 = vector.load %arg13[%c0_172, %c0_173, %c0_174, %c0_175] : memref<2x4x2x128xf32, #tpu.memory_space<vmem>>, vector<2x1x2x128xf32>
    %117 = vector.shape_cast %116 : vector<2x1x2x128xf32> to vector<2x2x128xf32>
    %c0_176 = arith.constant 0 : index
    %c1_177 = arith.constant 1 : index
    %c0_178 = arith.constant 0 : index
    %c0_179 = arith.constant 0 : index
    %118 = vector.load %arg13[%c0_176, %c1_177, %c0_178, %c0_179] : memref<2x4x2x128xf32, #tpu.memory_space<vmem>>, vector<2x1x2x128xf32>
    %119 = vector.shape_cast %118 : vector<2x1x2x128xf32> to vector<2x2x128xf32>
    %c0_180 = arith.constant 0 : index
    %c2_181 = arith.constant 2 : index
    %c0_182 = arith.constant 0 : index
    %c0_183 = arith.constant 0 : index
    %120 = vector.load %arg13[%c0_180, %c2_181, %c0_182, %c0_183] : memref<2x4x2x128xf32, #tpu.memory_space<vmem>>, vector<2x1x2x128xf32>
    %121 = vector.shape_cast %120 : vector<2x1x2x128xf32> to vector<2x2x128xf32>
    %c0_184 = arith.constant 0 : index
    %c3_185 = arith.constant 3 : index
    %c0_186 = arith.constant 0 : index
    %c0_187 = arith.constant 0 : index
    %122 = vector.load %arg13[%c0_184, %c3_185, %c0_186, %c0_187] : memref<2x4x2x128xf32, #tpu.memory_space<vmem>>, vector<2x1x2x128xf32>
    %123 = vector.shape_cast %122 : vector<2x1x2x128xf32> to vector<2x2x128xf32>
    %124 = vector.broadcast %0 : f32 to vector<2x2x128xf32>
    %125 = arith.mulf %124, %117 : vector<2x2x128xf32>
    %126 = vector.broadcast %32 : f32 to vector<2x2x128xf32>
    %127 = arith.addf %126, %125 : vector<2x2x128xf32>
    %128 = vector.broadcast %1 : f32 to vector<2x2x128xf32>
    %129 = arith.mulf %128, %119 : vector<2x2x128xf32>
    %130 = arith.addf %127, %129 : vector<2x2x128xf32>
    %131 = vector.broadcast %2 : f32 to vector<2x2x128xf32>
    %132 = arith.mulf %131, %121 : vector<2x2x128xf32>
    %133 = arith.addf %130, %132 : vector<2x2x128xf32>
    %134 = vector.broadcast %3 : f32 to vector<2x2x128xf32>
    %135 = arith.mulf %134, %123 : vector<2x2x128xf32>
    %136 = arith.addf %133, %135 : vector<2x2x128xf32>
    %cst = arith.constant 0.000000e+00 : f32
    %137 = vector.broadcast %cst : f32 to vector<2x2x128xf32>
    %138 = arith.maximumf %136, %137 : vector<2x2x128xf32>
    %139 = vector.broadcast %40 : f32 to vector<2x2x128xf32>
    %140 = arith.mulf %139, %138 : vector<2x2x128xf32>
    %141 = vector.broadcast %48 : f32 to vector<2x2x128xf32>
    %142 = arith.mulf %141, %138 : vector<2x2x128xf32>
    %143 = vector.broadcast %4 : f32 to vector<2x2x128xf32>
    %144 = arith.mulf %143, %117 : vector<2x2x128xf32>
    %145 = vector.broadcast %33 : f32 to vector<2x2x128xf32>
    %146 = arith.addf %145, %144 : vector<2x2x128xf32>
    %147 = vector.broadcast %5 : f32 to vector<2x2x128xf32>
    %148 = arith.mulf %147, %119 : vector<2x2x128xf32>
    %149 = arith.addf %146, %148 : vector<2x2x128xf32>
    %150 = vector.broadcast %6 : f32 to vector<2x2x128xf32>
    %151 = arith.mulf %150, %121 : vector<2x2x128xf32>
    %152 = arith.addf %149, %151 : vector<2x2x128xf32>
    %153 = vector.broadcast %7 : f32 to vector<2x2x128xf32>
    %154 = arith.mulf %153, %123 : vector<2x2x128xf32>
    %155 = arith.addf %152, %154 : vector<2x2x128xf32>
    %cst_188 = arith.constant 0.000000e+00 : f32
    %156 = vector.broadcast %cst_188 : f32 to vector<2x2x128xf32>
    %157 = arith.maximumf %155, %156 : vector<2x2x128xf32>
    %158 = vector.broadcast %41 : f32 to vector<2x2x128xf32>
    %159 = arith.mulf %158, %157 : vector<2x2x128xf32>
    %160 = arith.addf %140, %159 : vector<2x2x128xf32>
    %161 = vector.broadcast %49 : f32 to vector<2x2x128xf32>
    %162 = arith.mulf %161, %157 : vector<2x2x128xf32>
    %163 = arith.addf %142, %162 : vector<2x2x128xf32>
    %164 = vector.broadcast %8 : f32 to vector<2x2x128xf32>
    %165 = arith.mulf %164, %117 : vector<2x2x128xf32>
    %166 = vector.broadcast %34 : f32 to vector<2x2x128xf32>
    %167 = arith.addf %166, %165 : vector<2x2x128xf32>
    %168 = vector.broadcast %9 : f32 to vector<2x2x128xf32>
    %169 = arith.mulf %168, %119 : vector<2x2x128xf32>
    %170 = arith.addf %167, %169 : vector<2x2x128xf32>
    %171 = vector.broadcast %10 : f32 to vector<2x2x128xf32>
    %172 = arith.mulf %171, %121 : vector<2x2x128xf32>
    %173 = arith.addf %170, %172 : vector<2x2x128xf32>
    %174 = vector.broadcast %11 : f32 to vector<2x2x128xf32>
    %175 = arith.mulf %174, %123 : vector<2x2x128xf32>
    %176 = arith.addf %173, %175 : vector<2x2x128xf32>
    %cst_189 = arith.constant 0.000000e+00 : f32
    %177 = vector.broadcast %cst_189 : f32 to vector<2x2x128xf32>
    %178 = arith.maximumf %176, %177 : vector<2x2x128xf32>
    %179 = vector.broadcast %42 : f32 to vector<2x2x128xf32>
    %180 = arith.mulf %179, %178 : vector<2x2x128xf32>
    %181 = arith.addf %160, %180 : vector<2x2x128xf32>
    %182 = vector.broadcast %50 : f32 to vector<2x2x128xf32>
    %183 = arith.mulf %182, %178 : vector<2x2x128xf32>
    %184 = arith.addf %163, %183 : vector<2x2x128xf32>
    %185 = vector.broadcast %12 : f32 to vector<2x2x128xf32>
    %186 = arith.mulf %185, %117 : vector<2x2x128xf32>
    %187 = vector.broadcast %35 : f32 to vector<2x2x128xf32>
    %188 = arith.addf %187, %186 : vector<2x2x128xf32>
    %189 = vector.broadcast %13 : f32 to vector<2x2x128xf32>
    %190 = arith.mulf %189, %119 : vector<2x2x128xf32>
    %191 = arith.addf %188, %190 : vector<2x2x128xf32>
    %192 = vector.broadcast %14 : f32 to vector<2x2x128xf32>
    %193 = arith.mulf %192, %121 : vector<2x2x128xf32>
    %194 = arith.addf %191, %193 : vector<2x2x128xf32>
    %195 = vector.broadcast %15 : f32 to vector<2x2x128xf32>
    %196 = arith.mulf %195, %123 : vector<2x2x128xf32>
    %197 = arith.addf %194, %196 : vector<2x2x128xf32>
    %cst_190 = arith.constant 0.000000e+00 : f32
    %198 = vector.broadcast %cst_190 : f32 to vector<2x2x128xf32>
    %199 = arith.maximumf %197, %198 : vector<2x2x128xf32>
    %200 = vector.broadcast %43 : f32 to vector<2x2x128xf32>
    %201 = arith.mulf %200, %199 : vector<2x2x128xf32>
    %202 = arith.addf %181, %201 : vector<2x2x128xf32>
    %203 = vector.broadcast %51 : f32 to vector<2x2x128xf32>
    %204 = arith.mulf %203, %199 : vector<2x2x128xf32>
    %205 = arith.addf %184, %204 : vector<2x2x128xf32>
    %206 = vector.broadcast %16 : f32 to vector<2x2x128xf32>
    %207 = arith.mulf %206, %117 : vector<2x2x128xf32>
    %208 = vector.broadcast %36 : f32 to vector<2x2x128xf32>
    %209 = arith.addf %208, %207 : vector<2x2x128xf32>
    %210 = vector.broadcast %17 : f32 to vector<2x2x128xf32>
    %211 = arith.mulf %210, %119 : vector<2x2x128xf32>
    %212 = arith.addf %209, %211 : vector<2x2x128xf32>
    %213 = vector.broadcast %18 : f32 to vector<2x2x128xf32>
    %214 = arith.mulf %213, %121 : vector<2x2x128xf32>
    %215 = arith.addf %212, %214 : vector<2x2x128xf32>
    %216 = vector.broadcast %19 : f32 to vector<2x2x128xf32>
    %217 = arith.mulf %216, %123 : vector<2x2x128xf32>
    %218 = arith.addf %215, %217 : vector<2x2x128xf32>
    %cst_191 = arith.constant 0.000000e+00 : f32
    %219 = vector.broadcast %cst_191 : f32 to vector<2x2x128xf32>
    %220 = arith.maximumf %218, %219 : vector<2x2x128xf32>
    %221 = vector.broadcast %44 : f32 to vector<2x2x128xf32>
    %222 = arith.mulf %221, %220 : vector<2x2x128xf32>
    %223 = arith.addf %202, %222 : vector<2x2x128xf32>
    %224 = vector.broadcast %52 : f32 to vector<2x2x128xf32>
    %225 = arith.mulf %224, %220 : vector<2x2x128xf32>
    %226 = arith.addf %205, %225 : vector<2x2x128xf32>
    %227 = vector.broadcast %20 : f32 to vector<2x2x128xf32>
    %228 = arith.mulf %227, %117 : vector<2x2x128xf32>
    %229 = vector.broadcast %37 : f32 to vector<2x2x128xf32>
    %230 = arith.addf %229, %228 : vector<2x2x128xf32>
    %231 = vector.broadcast %21 : f32 to vector<2x2x128xf32>
    %232 = arith.mulf %231, %119 : vector<2x2x128xf32>
    %233 = arith.addf %230, %232 : vector<2x2x128xf32>
    %234 = vector.broadcast %22 : f32 to vector<2x2x128xf32>
    %235 = arith.mulf %234, %121 : vector<2x2x128xf32>
    %236 = arith.addf %233, %235 : vector<2x2x128xf32>
    %237 = vector.broadcast %23 : f32 to vector<2x2x128xf32>
    %238 = arith.mulf %237, %123 : vector<2x2x128xf32>
    %239 = arith.addf %236, %238 : vector<2x2x128xf32>
    %cst_192 = arith.constant 0.000000e+00 : f32
    %240 = vector.broadcast %cst_192 : f32 to vector<2x2x128xf32>
    %241 = arith.maximumf %239, %240 : vector<2x2x128xf32>
    %242 = vector.broadcast %45 : f32 to vector<2x2x128xf32>
    %243 = arith.mulf %242, %241 : vector<2x2x128xf32>
    %244 = arith.addf %223, %243 : vector<2x2x128xf32>
    %245 = vector.broadcast %53 : f32 to vector<2x2x128xf32>
    %246 = arith.mulf %245, %241 : vector<2x2x128xf32>
    %247 = arith.addf %226, %246 : vector<2x2x128xf32>
    %248 = vector.broadcast %24 : f32 to vector<2x2x128xf32>
    %249 = arith.mulf %248, %117 : vector<2x2x128xf32>
    %250 = vector.broadcast %38 : f32 to vector<2x2x128xf32>
    %251 = arith.addf %250, %249 : vector<2x2x128xf32>
    %252 = vector.broadcast %25 : f32 to vector<2x2x128xf32>
    %253 = arith.mulf %252, %119 : vector<2x2x128xf32>
    %254 = arith.addf %251, %253 : vector<2x2x128xf32>
    %255 = vector.broadcast %26 : f32 to vector<2x2x128xf32>
    %256 = arith.mulf %255, %121 : vector<2x2x128xf32>
    %257 = arith.addf %254, %256 : vector<2x2x128xf32>
    %258 = vector.broadcast %27 : f32 to vector<2x2x128xf32>
    %259 = arith.mulf %258, %123 : vector<2x2x128xf32>
    %260 = arith.addf %257, %259 : vector<2x2x128xf32>
    %cst_193 = arith.constant 0.000000e+00 : f32
    %261 = vector.broadcast %cst_193 : f32 to vector<2x2x128xf32>
    %262 = arith.maximumf %260, %261 : vector<2x2x128xf32>
    %263 = vector.broadcast %46 : f32 to vector<2x2x128xf32>
    %264 = arith.mulf %263, %262 : vector<2x2x128xf32>
    %265 = arith.addf %244, %264 : vector<2x2x128xf32>
    %266 = vector.broadcast %54 : f32 to vector<2x2x128xf32>
    %267 = arith.mulf %266, %262 : vector<2x2x128xf32>
    %268 = arith.addf %247, %267 : vector<2x2x128xf32>
    %269 = vector.broadcast %28 : f32 to vector<2x2x128xf32>
    %270 = arith.mulf %269, %117 : vector<2x2x128xf32>
    %271 = vector.broadcast %39 : f32 to vector<2x2x128xf32>
    %272 = arith.addf %271, %270 : vector<2x2x128xf32>
    %273 = vector.broadcast %29 : f32 to vector<2x2x128xf32>
    %274 = arith.mulf %273, %119 : vector<2x2x128xf32>
    %275 = arith.addf %272, %274 : vector<2x2x128xf32>
    %276 = vector.broadcast %30 : f32 to vector<2x2x128xf32>
    %277 = arith.mulf %276, %121 : vector<2x2x128xf32>
    %278 = arith.addf %275, %277 : vector<2x2x128xf32>
    %279 = vector.broadcast %31 : f32 to vector<2x2x128xf32>
    %280 = arith.mulf %279, %123 : vector<2x2x128xf32>
    %281 = arith.addf %278, %280 : vector<2x2x128xf32>
    %cst_194 = arith.constant 0.000000e+00 : f32
    %282 = vector.broadcast %cst_194 : f32 to vector<2x2x128xf32>
    %283 = arith.maximumf %281, %282 : vector<2x2x128xf32>
    %284 = vector.broadcast %47 : f32 to vector<2x2x128xf32>
    %285 = arith.mulf %284, %283 : vector<2x2x128xf32>
    %286 = arith.addf %265, %285 : vector<2x2x128xf32>
    %287 = vector.broadcast %55 : f32 to vector<2x2x128xf32>
    %288 = arith.mulf %287, %283 : vector<2x2x128xf32>
    %289 = arith.addf %268, %288 : vector<2x2x128xf32>
    %290 = vector.broadcast %56 : f32 to vector<2x2x128xf32>
    %291 = arith.addf %286, %290 : vector<2x2x128xf32>
    %292 = arith.negf %291 : vector<2x2x128xf32>
    %293 = math.exp %292 : vector<2x2x128xf32>
    %cst_195 = arith.constant 1.000000e+00 : f32
    %294 = vector.broadcast %cst_195 : f32 to vector<2x2x128xf32>
    %295 = arith.addf %294, %293 : vector<2x2x128xf32>
    %296 = arith.divf %294, %295 : vector<2x2x128xf32>
    %297 = vector.broadcast %57 : f32 to vector<2x2x128xf32>
    %298 = arith.addf %289, %297 : vector<2x2x128xf32>
    %299 = arith.negf %298 : vector<2x2x128xf32>
    %300 = math.exp %299 : vector<2x2x128xf32>
    %cst_196 = arith.constant 1.000000e+00 : f32
    %301 = vector.broadcast %cst_196 : f32 to vector<2x2x128xf32>
    %302 = arith.addf %301, %300 : vector<2x2x128xf32>
    %303 = arith.divf %301, %302 : vector<2x2x128xf32>
    %cst_197 = arith.constant 1.000000e+00 : f32
    %304 = vector.broadcast %cst_197 : f32 to vector<2x2x128xf32>
    %305 = arith.subf %304, %303 : vector<2x2x128xf32>
    %cst_198 = arith.constant 0.000000e+00 : f32
    %306 = vector.broadcast %cst_198 : f32 to vector<2x2x128xf32>
    %307 = arith.subf %306, %303 : vector<2x2x128xf32>
    %cst_199 = arith.constant 1.000000e-30 : f32
    %308 = vector.broadcast %cst_199 : f32 to vector<2x2x128xf32>
    %309 = arith.addf %303, %308 : vector<2x2x128xf32>
    %310 = math.log %309 : vector<2x2x128xf32>
    %cst_200 = arith.constant 2.000000e+00 : f32
    %311 = math.log %cst_200 : f32
    %312 = vector.broadcast %311 : f32 to vector<2x2x128xf32>
    %313 = arith.divf %310, %312 : vector<2x2x128xf32>
    %314 = arith.mulf %307, %313 : vector<2x2x128xf32>
    %cst_201 = arith.constant 0.000000e+00 : f32
    %315 = vector.broadcast %cst_201 : f32 to vector<2x2x128xf32>
    %316 = arith.subf %315, %305 : vector<2x2x128xf32>
    %cst_202 = arith.constant 1.000000e-30 : f32
    %317 = vector.broadcast %cst_202 : f32 to vector<2x2x128xf32>
    %318 = arith.addf %305, %317 : vector<2x2x128xf32>
    %319 = math.log %318 : vector<2x2x128xf32>
    %cst_203 = arith.constant 2.000000e+00 : f32
    %320 = math.log %cst_203 : f32
    %321 = vector.broadcast %320 : f32 to vector<2x2x128xf32>
    %322 = arith.divf %319, %321 : vector<2x2x128xf32>
    %323 = arith.mulf %316, %322 : vector<2x2x128xf32>
    %324 = arith.addf %314, %323 : vector<2x2x128xf32>
    %c0_204 = arith.constant 0 : index
    %c0_205 = arith.constant 0 : index
    %c0_206 = arith.constant 0 : index
    %325 = vector.load %arg15[%c0_204, %c0_205, %c0_206] : memref<2x2x128xf32, #tpu.memory_space<vmem>>, vector<2x2x128xf32>
    tpu.vector_store %arg15[%c0_204, %c0_205, %c0_206], %324 {strides = array<i32>} : memref<2x2x128xf32, #tpu.memory_space<vmem>>, vector<2x2x128xf32>,
    %326 = vector.broadcast %58 : f32 to vector<2x2x128xf32>
    %327 = arith.mulf %326, %314 : vector<2x2x128xf32>
    %328 = vector.broadcast %74 : f32 to vector<2x2x128xf32>
    %329 = arith.addf %328, %327 : vector<2x2x128xf32>
    %330 = vector.broadcast %59 : f32 to vector<2x2x128xf32>
    %331 = arith.mulf %330, %323 : vector<2x2x128xf32>
    %332 = arith.addf %329, %331 : vector<2x2x128xf32>
    %cst_207 = arith.constant 2.000000e-01 : f32
    %333 = vector.broadcast %cst_207 : f32 to vector<2x2x128xf32>
    %334 = arith.mulf %333, %332 : vector<2x2x128xf32>
    %335 = arith.maximumf %332, %334 : vector<2x2x128xf32>
    %336 = vector.broadcast %91 : f32 to vector<2x2x128xf32>
    %337 = arith.mulf %336, %296 : vector<2x2x128xf32>
    %338 = vector.broadcast %99 : f32 to vector<2x2x128xf32>
    %339 = arith.addf %338, %337 : vector<2x2x128xf32>
    %cst_208 = arith.constant 2.000000e-01 : f32
    %340 = vector.broadcast %cst_208 : f32 to vector<2x2x128xf32>
    %341 = arith.mulf %340, %339 : vector<2x2x128xf32>
    %342 = arith.maximumf %339, %341 : vector<2x2x128xf32>
    %343 = vector.broadcast %82 : f32 to vector<2x2x128xf32>
    %344 = arith.mulf %343, %335 : vector<2x2x128xf32>
    %345 = vector.broadcast %107 : f32 to vector<2x2x128xf32>
    %346 = arith.mulf %345, %342 : vector<2x2x128xf32>
    %347 = vector.broadcast %60 : f32 to vector<2x2x128xf32>
    %348 = arith.mulf %347, %314 : vector<2x2x128xf32>
    %349 = vector.broadcast %75 : f32 to vector<2x2x128xf32>
    %350 = arith.addf %349, %348 : vector<2x2x128xf32>
    %351 = vector.broadcast %61 : f32 to vector<2x2x128xf32>
    %352 = arith.mulf %351, %323 : vector<2x2x128xf32>
    %353 = arith.addf %350, %352 : vector<2x2x128xf32>
    %cst_209 = arith.constant 2.000000e-01 : f32
    %354 = vector.broadcast %cst_209 : f32 to vector<2x2x128xf32>
    %355 = arith.mulf %354, %353 : vector<2x2x128xf32>
    %356 = arith.maximumf %353, %355 : vector<2x2x128xf32>
    %357 = vector.broadcast %92 : f32 to vector<2x2x128xf32>
    %358 = arith.mulf %357, %296 : vector<2x2x128xf32>
    %359 = vector.broadcast %100 : f32 to vector<2x2x128xf32>
    %360 = arith.addf %359, %358 : vector<2x2x128xf32>
    %cst_210 = arith.constant 2.000000e-01 : f32
    %361 = vector.broadcast %cst_210 : f32 to vector<2x2x128xf32>
    %362 = arith.mulf %361, %360 : vector<2x2x128xf32>
    %363 = arith.maximumf %360, %362 : vector<2x2x128xf32>
    %364 = vector.broadcast %83 : f32 to vector<2x2x128xf32>
    %365 = arith.mulf %364, %356 : vector<2x2x128xf32>
    %366 = arith.addf %344, %365 : vector<2x2x128xf32>
    %367 = vector.broadcast %108 : f32 to vector<2x2x128xf32>
    %368 = arith.mulf %367, %363 : vector<2x2x128xf32>
    %369 = arith.addf %346, %368 : vector<2x2x128xf32>
    %370 = vector.broadcast %62 : f32 to vector<2x2x128xf32>
    %371 = arith.mulf %370, %314 : vector<2x2x128xf32>
    %372 = vector.broadcast %76 : f32 to vector<2x2x128xf32>
    %373 = arith.addf %372, %371 : vector<2x2x128xf32>
    %374 = vector.broadcast %63 : f32 to vector<2x2x128xf32>
    %375 = arith.mulf %374, %323 : vector<2x2x128xf32>
    %376 = arith.addf %373, %375 : vector<2x2x128xf32>
    %cst_211 = arith.constant 2.000000e-01 : f32
    %377 = vector.broadcast %cst_211 : f32 to vector<2x2x128xf32>
    %378 = arith.mulf %377, %376 : vector<2x2x128xf32>
    %379 = arith.maximumf %376, %378 : vector<2x2x128xf32>
    %380 = vector.broadcast %93 : f32 to vector<2x2x128xf32>
    %381 = arith.mulf %380, %296 : vector<2x2x128xf32>
    %382 = vector.broadcast %101 : f32 to vector<2x2x128xf32>
    %383 = arith.addf %382, %381 : vector<2x2x128xf32>
    %cst_212 = arith.constant 2.000000e-01 : f32
    %384 = vector.broadcast %cst_212 : f32 to vector<2x2x128xf32>
    %385 = arith.mulf %384, %383 : vector<2x2x128xf32>
    %386 = arith.maximumf %383, %385 : vector<2x2x128xf32>
    %387 = vector.broadcast %84 : f32 to vector<2x2x128xf32>
    %388 = arith.mulf %387, %379 : vector<2x2x128xf32>
    %389 = arith.addf %366, %388 : vector<2x2x128xf32>
    %390 = vector.broadcast %109 : f32 to vector<2x2x128xf32>
    %391 = arith.mulf %390, %386 : vector<2x2x128xf32>
    %392 = arith.addf %369, %391 : vector<2x2x128xf32>
    %393 = vector.broadcast %64 : f32 to vector<2x2x128xf32>
    %394 = arith.mulf %393, %314 : vector<2x2x128xf32>
    %395 = vector.broadcast %77 : f32 to vector<2x2x128xf32>
    %396 = arith.addf %395, %394 : vector<2x2x128xf32>
    %397 = vector.broadcast %65 : f32 to vector<2x2x128xf32>
    %398 = arith.mulf %397, %323 : vector<2x2x128xf32>
    %399 = arith.addf %396, %398 : vector<2x2x128xf32>
    %cst_213 = arith.constant 2.000000e-01 : f32
    %400 = vector.broadcast %cst_213 : f32 to vector<2x2x128xf32>
    %401 = arith.mulf %400, %399 : vector<2x2x128xf32>
    %402 = arith.maximumf %399, %401 : vector<2x2x128xf32>
    %403 = vector.broadcast %94 : f32 to vector<2x2x128xf32>
    %404 = arith.mulf %403, %296 : vector<2x2x128xf32>
    %405 = vector.broadcast %102 : f32 to vector<2x2x128xf32>
    %406 = arith.addf %405, %404 : vector<2x2x128xf32>
    %cst_214 = arith.constant 2.000000e-01 : f32
    %407 = vector.broadcast %cst_214 : f32 to vector<2x2x128xf32>
    %408 = arith.mulf %407, %406 : vector<2x2x128xf32>
    %409 = arith.maximumf %406, %408 : vector<2x2x128xf32>
    %410 = vector.broadcast %85 : f32 to vector<2x2x128xf32>
    %411 = arith.mulf %410, %402 : vector<2x2x128xf32>
    %412 = arith.addf %389, %411 : vector<2x2x128xf32>
    %413 = vector.broadcast %110 : f32 to vector<2x2x128xf32>
    %414 = arith.mulf %413, %409 : vector<2x2x128xf32>
    %415 = arith.addf %392, %414 : vector<2x2x128xf32>
    %416 = vector.broadcast %66 : f32 to vector<2x2x128xf32>
    %417 = arith.mulf %416, %314 : vector<2x2x128xf32>
    %418 = vector.broadcast %78 : f32 to vector<2x2x128xf32>
    %419 = arith.addf %418, %417 : vector<2x2x128xf32>
    %420 = vector.broadcast %67 : f32 to vector<2x2x128xf32>
    %421 = arith.mulf %420, %323 : vector<2x2x128xf32>
    %422 = arith.addf %419, %421 : vector<2x2x128xf32>
    %cst_215 = arith.constant 2.000000e-01 : f32
    %423 = vector.broadcast %cst_215 : f32 to vector<2x2x128xf32>
    %424 = arith.mulf %423, %422 : vector<2x2x128xf32>
    %425 = arith.maximumf %422, %424 : vector<2x2x128xf32>
    %426 = vector.broadcast %95 : f32 to vector<2x2x128xf32>
    %427 = arith.mulf %426, %296 : vector<2x2x128xf32>
    %428 = vector.broadcast %103 : f32 to vector<2x2x128xf32>
    %429 = arith.addf %428, %427 : vector<2x2x128xf32>
    %cst_216 = arith.constant 2.000000e-01 : f32
    %430 = vector.broadcast %cst_216 : f32 to vector<2x2x128xf32>
    %431 = arith.mulf %430, %429 : vector<2x2x128xf32>
    %432 = arith.maximumf %429, %431 : vector<2x2x128xf32>
    %433 = vector.broadcast %86 : f32 to vector<2x2x128xf32>
    %434 = arith.mulf %433, %425 : vector<2x2x128xf32>
    %435 = arith.addf %412, %434 : vector<2x2x128xf32>
    %436 = vector.broadcast %111 : f32 to vector<2x2x128xf32>
    %437 = arith.mulf %436, %432 : vector<2x2x128xf32>
    %438 = arith.addf %415, %437 : vector<2x2x128xf32>
    %439 = vector.broadcast %68 : f32 to vector<2x2x128xf32>
    %440 = arith.mulf %439, %314 : vector<2x2x128xf32>
    %441 = vector.broadcast %79 : f32 to vector<2x2x128xf32>
    %442 = arith.addf %441, %440 : vector<2x2x128xf32>
    %443 = vector.broadcast %69 : f32 to vector<2x2x128xf32>
    %444 = arith.mulf %443, %323 : vector<2x2x128xf32>
    %445 = arith.addf %442, %444 : vector<2x2x128xf32>
    %cst_217 = arith.constant 2.000000e-01 : f32
    %446 = vector.broadcast %cst_217 : f32 to vector<2x2x128xf32>
    %447 = arith.mulf %446, %445 : vector<2x2x128xf32>
    %448 = arith.maximumf %445, %447 : vector<2x2x128xf32>
    %449 = vector.broadcast %96 : f32 to vector<2x2x128xf32>
    %450 = arith.mulf %449, %296 : vector<2x2x128xf32>
    %451 = vector.broadcast %104 : f32 to vector<2x2x128xf32>
    %452 = arith.addf %451, %450 : vector<2x2x128xf32>
    %cst_218 = arith.constant 2.000000e-01 : f32
    %453 = vector.broadcast %cst_218 : f32 to vector<2x2x128xf32>
    %454 = arith.mulf %453, %452 : vector<2x2x128xf32>
    %455 = arith.maximumf %452, %454 : vector<2x2x128xf32>
    %456 = vector.broadcast %87 : f32 to vector<2x2x128xf32>
    %457 = arith.mulf %456, %448 : vector<2x2x128xf32>
    %458 = arith.addf %435, %457 : vector<2x2x128xf32>
    %459 = vector.broadcast %112 : f32 to vector<2x2x128xf32>
    %460 = arith.mulf %459, %455 : vector<2x2x128xf32>
    %461 = arith.addf %438, %460 : vector<2x2x128xf32>
    %462 = vector.broadcast %70 : f32 to vector<2x2x128xf32>
    %463 = arith.mulf %462, %314 : vector<2x2x128xf32>
    %464 = vector.broadcast %80 : f32 to vector<2x2x128xf32>
    %465 = arith.addf %464, %463 : vector<2x2x128xf32>
    %466 = vector.broadcast %71 : f32 to vector<2x2x128xf32>
    %467 = arith.mulf %466, %323 : vector<2x2x128xf32>
    %468 = arith.addf %465, %467 : vector<2x2x128xf32>
    %cst_219 = arith.constant 2.000000e-01 : f32
    %469 = vector.broadcast %cst_219 : f32 to vector<2x2x128xf32>
    %470 = arith.mulf %469, %468 : vector<2x2x128xf32>
    %471 = arith.maximumf %468, %470 : vector<2x2x128xf32>
    %472 = vector.broadcast %97 : f32 to vector<2x2x128xf32>
    %473 = arith.mulf %472, %296 : vector<2x2x128xf32>
    %474 = vector.broadcast %105 : f32 to vector<2x2x128xf32>
    %475 = arith.addf %474, %473 : vector<2x2x128xf32>
    %cst_220 = arith.constant 2.000000e-01 : f32
    %476 = vector.broadcast %cst_220 : f32 to vector<2x2x128xf32>
    %477 = arith.mulf %476, %475 : vector<2x2x128xf32>
    %478 = arith.maximumf %475, %477 : vector<2x2x128xf32>
    %479 = vector.broadcast %88 : f32 to vector<2x2x128xf32>
    %480 = arith.mulf %479, %471 : vector<2x2x128xf32>
    %481 = arith.addf %458, %480 : vector<2x2x128xf32>
    %482 = vector.broadcast %113 : f32 to vector<2x2x128xf32>
    %483 = arith.mulf %482, %478 : vector<2x2x128xf32>
    %484 = arith.addf %461, %483 : vector<2x2x128xf32>
    %485 = vector.broadcast %72 : f32 to vector<2x2x128xf32>
    %486 = arith.mulf %485, %314 : vector<2x2x128xf32>
    %487 = vector.broadcast %81 : f32 to vector<2x2x128xf32>
    %488 = arith.addf %487, %486 : vector<2x2x128xf32>
    %489 = vector.broadcast %73 : f32 to vector<2x2x128xf32>
    %490 = arith.mulf %489, %323 : vector<2x2x128xf32>
    %491 = arith.addf %488, %490 : vector<2x2x128xf32>
    %cst_221 = arith.constant 2.000000e-01 : f32
    %492 = vector.broadcast %cst_221 : f32 to vector<2x2x128xf32>
    %493 = arith.mulf %492, %491 : vector<2x2x128xf32>
    %494 = arith.maximumf %491, %493 : vector<2x2x128xf32>
    %495 = vector.broadcast %98 : f32 to vector<2x2x128xf32>
    %496 = arith.mulf %495, %296 : vector<2x2x128xf32>
    %497 = vector.broadcast %106 : f32 to vector<2x2x128xf32>
    %498 = arith.addf %497, %496 : vector<2x2x128xf32>
    %cst_222 = arith.constant 2.000000e-01 : f32
    %499 = vector.broadcast %cst_222 : f32 to vector<2x2x128xf32>
    %500 = arith.mulf %499, %498 : vector<2x2x128xf32>
    %501 = arith.maximumf %498, %500 : vector<2x2x128xf32>
    %502 = vector.broadcast %89 : f32 to vector<2x2x128xf32>
    %503 = arith.mulf %502, %494 : vector<2x2x128xf32>
    %504 = arith.addf %481, %503 : vector<2x2x128xf32>
    %505 = vector.broadcast %114 : f32 to vector<2x2x128xf32>
    %506 = arith.mulf %505, %501 : vector<2x2x128xf32>
    %507 = arith.addf %484, %506 : vector<2x2x128xf32>
    %508 = vector.broadcast %90 : f32 to vector<2x2x128xf32>
    %509 = arith.addf %504, %508 : vector<2x2x128xf32>
    %510 = vector.broadcast %115 : f32 to vector<2x2x128xf32>
    %511 = arith.addf %507, %510 : vector<2x2x128xf32>
    %cst_223 = arith.constant 1.000000e+00 : f32
    %512 = vector.broadcast %cst_223 : f32 to vector<2x2x128xf32>
    %513 = arith.subf %512, %509 : vector<2x2x128xf32>
    %cst_224 = arith.constant 0.000000e+00 : f32
    %514 = vector.broadcast %cst_224 : f32 to vector<2x2x128xf32>
    %515 = arith.maximumf %513, %514 : vector<2x2x128xf32>
    %cst_225 = arith.constant dense<0.000000e+00> : vector<2x128xf32>
    %516 = vector.multi_reduction <add>, %515, %cst_225 [1] : vector<2x2x128xf32> to vector<2x128xf32>
    %cst_226 = arith.constant 1.000000e+00 : f32
    %517 = vector.broadcast %cst_226 : f32 to vector<2x2x128xf32>
    %518 = arith.subf %517, %511 : vector<2x2x128xf32>
    %cst_227 = arith.constant 0.000000e+00 : f32
    %519 = vector.broadcast %cst_227 : f32 to vector<2x2x128xf32>
    %520 = arith.maximumf %518, %519 : vector<2x2x128xf32>
    %cst_228 = arith.constant dense<0.000000e+00> : vector<2x128xf32>
    %521 = vector.multi_reduction <add>, %520, %cst_228 [1] : vector<2x2x128xf32> to vector<2x128xf32>
    %c0_229 = arith.constant 0 : index
    %c0_230 = arith.constant 0 : index
    %c0_231 = arith.constant 0 : index
    %c0_232 = arith.constant 0 : index
    %522 = vector.load %arg14[%c0_229, %c0_230, %c0_231, %c0_232] : memref<2x4x2x128xf32, #tpu.memory_space<vmem>>, vector<2x1x2x128xf32>
    %523 = vector.shape_cast %522 : vector<2x1x2x128xf32> to vector<2x2x128xf32>
    %c0_233 = arith.constant 0 : index
    %c1_234 = arith.constant 1 : index
    %c0_235 = arith.constant 0 : index
    %c0_236 = arith.constant 0 : index
    %524 = vector.load %arg14[%c0_233, %c1_234, %c0_235, %c0_236] : memref<2x4x2x128xf32, #tpu.memory_space<vmem>>, vector<2x1x2x128xf32>
    %525 = vector.shape_cast %524 : vector<2x1x2x128xf32> to vector<2x2x128xf32>
    %c0_237 = arith.constant 0 : index
    %c2_238 = arith.constant 2 : index
    %c0_239 = arith.constant 0 : index
    %c0_240 = arith.constant 0 : index
    %526 = vector.load %arg14[%c0_237, %c2_238, %c0_239, %c0_240] : memref<2x4x2x128xf32, #tpu.memory_space<vmem>>, vector<2x1x2x128xf32>
    %527 = vector.shape_cast %526 : vector<2x1x2x128xf32> to vector<2x2x128xf32>
    %c0_241 = arith.constant 0 : index
    %c3_242 = arith.constant 3 : index
    %c0_243 = arith.constant 0 : index
    %c0_244 = arith.constant 0 : index
    %528 = vector.load %arg14[%c0_241, %c3_242, %c0_243, %c0_244] : memref<2x4x2x128xf32, #tpu.memory_space<vmem>>, vector<2x1x2x128xf32>
    %529 = vector.shape_cast %528 : vector<2x1x2x128xf32> to vector<2x2x128xf32>
    %530 = vector.broadcast %0 : f32 to vector<2x2x128xf32>
    %531 = arith.mulf %530, %523 : vector<2x2x128xf32>
    %532 = vector.broadcast %32 : f32 to vector<2x2x128xf32>
    %533 = arith.addf %532, %531 : vector<2x2x128xf32>
    %534 = vector.broadcast %1 : f32 to vector<2x2x128xf32>
    %535 = arith.mulf %534, %525 : vector<2x2x128xf32>
    %536 = arith.addf %533, %535 : vector<2x2x128xf32>
    %537 = vector.broadcast %2 : f32 to vector<2x2x128xf32>
    %538 = arith.mulf %537, %527 : vector<2x2x128xf32>
    %539 = arith.addf %536, %538 : vector<2x2x128xf32>
    %540 = vector.broadcast %3 : f32 to vector<2x2x128xf32>
    %541 = arith.mulf %540, %529 : vector<2x2x128xf32>
    %542 = arith.addf %539, %541 : vector<2x2x128xf32>
    %cst_245 = arith.constant 0.000000e+00 : f32
    %543 = vector.broadcast %cst_245 : f32 to vector<2x2x128xf32>
    %544 = arith.maximumf %542, %543 : vector<2x2x128xf32>
    %545 = vector.broadcast %40 : f32 to vector<2x2x128xf32>
    %546 = arith.mulf %545, %544 : vector<2x2x128xf32>
    %547 = vector.broadcast %48 : f32 to vector<2x2x128xf32>
    %548 = arith.mulf %547, %544 : vector<2x2x128xf32>
    %549 = vector.broadcast %4 : f32 to vector<2x2x128xf32>
    %550 = arith.mulf %549, %523 : vector<2x2x128xf32>
    %551 = vector.broadcast %33 : f32 to vector<2x2x128xf32>
    %552 = arith.addf %551, %550 : vector<2x2x128xf32>
    %553 = vector.broadcast %5 : f32 to vector<2x2x128xf32>
    %554 = arith.mulf %553, %525 : vector<2x2x128xf32>
    %555 = arith.addf %552, %554 : vector<2x2x128xf32>
    %556 = vector.broadcast %6 : f32 to vector<2x2x128xf32>
    %557 = arith.mulf %556, %527 : vector<2x2x128xf32>
    %558 = arith.addf %555, %557 : vector<2x2x128xf32>
    %559 = vector.broadcast %7 : f32 to vector<2x2x128xf32>
    %560 = arith.mulf %559, %529 : vector<2x2x128xf32>
    %561 = arith.addf %558, %560 : vector<2x2x128xf32>
    %cst_246 = arith.constant 0.000000e+00 : f32
    %562 = vector.broadcast %cst_246 : f32 to vector<2x2x128xf32>
    %563 = arith.maximumf %561, %562 : vector<2x2x128xf32>
    %564 = vector.broadcast %41 : f32 to vector<2x2x128xf32>
    %565 = arith.mulf %564, %563 : vector<2x2x128xf32>
    %566 = arith.addf %546, %565 : vector<2x2x128xf32>
    %567 = vector.broadcast %49 : f32 to vector<2x2x128xf32>
    %568 = arith.mulf %567, %563 : vector<2x2x128xf32>
    %569 = arith.addf %548, %568 : vector<2x2x128xf32>
    %570 = vector.broadcast %8 : f32 to vector<2x2x128xf32>
    %571 = arith.mulf %570, %523 : vector<2x2x128xf32>
    %572 = vector.broadcast %34 : f32 to vector<2x2x128xf32>
    %573 = arith.addf %572, %571 : vector<2x2x128xf32>
    %574 = vector.broadcast %9 : f32 to vector<2x2x128xf32>
    %575 = arith.mulf %574, %525 : vector<2x2x128xf32>
    %576 = arith.addf %573, %575 : vector<2x2x128xf32>
    %577 = vector.broadcast %10 : f32 to vector<2x2x128xf32>
    %578 = arith.mulf %577, %527 : vector<2x2x128xf32>
    %579 = arith.addf %576, %578 : vector<2x2x128xf32>
    %580 = vector.broadcast %11 : f32 to vector<2x2x128xf32>
    %581 = arith.mulf %580, %529 : vector<2x2x128xf32>
    %582 = arith.addf %579, %581 : vector<2x2x128xf32>
    %cst_247 = arith.constant 0.000000e+00 : f32
    %583 = vector.broadcast %cst_247 : f32 to vector<2x2x128xf32>
    %584 = arith.maximumf %582, %583 : vector<2x2x128xf32>
    %585 = vector.broadcast %42 : f32 to vector<2x2x128xf32>
    %586 = arith.mulf %585, %584 : vector<2x2x128xf32>
    %587 = arith.addf %566, %586 : vector<2x2x128xf32>
    %588 = vector.broadcast %50 : f32 to vector<2x2x128xf32>
    %589 = arith.mulf %588, %584 : vector<2x2x128xf32>
    %590 = arith.addf %569, %589 : vector<2x2x128xf32>
    %591 = vector.broadcast %12 : f32 to vector<2x2x128xf32>
    %592 = arith.mulf %591, %523 : vector<2x2x128xf32>
    %593 = vector.broadcast %35 : f32 to vector<2x2x128xf32>
    %594 = arith.addf %593, %592 : vector<2x2x128xf32>
    %595 = vector.broadcast %13 : f32 to vector<2x2x128xf32>
    %596 = arith.mulf %595, %525 : vector<2x2x128xf32>
    %597 = arith.addf %594, %596 : vector<2x2x128xf32>
    %598 = vector.broadcast %14 : f32 to vector<2x2x128xf32>
    %599 = arith.mulf %598, %527 : vector<2x2x128xf32>
    %600 = arith.addf %597, %599 : vector<2x2x128xf32>
    %601 = vector.broadcast %15 : f32 to vector<2x2x128xf32>
    %602 = arith.mulf %601, %529 : vector<2x2x128xf32>
    %603 = arith.addf %600, %602 : vector<2x2x128xf32>
    %cst_248 = arith.constant 0.000000e+00 : f32
    %604 = vector.broadcast %cst_248 : f32 to vector<2x2x128xf32>
    %605 = arith.maximumf %603, %604 : vector<2x2x128xf32>
    %606 = vector.broadcast %43 : f32 to vector<2x2x128xf32>
    %607 = arith.mulf %606, %605 : vector<2x2x128xf32>
    %608 = arith.addf %587, %607 : vector<2x2x128xf32>
    %609 = vector.broadcast %51 : f32 to vector<2x2x128xf32>
    %610 = arith.mulf %609, %605 : vector<2x2x128xf32>
    %611 = arith.addf %590, %610 : vector<2x2x128xf32>
    %612 = vector.broadcast %16 : f32 to vector<2x2x128xf32>
    %613 = arith.mulf %612, %523 : vector<2x2x128xf32>
    %614 = vector.broadcast %36 : f32 to vector<2x2x128xf32>
    %615 = arith.addf %614, %613 : vector<2x2x128xf32>
    %616 = vector.broadcast %17 : f32 to vector<2x2x128xf32>
    %617 = arith.mulf %616, %525 : vector<2x2x128xf32>
    %618 = arith.addf %615, %617 : vector<2x2x128xf32>
    %619 = vector.broadcast %18 : f32 to vector<2x2x128xf32>
    %620 = arith.mulf %619, %527 : vector<2x2x128xf32>
    %621 = arith.addf %618, %620 : vector<2x2x128xf32>
    %622 = vector.broadcast %19 : f32 to vector<2x2x128xf32>
    %623 = arith.mulf %622, %529 : vector<2x2x128xf32>
    %624 = arith.addf %621, %623 : vector<2x2x128xf32>
    %cst_249 = arith.constant 0.000000e+00 : f32
    %625 = vector.broadcast %cst_249 : f32 to vector<2x2x128xf32>
    %626 = arith.maximumf %624, %625 : vector<2x2x128xf32>
    %627 = vector.broadcast %44 : f32 to vector<2x2x128xf32>
    %628 = arith.mulf %627, %626 : vector<2x2x128xf32>
    %629 = arith.addf %608, %628 : vector<2x2x128xf32>
    %630 = vector.broadcast %52 : f32 to vector<2x2x128xf32>
    %631 = arith.mulf %630, %626 : vector<2x2x128xf32>
    %632 = arith.addf %611, %631 : vector<2x2x128xf32>
    %633 = vector.broadcast %20 : f32 to vector<2x2x128xf32>
    %634 = arith.mulf %633, %523 : vector<2x2x128xf32>
    %635 = vector.broadcast %37 : f32 to vector<2x2x128xf32>
    %636 = arith.addf %635, %634 : vector<2x2x128xf32>
    %637 = vector.broadcast %21 : f32 to vector<2x2x128xf32>
    %638 = arith.mulf %637, %525 : vector<2x2x128xf32>
    %639 = arith.addf %636, %638 : vector<2x2x128xf32>
    %640 = vector.broadcast %22 : f32 to vector<2x2x128xf32>
    %641 = arith.mulf %640, %527 : vector<2x2x128xf32>
    %642 = arith.addf %639, %641 : vector<2x2x128xf32>
    %643 = vector.broadcast %23 : f32 to vector<2x2x128xf32>
    %644 = arith.mulf %643, %529 : vector<2x2x128xf32>
    %645 = arith.addf %642, %644 : vector<2x2x128xf32>
    %cst_250 = arith.constant 0.000000e+00 : f32
    %646 = vector.broadcast %cst_250 : f32 to vector<2x2x128xf32>
    %647 = arith.maximumf %645, %646 : vector<2x2x128xf32>
    %648 = vector.broadcast %45 : f32 to vector<2x2x128xf32>
    %649 = arith.mulf %648, %647 : vector<2x2x128xf32>
    %650 = arith.addf %629, %649 : vector<2x2x128xf32>
    %651 = vector.broadcast %53 : f32 to vector<2x2x128xf32>
    %652 = arith.mulf %651, %647 : vector<2x2x128xf32>
    %653 = arith.addf %632, %652 : vector<2x2x128xf32>
    %654 = vector.broadcast %24 : f32 to vector<2x2x128xf32>
    %655 = arith.mulf %654, %523 : vector<2x2x128xf32>
    %656 = vector.broadcast %38 : f32 to vector<2x2x128xf32>
    %657 = arith.addf %656, %655 : vector<2x2x128xf32>
    %658 = vector.broadcast %25 : f32 to vector<2x2x128xf32>
    %659 = arith.mulf %658, %525 : vector<2x2x128xf32>
    %660 = arith.addf %657, %659 : vector<2x2x128xf32>
    %661 = vector.broadcast %26 : f32 to vector<2x2x128xf32>
    %662 = arith.mulf %661, %527 : vector<2x2x128xf32>
    %663 = arith.addf %660, %662 : vector<2x2x128xf32>
    %664 = vector.broadcast %27 : f32 to vector<2x2x128xf32>
    %665 = arith.mulf %664, %529 : vector<2x2x128xf32>
    %666 = arith.addf %663, %665 : vector<2x2x128xf32>
    %cst_251 = arith.constant 0.000000e+00 : f32
    %667 = vector.broadcast %cst_251 : f32 to vector<2x2x128xf32>
    %668 = arith.maximumf %666, %667 : vector<2x2x128xf32>
    %669 = vector.broadcast %46 : f32 to vector<2x2x128xf32>
    %670 = arith.mulf %669, %668 : vector<2x2x128xf32>
    %671 = arith.addf %650, %670 : vector<2x2x128xf32>
    %672 = vector.broadcast %54 : f32 to vector<2x2x128xf32>
    %673 = arith.mulf %672, %668 : vector<2x2x128xf32>
    %674 = arith.addf %653, %673 : vector<2x2x128xf32>
    %675 = vector.broadcast %28 : f32 to vector<2x2x128xf32>
    %676 = arith.mulf %675, %523 : vector<2x2x128xf32>
    %677 = vector.broadcast %39 : f32 to vector<2x2x128xf32>
    %678 = arith.addf %677, %676 : vector<2x2x128xf32>
    %679 = vector.broadcast %29 : f32 to vector<2x2x128xf32>
    %680 = arith.mulf %679, %525 : vector<2x2x128xf32>
    %681 = arith.addf %678, %680 : vector<2x2x128xf32>
    %682 = vector.broadcast %30 : f32 to vector<2x2x128xf32>
    %683 = arith.mulf %682, %527 : vector<2x2x128xf32>
    %684 = arith.addf %681, %683 : vector<2x2x128xf32>
    %685 = vector.broadcast %31 : f32 to vector<2x2x128xf32>
    %686 = arith.mulf %685, %529 : vector<2x2x128xf32>
    %687 = arith.addf %684, %686 : vector<2x2x128xf32>
    %cst_252 = arith.constant 0.000000e+00 : f32
    %688 = vector.broadcast %cst_252 : f32 to vector<2x2x128xf32>
    %689 = arith.maximumf %687, %688 : vector<2x2x128xf32>
    %690 = vector.broadcast %47 : f32 to vector<2x2x128xf32>
    %691 = arith.mulf %690, %689 : vector<2x2x128xf32>
    %692 = arith.addf %671, %691 : vector<2x2x128xf32>
    %693 = vector.broadcast %55 : f32 to vector<2x2x128xf32>
    %694 = arith.mulf %693, %689 : vector<2x2x128xf32>
    %695 = arith.addf %674, %694 : vector<2x2x128xf32>
    %696 = vector.broadcast %56 : f32 to vector<2x2x128xf32>
    %697 = arith.addf %692, %696 : vector<2x2x128xf32>
    %698 = arith.negf %697 : vector<2x2x128xf32>
    %699 = math.exp %698 : vector<2x2x128xf32>
    %cst_253 = arith.constant 1.000000e+00 : f32
    %700 = vector.broadcast %cst_253 : f32 to vector<2x2x128xf32>
    %701 = arith.addf %700, %699 : vector<2x2x128xf32>
    %702 = arith.divf %700, %701 : vector<2x2x128xf32>
    %703 = vector.broadcast %57 : f32 to vector<2x2x128xf32>
    %704 = arith.addf %695, %703 : vector<2x2x128xf32>
    %705 = arith.negf %704 : vector<2x2x128xf32>
    %706 = math.exp %705 : vector<2x2x128xf32>
    %cst_254 = arith.constant 1.000000e+00 : f32
    %707 = vector.broadcast %cst_254 : f32 to vector<2x2x128xf32>
    %708 = arith.addf %707, %706 : vector<2x2x128xf32>
    %709 = arith.divf %707, %708 : vector<2x2x128xf32>
    %cst_255 = arith.constant 1.000000e+00 : f32
    %710 = vector.broadcast %cst_255 : f32 to vector<2x2x128xf32>
    %711 = arith.subf %710, %709 : vector<2x2x128xf32>
    %cst_256 = arith.constant 0.000000e+00 : f32
    %712 = vector.broadcast %cst_256 : f32 to vector<2x2x128xf32>
    %713 = arith.subf %712, %709 : vector<2x2x128xf32>
    %cst_257 = arith.constant 1.000000e-30 : f32
    %714 = vector.broadcast %cst_257 : f32 to vector<2x2x128xf32>
    %715 = arith.addf %709, %714 : vector<2x2x128xf32>
    %716 = math.log %715 : vector<2x2x128xf32>
    %cst_258 = arith.constant 2.000000e+00 : f32
    %717 = math.log %cst_258 : f32
    %718 = vector.broadcast %717 : f32 to vector<2x2x128xf32>
    %719 = arith.divf %716, %718 : vector<2x2x128xf32>
    %720 = arith.mulf %713, %719 : vector<2x2x128xf32>
    %cst_259 = arith.constant 0.000000e+00 : f32
    %721 = vector.broadcast %cst_259 : f32 to vector<2x2x128xf32>
    %722 = arith.subf %721, %711 : vector<2x2x128xf32>
    %cst_260 = arith.constant 1.000000e-30 : f32
    %723 = vector.broadcast %cst_260 : f32 to vector<2x2x128xf32>
    %724 = arith.addf %711, %723 : vector<2x2x128xf32>
    %725 = math.log %724 : vector<2x2x128xf32>
    %cst_261 = arith.constant 2.000000e+00 : f32
    %726 = math.log %cst_261 : f32
    %727 = vector.broadcast %726 : f32 to vector<2x2x128xf32>
    %728 = arith.divf %725, %727 : vector<2x2x128xf32>
    %729 = arith.mulf %722, %728 : vector<2x2x128xf32>
    %730 = arith.addf %720, %729 : vector<2x2x128xf32>
    %c0_262 = arith.constant 0 : index
    %c0_263 = arith.constant 0 : index
    %c0_264 = arith.constant 0 : index
    %731 = vector.load %arg16[%c0_262, %c0_263, %c0_264] : memref<2x2x128xf32, #tpu.memory_space<vmem>>, vector<2x2x128xf32>
    tpu.vector_store %arg16[%c0_262, %c0_263, %c0_264], %730 {strides = array<i32>} : memref<2x2x128xf32, #tpu.memory_space<vmem>>, vector<2x2x128xf32>,
    %732 = vector.broadcast %58 : f32 to vector<2x2x128xf32>
    %733 = arith.mulf %732, %720 : vector<2x2x128xf32>
    %734 = vector.broadcast %74 : f32 to vector<2x2x128xf32>
    %735 = arith.addf %734, %733 : vector<2x2x128xf32>
    %736 = vector.broadcast %59 : f32 to vector<2x2x128xf32>
    %737 = arith.mulf %736, %729 : vector<2x2x128xf32>
    %738 = arith.addf %735, %737 : vector<2x2x128xf32>
    %cst_265 = arith.constant 2.000000e-01 : f32
    %739 = vector.broadcast %cst_265 : f32 to vector<2x2x128xf32>
    %740 = arith.mulf %739, %738 : vector<2x2x128xf32>
    %741 = arith.maximumf %738, %740 : vector<2x2x128xf32>
    %742 = vector.broadcast %91 : f32 to vector<2x2x128xf32>
    %743 = arith.mulf %742, %702 : vector<2x2x128xf32>
    %744 = vector.broadcast %99 : f32 to vector<2x2x128xf32>
    %745 = arith.addf %744, %743 : vector<2x2x128xf32>
    %cst_266 = arith.constant 2.000000e-01 : f32
    %746 = vector.broadcast %cst_266 : f32 to vector<2x2x128xf32>
    %747 = arith.mulf %746, %745 : vector<2x2x128xf32>
    %748 = arith.maximumf %745, %747 : vector<2x2x128xf32>
    %749 = vector.broadcast %82 : f32 to vector<2x2x128xf32>
    %750 = arith.mulf %749, %741 : vector<2x2x128xf32>
    %751 = vector.broadcast %107 : f32 to vector<2x2x128xf32>
    %752 = arith.mulf %751, %748 : vector<2x2x128xf32>
    %753 = vector.broadcast %60 : f32 to vector<2x2x128xf32>
    %754 = arith.mulf %753, %720 : vector<2x2x128xf32>
    %755 = vector.broadcast %75 : f32 to vector<2x2x128xf32>
    %756 = arith.addf %755, %754 : vector<2x2x128xf32>
    %757 = vector.broadcast %61 : f32 to vector<2x2x128xf32>
    %758 = arith.mulf %757, %729 : vector<2x2x128xf32>
    %759 = arith.addf %756, %758 : vector<2x2x128xf32>
    %cst_267 = arith.constant 2.000000e-01 : f32
    %760 = vector.broadcast %cst_267 : f32 to vector<2x2x128xf32>
    %761 = arith.mulf %760, %759 : vector<2x2x128xf32>
    %762 = arith.maximumf %759, %761 : vector<2x2x128xf32>
    %763 = vector.broadcast %92 : f32 to vector<2x2x128xf32>
    %764 = arith.mulf %763, %702 : vector<2x2x128xf32>
    %765 = vector.broadcast %100 : f32 to vector<2x2x128xf32>
    %766 = arith.addf %765, %764 : vector<2x2x128xf32>
    %cst_268 = arith.constant 2.000000e-01 : f32
    %767 = vector.broadcast %cst_268 : f32 to vector<2x2x128xf32>
    %768 = arith.mulf %767, %766 : vector<2x2x128xf32>
    %769 = arith.maximumf %766, %768 : vector<2x2x128xf32>
    %770 = vector.broadcast %83 : f32 to vector<2x2x128xf32>
    %771 = arith.mulf %770, %762 : vector<2x2x128xf32>
    %772 = arith.addf %750, %771 : vector<2x2x128xf32>
    %773 = vector.broadcast %108 : f32 to vector<2x2x128xf32>
    %774 = arith.mulf %773, %769 : vector<2x2x128xf32>
    %775 = arith.addf %752, %774 : vector<2x2x128xf32>
    %776 = vector.broadcast %62 : f32 to vector<2x2x128xf32>
    %777 = arith.mulf %776, %720 : vector<2x2x128xf32>
    %778 = vector.broadcast %76 : f32 to vector<2x2x128xf32>
    %779 = arith.addf %778, %777 : vector<2x2x128xf32>
    %780 = vector.broadcast %63 : f32 to vector<2x2x128xf32>
    %781 = arith.mulf %780, %729 : vector<2x2x128xf32>
    %782 = arith.addf %779, %781 : vector<2x2x128xf32>
    %cst_269 = arith.constant 2.000000e-01 : f32
    %783 = vector.broadcast %cst_269 : f32 to vector<2x2x128xf32>
    %784 = arith.mulf %783, %782 : vector<2x2x128xf32>
    %785 = arith.maximumf %782, %784 : vector<2x2x128xf32>
    %786 = vector.broadcast %93 : f32 to vector<2x2x128xf32>
    %787 = arith.mulf %786, %702 : vector<2x2x128xf32>
    %788 = vector.broadcast %101 : f32 to vector<2x2x128xf32>
    %789 = arith.addf %788, %787 : vector<2x2x128xf32>
    %cst_270 = arith.constant 2.000000e-01 : f32
    %790 = vector.broadcast %cst_270 : f32 to vector<2x2x128xf32>
    %791 = arith.mulf %790, %789 : vector<2x2x128xf32>
    %792 = arith.maximumf %789, %791 : vector<2x2x128xf32>
    %793 = vector.broadcast %84 : f32 to vector<2x2x128xf32>
    %794 = arith.mulf %793, %785 : vector<2x2x128xf32>
    %795 = arith.addf %772, %794 : vector<2x2x128xf32>
    %796 = vector.broadcast %109 : f32 to vector<2x2x128xf32>
    %797 = arith.mulf %796, %792 : vector<2x2x128xf32>
    %798 = arith.addf %775, %797 : vector<2x2x128xf32>
    %799 = vector.broadcast %64 : f32 to vector<2x2x128xf32>
    %800 = arith.mulf %799, %720 : vector<2x2x128xf32>
    %801 = vector.broadcast %77 : f32 to vector<2x2x128xf32>
    %802 = arith.addf %801, %800 : vector<2x2x128xf32>
    %803 = vector.broadcast %65 : f32 to vector<2x2x128xf32>
    %804 = arith.mulf %803, %729 : vector<2x2x128xf32>
    %805 = arith.addf %802, %804 : vector<2x2x128xf32>
    %cst_271 = arith.constant 2.000000e-01 : f32
    %806 = vector.broadcast %cst_271 : f32 to vector<2x2x128xf32>
    %807 = arith.mulf %806, %805 : vector<2x2x128xf32>
    %808 = arith.maximumf %805, %807 : vector<2x2x128xf32>
    %809 = vector.broadcast %94 : f32 to vector<2x2x128xf32>
    %810 = arith.mulf %809, %702 : vector<2x2x128xf32>
    %811 = vector.broadcast %102 : f32 to vector<2x2x128xf32>
    %812 = arith.addf %811, %810 : vector<2x2x128xf32>
    %cst_272 = arith.constant 2.000000e-01 : f32
    %813 = vector.broadcast %cst_272 : f32 to vector<2x2x128xf32>
    %814 = arith.mulf %813, %812 : vector<2x2x128xf32>
    %815 = arith.maximumf %812, %814 : vector<2x2x128xf32>
    %816 = vector.broadcast %85 : f32 to vector<2x2x128xf32>
    %817 = arith.mulf %816, %808 : vector<2x2x128xf32>
    %818 = arith.addf %795, %817 : vector<2x2x128xf32>
    %819 = vector.broadcast %110 : f32 to vector<2x2x128xf32>
    %820 = arith.mulf %819, %815 : vector<2x2x128xf32>
    %821 = arith.addf %798, %820 : vector<2x2x128xf32>
    %822 = vector.broadcast %66 : f32 to vector<2x2x128xf32>
    %823 = arith.mulf %822, %720 : vector<2x2x128xf32>
    %824 = vector.broadcast %78 : f32 to vector<2x2x128xf32>
    %825 = arith.addf %824, %823 : vector<2x2x128xf32>
    %826 = vector.broadcast %67 : f32 to vector<2x2x128xf32>
    %827 = arith.mulf %826, %729 : vector<2x2x128xf32>
    %828 = arith.addf %825, %827 : vector<2x2x128xf32>
    %cst_273 = arith.constant 2.000000e-01 : f32
    %829 = vector.broadcast %cst_273 : f32 to vector<2x2x128xf32>
    %830 = arith.mulf %829, %828 : vector<2x2x128xf32>
    %831 = arith.maximumf %828, %830 : vector<2x2x128xf32>
    %832 = vector.broadcast %95 : f32 to vector<2x2x128xf32>
    %833 = arith.mulf %832, %702 : vector<2x2x128xf32>
    %834 = vector.broadcast %103 : f32 to vector<2x2x128xf32>
    %835 = arith.addf %834, %833 : vector<2x2x128xf32>
    %cst_274 = arith.constant 2.000000e-01 : f32
    %836 = vector.broadcast %cst_274 : f32 to vector<2x2x128xf32>
    %837 = arith.mulf %836, %835 : vector<2x2x128xf32>
    %838 = arith.maximumf %835, %837 : vector<2x2x128xf32>
    %839 = vector.broadcast %86 : f32 to vector<2x2x128xf32>
    %840 = arith.mulf %839, %831 : vector<2x2x128xf32>
    %841 = arith.addf %818, %840 : vector<2x2x128xf32>
    %842 = vector.broadcast %111 : f32 to vector<2x2x128xf32>
    %843 = arith.mulf %842, %838 : vector<2x2x128xf32>
    %844 = arith.addf %821, %843 : vector<2x2x128xf32>
    %845 = vector.broadcast %68 : f32 to vector<2x2x128xf32>
    %846 = arith.mulf %845, %720 : vector<2x2x128xf32>
    %847 = vector.broadcast %79 : f32 to vector<2x2x128xf32>
    %848 = arith.addf %847, %846 : vector<2x2x128xf32>
    %849 = vector.broadcast %69 : f32 to vector<2x2x128xf32>
    %850 = arith.mulf %849, %729 : vector<2x2x128xf32>
    %851 = arith.addf %848, %850 : vector<2x2x128xf32>
    %cst_275 = arith.constant 2.000000e-01 : f32
    %852 = vector.broadcast %cst_275 : f32 to vector<2x2x128xf32>
    %853 = arith.mulf %852, %851 : vector<2x2x128xf32>
    %854 = arith.maximumf %851, %853 : vector<2x2x128xf32>
    %855 = vector.broadcast %96 : f32 to vector<2x2x128xf32>
    %856 = arith.mulf %855, %702 : vector<2x2x128xf32>
    %857 = vector.broadcast %104 : f32 to vector<2x2x128xf32>
    %858 = arith.addf %857, %856 : vector<2x2x128xf32>
    %cst_276 = arith.constant 2.000000e-01 : f32
    %859 = vector.broadcast %cst_276 : f32 to vector<2x2x128xf32>
    %860 = arith.mulf %859, %858 : vector<2x2x128xf32>
    %861 = arith.maximumf %858, %860 : vector<2x2x128xf32>
    %862 = vector.broadcast %87 : f32 to vector<2x2x128xf32>
    %863 = arith.mulf %862, %854 : vector<2x2x128xf32>
    %864 = arith.addf %841, %863 : vector<2x2x128xf32>
    %865 = vector.broadcast %112 : f32 to vector<2x2x128xf32>
    %866 = arith.mulf %865, %861 : vector<2x2x128xf32>
    %867 = arith.addf %844, %866 : vector<2x2x128xf32>
    %868 = vector.broadcast %70 : f32 to vector<2x2x128xf32>
    %869 = arith.mulf %868, %720 : vector<2x2x128xf32>
    %870 = vector.broadcast %80 : f32 to vector<2x2x128xf32>
    %871 = arith.addf %870, %869 : vector<2x2x128xf32>
    %872 = vector.broadcast %71 : f32 to vector<2x2x128xf32>
    %873 = arith.mulf %872, %729 : vector<2x2x128xf32>
    %874 = arith.addf %871, %873 : vector<2x2x128xf32>
    %cst_277 = arith.constant 2.000000e-01 : f32
    %875 = vector.broadcast %cst_277 : f32 to vector<2x2x128xf32>
    %876 = arith.mulf %875, %874 : vector<2x2x128xf32>
    %877 = arith.maximumf %874, %876 : vector<2x2x128xf32>
    %878 = vector.broadcast %97 : f32 to vector<2x2x128xf32>
    %879 = arith.mulf %878, %702 : vector<2x2x128xf32>
    %880 = vector.broadcast %105 : f32 to vector<2x2x128xf32>
    %881 = arith.addf %880, %879 : vector<2x2x128xf32>
    %cst_278 = arith.constant 2.000000e-01 : f32
    %882 = vector.broadcast %cst_278 : f32 to vector<2x2x128xf32>
    %883 = arith.mulf %882, %881 : vector<2x2x128xf32>
    %884 = arith.maximumf %881, %883 : vector<2x2x128xf32>
    %885 = vector.broadcast %88 : f32 to vector<2x2x128xf32>
    %886 = arith.mulf %885, %877 : vector<2x2x128xf32>
    %887 = arith.addf %864, %886 : vector<2x2x128xf32>
    %888 = vector.broadcast %113 : f32 to vector<2x2x128xf32>
    %889 = arith.mulf %888, %884 : vector<2x2x128xf32>
    %890 = arith.addf %867, %889 : vector<2x2x128xf32>
    %891 = vector.broadcast %72 : f32 to vector<2x2x128xf32>
    %892 = arith.mulf %891, %720 : vector<2x2x128xf32>
    %893 = vector.broadcast %81 : f32 to vector<2x2x128xf32>
    %894 = arith.addf %893, %892 : vector<2x2x128xf32>
    %895 = vector.broadcast %73 : f32 to vector<2x2x128xf32>
    %896 = arith.mulf %895, %729 : vector<2x2x128xf32>
    %897 = arith.addf %894, %896 : vector<2x2x128xf32>
    %cst_279 = arith.constant 2.000000e-01 : f32
    %898 = vector.broadcast %cst_279 : f32 to vector<2x2x128xf32>
    %899 = arith.mulf %898, %897 : vector<2x2x128xf32>
    %900 = arith.maximumf %897, %899 : vector<2x2x128xf32>
    %901 = vector.broadcast %98 : f32 to vector<2x2x128xf32>
    %902 = arith.mulf %901, %702 : vector<2x2x128xf32>
    %903 = vector.broadcast %106 : f32 to vector<2x2x128xf32>
    %904 = arith.addf %903, %902 : vector<2x2x128xf32>
    %cst_280 = arith.constant 2.000000e-01 : f32
    %905 = vector.broadcast %cst_280 : f32 to vector<2x2x128xf32>
    %906 = arith.mulf %905, %904 : vector<2x2x128xf32>
    %907 = arith.maximumf %904, %906 : vector<2x2x128xf32>
    %908 = vector.broadcast %89 : f32 to vector<2x2x128xf32>
    %909 = arith.mulf %908, %900 : vector<2x2x128xf32>
    %910 = arith.addf %887, %909 : vector<2x2x128xf32>
    %911 = vector.broadcast %114 : f32 to vector<2x2x128xf32>
    %912 = arith.mulf %911, %907 : vector<2x2x128xf32>
    %913 = arith.addf %890, %912 : vector<2x2x128xf32>
    %914 = vector.broadcast %90 : f32 to vector<2x2x128xf32>
    %915 = arith.addf %910, %914 : vector<2x2x128xf32>
    %916 = vector.broadcast %115 : f32 to vector<2x2x128xf32>
    %917 = arith.addf %913, %916 : vector<2x2x128xf32>
    %cst_281 = arith.constant 1.000000e+00 : f32
    %918 = vector.broadcast %cst_281 : f32 to vector<2x2x128xf32>
    %919 = arith.addf %918, %915 : vector<2x2x128xf32>
    %cst_282 = arith.constant 0.000000e+00 : f32
    %920 = vector.broadcast %cst_282 : f32 to vector<2x2x128xf32>
    %921 = arith.maximumf %919, %920 : vector<2x2x128xf32>
    %cst_283 = arith.constant dense<0.000000e+00> : vector<2x128xf32>
    %922 = vector.multi_reduction <add>, %921, %cst_283 [1] : vector<2x2x128xf32> to vector<2x128xf32>
    %cst_284 = arith.constant 1.000000e+00 : f32
    %923 = vector.broadcast %cst_284 : f32 to vector<2x2x128xf32>
    %924 = arith.addf %923, %917 : vector<2x2x128xf32>
    %cst_285 = arith.constant 0.000000e+00 : f32
    %925 = vector.broadcast %cst_285 : f32 to vector<2x2x128xf32>
    %926 = arith.maximumf %924, %925 : vector<2x2x128xf32>
    %cst_286 = arith.constant dense<0.000000e+00> : vector<2x128xf32>
    %927 = vector.multi_reduction <add>, %926, %cst_286 [1] : vector<2x2x128xf32> to vector<2x128xf32>
    %cst_287 = arith.constant dense<0.000000e+00> : vector<2x128xf32>
    %928 = vector.multi_reduction <add>, %915, %cst_287 [1] : vector<2x2x128xf32> to vector<2x128xf32>
    %cst_288 = arith.constant 0.000000e+00 : f32
    %929 = vector.broadcast %cst_288 : f32 to vector<2x128xf32>
    %930 = arith.subf %929, %928 : vector<2x128xf32>
    %cst_289 = arith.constant dense<0.000000e+00> : vector<2x128xf32>
    %931 = vector.multi_reduction <add>, %917, %cst_289 [1] : vector<2x2x128xf32> to vector<2x128xf32>
    %cst_290 = arith.constant 0.000000e+00 : f32
    %932 = vector.broadcast %cst_290 : f32 to vector<2x128xf32>
    %933 = arith.subf %932, %931 : vector<2x128xf32>
    %934 = arith.addf %516, %922 : vector<2x128xf32>
    %935 = arith.addf %521, %927 : vector<2x128xf32>
    %936 = tpu.concatenate %934, %935, %930, %933 in 0 : vector<2x128xf32>, vector<2x128xf32>, vector<2x128xf32>, vector<2x128xf32> -> vector<8x128xf32>
    %c0_291 = arith.constant 0 : index
    %c0_292 = arith.constant 0 : index
    %c0_293 = arith.constant 0 : index
    %937 = vector.load %arg17[%c0_291, %c0_292, %c0_293] : memref<1x8x128xf32, #tpu.memory_space<vmem>>, vector<1x8x128xf32>
    %938 = vector.shape_cast %937 : vector<1x8x128xf32> to vector<8x128xf32>
    %939 = vector.shape_cast %936 : vector<8x128xf32> to vector<1x8x128xf32>
    tpu.vector_store %arg17[%c0_291, %c0_292, %c0_293], %939 {strides = array<i32>} : memref<1x8x128xf32, #tpu.memory_space<vmem>>, vector<1x8x128xf32>,
    return
  }
  func.func @transform_0(%arg0: i32) -> (i32, i32) {
    %c0_i32 = arith.constant 0 : i32
    %c0_i32_0 = arith.constant 0 : i32
    %c0_i32_1 = arith.constant 0 : i32
    return %c0_i32, %c0_i32_0 : i32, i32
  }
  func.func @transform_1(%arg0: i32) -> i32 {
    %c0_i32 = arith.constant 0 : i32
    %c0_i32_0 = arith.constant 0 : i32
    return %c0_i32 : i32
  }
  func.func @transform_2(%arg0: i32) -> (i32, i32) {
    %c0_i32 = arith.constant 0 : i32
    %c0_i32_0 = arith.constant 0 : i32
    %c0_i32_1 = arith.constant 0 : i32
    return %c0_i32, %c0_i32_0 : i32, i32
  }
  func.func @transform_3(%arg0: i32) -> i32 {
    %c0_i32 = arith.constant 0 : i32
    %c0_i32_0 = arith.constant 0 : i32
    return %c0_i32 : i32
  }
  func.func @transform_4(%arg0: i32) -> (i32, i32) {
    %c0_i32 = arith.constant 0 : i32
    %c0_i32_0 = arith.constant 0 : i32
    %c0_i32_1 = arith.constant 0 : i32
    return %c0_i32, %c0_i32_0 : i32, i32
  }
  func.func @transform_5(%arg0: i32) -> i32 {
    %c0_i32 = arith.constant 0 : i32
    %c0_i32_0 = arith.constant 0 : i32
    return %c0_i32 : i32
  }
  func.func @transform_6(%arg0: i32) -> i32 {
    %c0_i32 = arith.constant 0 : i32
    %c0_i32_0 = arith.constant 0 : i32
    return %c0_i32 : i32
  }
  func.func @transform_7(%arg0: i32) -> i32 {
    %c0_i32 = arith.constant 0 : i32
    %c0_i32_0 = arith.constant 0 : i32
    return %c0_i32 : i32
  }
  func.func @transform_8(%arg0: i32) -> i32 {
    %c0_i32 = arith.constant 0 : i32
    %c0_i32_0 = arith.constant 0 : i32
    return %c0_i32 : i32
  }
  func.func @transform_9(%arg0: i32) -> i32 {
    %c0_i32 = arith.constant 0 : i32
    %c0_i32_0 = arith.constant 0 : i32
    return %c0_i32 : i32
  }
  func.func @transform_10(%arg0: i32) -> i32 {
    %c0_i32 = arith.constant 0 : i32
    %c0_i32_0 = arith.constant 0 : i32
    return %c0_i32 : i32
  }
  func.func @transform_11(%arg0: i32) -> i32 {
    %c0_i32 = arith.constant 0 : i32
    %c0_i32_0 = arith.constant 0 : i32
    return %c0_i32 : i32
  }
  func.func @transform_12(%arg0: i32) -> (i32, i32, i32, i32) {
    %c0_i32 = arith.constant 0 : i32
    %c0_i32_0 = arith.constant 0 : i32
    %c0_i32_1 = arith.constant 0 : i32
    %c0_i32_2 = arith.constant 0 : i32
    return %c0_i32, %c0_i32_0, %arg0, %c0_i32_1 : i32, i32, i32, i32
  }
  func.func @transform_13(%arg0: i32) -> (i32, i32, i32, i32) {
    %c0_i32 = arith.constant 0 : i32
    %c0_i32_0 = arith.constant 0 : i32
    %c0_i32_1 = arith.constant 0 : i32
    %c0_i32_2 = arith.constant 0 : i32
    return %c0_i32, %c0_i32_0, %arg0, %c0_i32_1 : i32, i32, i32, i32
  }
  func.func @transform_14(%arg0: i32) -> (i32, i32, i32) {
    %c0_i32 = arith.constant 0 : i32
    %c0_i32_0 = arith.constant 0 : i32
    %c0_i32_1 = arith.constant 0 : i32
    return %c0_i32, %arg0, %c0_i32_0 : i32, i32, i32
  }
  func.func @transform_15(%arg0: i32) -> (i32, i32, i32) {
    %c0_i32 = arith.constant 0 : i32
    %c0_i32_0 = arith.constant 0 : i32
    %c0_i32_1 = arith.constant 0 : i32
    return %c0_i32, %arg0, %c0_i32_0 : i32, i32, i32
  }
  func.func @transform_16(%arg0: i32) -> (i32, i32, i32) {
    %c0_i32 = arith.constant 0 : i32
    %c0_i32_0 = arith.constant 0 : i32
    %c0_i32_1 = arith.constant 0 : i32
    return %arg0, %c0_i32, %c0_i32_0 : i32, i32, i32
  }
}

</mosaic_0001>

<llo_original>
// kernel: segmentation_model_forward.1
$region0: #{segmentation_model_forward.1}
  #allocation0 [shape = 'u32[]', space=smem, size = 0x4, offset = 0x4, fixed_abs, tag = 'smem constant byte address 0x4 - core index']
  #allocation1 [shape = 'u32[72,128]{1,0:T(1,128)}', space=vmem, size = 0x9000, scoped, tag = 'internal scratch']
  #allocation2 [shape = 'f32[1]{0:T(128)S(6)}', space=smem, size = 0x200, scoped, tag = 'scoped memory for segmentation_model_forward.1']
  #allocation3 [shape = 'f32[1]{0:T(128)S(6)}', space=smem, size = 0x200, scoped, tag = 'scoped memory for segmentation_model_forward.1']
  %s0 = inlined_call_operand.vmem [shape: f32[8,4], index: 0, kind: input, shape index: {}]
  %s1 = inlined_call_operand.vmem [shape: f32[8], index: 1, kind: input, shape index: {}]
  %s2 = inlined_call_operand.vmem [shape: f32[2,8], index: 2, kind: input, shape index: {}]
  %s3 = inlined_call_operand.vmem [shape: f32[2], index: 3, kind: input, shape index: {}]
  %s4 = inlined_call_operand.vmem [shape: f32[8,2], index: 4, kind: input, shape index: {}]
  %s5 = inlined_call_operand.vmem [shape: f32[8], index: 5, kind: input, shape index: {}]
  %s6 = inlined_call_operand.vmem [shape: f32[8], index: 6, kind: input, shape index: {}]
  %s7 = inlined_call_operand.<no memory space> [shape: f32[1], index: 7, kind: input, shape index: {}]
  %s8 = inlined_call_operand.vmem [shape: f32[8], index: 8, kind: input, shape index: {}]
  %s9 = inlined_call_operand.vmem [shape: f32[8], index: 9, kind: input, shape index: {}]
  %s10 = inlined_call_operand.vmem [shape: f32[8], index: 10, kind: input, shape index: {}]
  %s11 = inlined_call_operand.<no memory space> [shape: f32[1], index: 11, kind: input, shape index: {}]
  %s12 = inlined_call_operand.vmem [shape: f32[2,4,2,128], index: 12, kind: input, shape index: {}]
  %s13 = inlined_call_operand.vmem [shape: f32[2,4,2,128], index: 13, kind: input, shape index: {}]
  %s14 = inlined_call_operand.vmem [shape: f32[2,2,128], index: 14, kind: output, shape index: {0}]
  %s15 = inlined_call_operand.vmem [shape: f32[2,2,128], index: 15, kind: output, shape index: {1}]
  %s16 = inlined_call_operand.vmem [shape: f32[1,8,128], index: 16, kind: output, shape index: {2}]
  %17 = xla_tuple %s14, %s15, %s16
  %s18 = sld [smem:[#allocation0]]
  $region122: #{segmentation_model_forward.1} parent=0
    _
  %s20 = ssub.s32 1, %s18
  %s21 = scalar_select 0, %s20, %s18
  %22 = sst [smem:[#allocation2]] %s7
  %23 = sst [smem:[#allocation3]] %s11
  $region1: #{segmentation_model_forward.1} parent=0
    #allocation4 [shape = 'u8[4096]{0}', space=smem, size = 0x1000, scoped, tag = 'input window, operand 0, single buffered']
    #allocation5 [shape = 's32[1]{0}', space=sflag, size = 0x4, scoped, tag = 'scoped memory for segmentation_model_forward.1']
    #allocation6 [shape = 'u8[512]{0}', space=smem, size = 0x200, scoped, tag = 'input window, operand 1, single buffered']
    #allocation7 [shape = 's32[1]{0}', space=sflag, size = 0x4, scoped, tag = 'scoped memory for segmentation_model_forward.1']
    #allocation8 [shape = 'u8[1024]{0}', space=smem, size = 0x400, scoped, tag = 'input window, operand 2, single buffered']
    #allocation9 [shape = 'u8[512]{0}', space=smem, size = 0x200, scoped, tag = 'input window, operand 3, single buffered']
    #allocation10 [shape = 's32[1]{0}', space=sflag, size = 0x4, scoped, tag = 'scoped memory for segmentation_model_forward.1']
    #allocation11 [shape = 'u8[4096]{0}', space=smem, size = 0x1000, scoped, tag = 'input window, operand 4, single buffered']
    #allocation12 [shape = 'u8[512]{0}', space=smem, size = 0x200, scoped, tag = 'input window, operand 5, single buffered']
    #allocation13 [shape = 's32[1]{0}', space=sflag, size = 0x4, scoped, tag = 'scoped memory for segmentation_model_forward.1']
    #allocation14 [shape = 'u8[512]{0}', space=smem, size = 0x200, scoped, tag = 'input window, operand 6, single buffered']
    #allocation15 [shape = 'u8[512]{0}', space=smem, size = 0x200, scoped, tag = 'input window, operand 8, single buffered']
    #allocation16 [shape = 's32[1]{0}', space=sflag, size = 0x4, scoped, tag = 'scoped memory for segmentation_model_forward.1']
    #allocation17 [shape = 'u8[512]{0}', space=smem, size = 0x200, scoped, tag = 'input window, operand 9, single buffered']
    #allocation18 [shape = 'u8[512]{0}', space=smem, size = 0x200, scoped, tag = 'input window, operand 10, single buffered']
    #allocation19 [shape = 's32[1]{0}', space=sflag, size = 0x4, scoped, tag = 'scoped memory for segmentation_model_forward.1']
    %24 = vsyncpa [#allocation5], 0
    %25 = vsyncpa [#allocation7], 0
    %26 = vsyncpa [#allocation10], 0
    %27 = vsyncpa [#allocation13], 0
    %28 = vsyncpa [#allocation16], 0
    %29 = vsyncpa [#allocation19], 0
    // Predicated region
    $region2: #{segmentation_model_forward.1} parent=1 // pred_check
      _
    $region3: #{segmentation_model_forward.1} parent=1 // pred_check_branch
      %31 = sbr.rel (0) target = $region5
    $region4: #{segmentation_model_forward.1} parent=1 // pred_region
      %33 = vsyncadd [#allocation5], 0
      %s35 = sshll.u32 %s0, 4
      %s36 = int_to_ptr.vmem [resolvable:$true] %s35
      %38 = dma.vmem_to_smem %s36, 128, [#allocation4], [#allocation5]
    $region5: #{segmentation_model_forward.1} parent=1 // pred_fallthru
      _
    // Predicated region
    $region6: #{segmentation_model_forward.1} parent=1 // pred_check
      _
    $region7: #{segmentation_model_forward.1} parent=1 // pred_check_branch
      %40 = sbr.rel (0) target = $region9
    $region8: #{segmentation_model_forward.1} parent=1 // pred_region
      %42 = vsyncadd [#allocation7], 0
      %s44 = sshll.u32 %s1, 4
      %s45 = int_to_ptr.vmem [resolvable:$true] %s44
      %47 = dma.vmem_to_smem %s45, 16, [#allocation6], [#allocation7]
    $region9: #{segmentation_model_forward.1} parent=1 // pred_fallthru
      _
    // Predicated region
    $region10: #{segmentation_model_forward.1} parent=1 // pred_check
      _
    $region11: #{segmentation_model_forward.1} parent=1 // pred_check_branch
      %49 = sbr.rel (0) target = $region13
    $region12: #{segmentation_model_forward.1} parent=1 // pred_region
      %51 = vsyncadd [#allocation7], 0
      %s53 = sshll.u32 %s2, 4
      %s54 = int_to_ptr.vmem [resolvable:$true] %s53
      %56 = dma.vmem_to_smem %s54, 32, [#allocation8], [#allocation7]
    $region13: #{segmentation_model_forward.1} parent=1 // pred_fallthru
      _
    // Predicated region
    $region14: #{segmentation_model_forward.1} parent=1 // pred_check
      _
    $region15: #{segmentation_model_forward.1} parent=1 // pred_check_branch
      %58 = sbr.rel (0) target = $region17
    $region16: #{segmentation_model_forward.1} parent=1 // pred_region
      %60 = vsyncadd [#allocation10], 0
      %s62 = sshll.u32 %s3, 4
      %s63 = int_to_ptr.vmem [resolvable:$true] %s62
      %65 = dma.vmem_to_smem %s63, 16, [#allocation9], [#allocation10]
    $region17: #{segmentation_model_forward.1} parent=1 // pred_fallthru
      _
    // Predicated region
    $region18: #{segmentation_model_forward.1} parent=1 // pred_check
      _
    $region19: #{segmentation_model_forward.1} parent=1 // pred_check_branch
      %67 = sbr.rel (0) target = $region21
    $region20: #{segmentation_model_forward.1} parent=1 // pred_region
      %69 = vsyncadd [#allocation10], 0
      %s71 = sshll.u32 %s4, 4
      %s72 = int_to_ptr.vmem [resolvable:$true] %s71
      %74 = dma.vmem_to_smem %s72, 128, [#allocation11], [#allocation10]
    $region21: #{segmentation_model_forward.1} parent=1 // pred_fallthru
      _
    // Predicated region
    $region22: #{segmentation_model_forward.1} parent=1 // pred_check
      _
    $region23: #{segmentation_model_forward.1} parent=1 // pred_check_branch
      %76 = sbr.rel (0) target = $region25
    $region24: #{segmentation_model_forward.1} parent=1 // pred_region
      %78 = vsyncadd [#allocation13], 0
      %s80 = sshll.u32 %s5, 4
      %s81 = int_to_ptr.vmem [resolvable:$true] %s80
      %83 = dma.vmem_to_smem %s81, 16, [#allocation12], [#allocation13]
    $region25: #{segmentation_model_forward.1} parent=1 // pred_fallthru
      _
    // Predicated region
    $region26: #{segmentation_model_forward.1} parent=1 // pred_check
      _
    $region27: #{segmentation_model_forward.1} parent=1 // pred_check_branch
      %85 = sbr.rel (0) target = $region29
    $region28: #{segmentation_model_forward.1} parent=1 // pred_region
      %87 = vsyncadd [#allocation13], 0
      %s89 = sshll.u32 %s6, 4
      %s90 = int_to_ptr.vmem [resolvable:$true] %s89
      %92 = dma.vmem_to_smem %s90, 16, [#allocation14], [#allocation13]
    $region29: #{segmentation_model_forward.1} parent=1 // pred_fallthru
      _
    // Predicated region
    $region30: #{segmentation_model_forward.1} parent=1 // pred_check
      _
    $region31: #{segmentation_model_forward.1} parent=1 // pred_check_branch
      %94 = sbr.rel (0) target = $region33
    $region32: #{segmentation_model_forward.1} parent=1 // pred_region
      _
    $region33: #{segmentation_model_forward.1} parent=1 // pred_fallthru
      _
    // Predicated region
    $region34: #{segmentation_model_forward.1} parent=1 // pred_check
      _
    $region35: #{segmentation_model_forward.1} parent=1 // pred_check_branch
      %96 = sbr.rel (0) target = $region37
    $region36: #{segmentation_model_forward.1} parent=1 // pred_region
      %98 = vsyncadd [#allocation16], 0
      %s100 = sshll.u32 %s8, 4
      %s101 = int_to_ptr.vmem [resolvable:$true] %s100
      %103 = dma.vmem_to_smem %s101, 16, [#allocation15], [#allocation16]
    $region37: #{segmentation_model_forward.1} parent=1 // pred_fallthru
      _
    // Predicated region
    $region38: #{segmentation_model_forward.1} parent=1 // pred_check
      _
    $region39: #{segmentation_model_forward.1} parent=1 // pred_check_branch
      %105 = sbr.rel (0) target = $region41
    $region40: #{segmentation_model_forward.1} parent=1 // pred_region
      %107 = vsyncadd [#allocation16], 0
      %s109 = sshll.u32 %s9, 4
      %s110 = int_to_ptr.vmem [resolvable:$true] %s109
      %112 = dma.vmem_to_smem %s110, 16, [#allocation17], [#allocation16]
    $region41: #{segmentation_model_forward.1} parent=1 // pred_fallthru
      _
    // Predicated region
    $region42: #{segmentation_model_forward.1} parent=1 // pred_check
      _
    $region43: #{segmentation_model_forward.1} parent=1 // pred_check_branch
      %114 = sbr.rel (0) target = $region45
    $region44: #{segmentation_model_forward.1} parent=1 // pred_region
      %116 = vsyncadd [#allocation19], 0
      %s118 = sshll.u32 %s10, 4
      %s119 = int_to_ptr.vmem [resolvable:$true] %s118
      %121 = dma.vmem_to_smem %s119, 16, [#allocation18], [#allocation19]
    $region45: #{segmentation_model_forward.1} parent=1 // pred_fallthru
      _
    // Predicated region
    $region46: #{segmentation_model_forward.1} parent=1 // pred_check
      _
    $region47: #{segmentation_model_forward.1} parent=1 // pred_check_branch
      %123 = sbr.rel (0) target = $region49
    $region48: #{segmentation_model_forward.1} parent=1 // pred_region
      _
    $region49: #{segmentation_model_forward.1} parent=1 // pred_fallthru
      _
    // Predicated region
    $region50: #{segmentation_model_forward.1} parent=1 // pred_check
      _
    $region51: #{segmentation_model_forward.1} parent=1 // pred_check_branch
      %125 = sbr.rel (0) target = $region53
    $region52: #{segmentation_model_forward.1} parent=1 // pred_region
      _
    $region53: #{segmentation_model_forward.1} parent=1 // pred_fallthru
      _
    // Predicated region
    $region54: #{segmentation_model_forward.1} parent=1 // pred_check
      _
    $region55: #{segmentation_model_forward.1} parent=1 // pred_check_branch
      %127 = sbr.rel (0) target = $region57
    $region56: #{segmentation_model_forward.1} parent=1 // pred_region
      _
    $region57: #{segmentation_model_forward.1} parent=1 // pred_fallthru
      _
    // Predicated region
    $region58: #{segmentation_model_forward.1} parent=1 // pred_check
      _
    $region59: #{segmentation_model_forward.1} parent=1 // pred_check_branch
      %129 = sbr.rel (0) target = $region61
    $region60: #{segmentation_model_forward.1} parent=1 // pred_region
      %131 = dma.done [#allocation5], 128
    $region61: #{segmentation_model_forward.1} parent=1 // pred_fallthru
      _
    // Predicated region
    $region62: #{segmentation_model_forward.1} parent=1 // pred_check
      _
    $region63: #{segmentation_model_forward.1} parent=1 // pred_check_branch
      %133 = sbr.rel (0) target = $region65
    $region64: #{segmentation_model_forward.1} parent=1 // pred_region
      %135 = dma.done [#allocation7], 16
    $region65: #{segmentation_model_forward.1} parent=1 // pred_fallthru
      _
    // Predicated region
    $region66: #{segmentation_model_forward.1} parent=1 // pred_check
      _
    $region67: #{segmentation_model_forward.1} parent=1 // pred_check_branch
      %137 = sbr.rel (0) target = $region69
    $region68: #{segmentation_model_forward.1} parent=1 // pred_region
      %139 = dma.done [#allocation7], 32
    $region69: #{segmentation_model_forward.1} parent=1 // pred_fallthru
      _
    // Predicated region
    $region70: #{segmentation_model_forward.1} parent=1 // pred_check
      _
    $region71: #{segmentation_model_forward.1} parent=1 // pred_check_branch
      %141 = sbr.rel (0) target = $region73
    $region72: #{segmentation_model_forward.1} parent=1 // pred_region
      %143 = dma.done [#allocation10], 16
    $region73: #{segmentation_model_forward.1} parent=1 // pred_fallthru
      _
    // Predicated region
    $region74: #{segmentation_model_forward.1} parent=1 // pred_check
      _
    $region75: #{segmentation_model_forward.1} parent=1 // pred_check_branch
      %145 = sbr.rel (0) target = $region77
    $region76: #{segmentation_model_forward.1} parent=1 // pred_region
      %147 = dma.done [#allocation10], 128
    $region77: #{segmentation_model_forward.1} parent=1 // pred_fallthru
      _
    // Predicated region
    $region78: #{segmentation_model_forward.1} parent=1 // pred_check
      _
    $region79: #{segmentation_model_forward.1} parent=1 // pred_check_branch
      %149 = sbr.rel (0) target = $region81
    $region80: #{segmentation_model_forward.1} parent=1 // pred_region
      %151 = dma.done [#allocation13], 16
    $region81: #{segmentation_model_forward.1} parent=1 // pred_fallthru
      _
    // Predicated region
    $region82: #{segmentation_model_forward.1} parent=1 // pred_check
      _
    $region83: #{segmentation_model_forward.1} parent=1 // pred_check_branch
      %153 = sbr.rel (0) target = $region85
    $region84: #{segmentation_model_forward.1} parent=1 // pred_region
      %155 = dma.done [#allocation13], 16
    $region85: #{segmentation_model_forward.1} parent=1 // pred_fallthru
      _
    // Predicated region
    $region86: #{segmentation_model_forward.1} parent=1 // pred_check
      _
    $region87: #{segmentation_model_forward.1} parent=1 // pred_check_branch
      %157 = sbr.rel (0) target = $region89
    $region88: #{segmentation_model_forward.1} parent=1 // pred_region
      %159 = dma.done [#allocation16], 16
    $region89: #{segmentation_model_forward.1} parent=1 // pred_fallthru
      _
    // Predicated region
    $region90: #{segmentation_model_forward.1} parent=1 // pred_check
      _
    $region91: #{segmentation_model_forward.1} parent=1 // pred_check_branch
      %161 = sbr.rel (0) target = $region93
    $region92: #{segmentation_model_forward.1} parent=1 // pred_region
      %163 = dma.done [#allocation16], 16
    $region93: #{segmentation_model_forward.1} parent=1 // pred_fallthru
      _
    // Predicated region
    $region94: #{segmentation_model_forward.1} parent=1 // pred_check
      _
    $region95: #{segmentation_model_forward.1} parent=1 // pred_check_branch
      %165 = sbr.rel (0) target = $region97
    $region96: #{segmentation_model_forward.1} parent=1 // pred_region
      %167 = dma.done [#allocation19], 16
    $region97: #{segmentation_model_forward.1} parent=1 // pred_fallthru
      _
    %168 = sfence
    %s169 = sld [smem:[#allocation4]]
    %s170 = sld [smem:[#allocation4 + $0x1]]
    %s171 = sld [smem:[#allocation4 + $0x2]]
    %s172 = sld [smem:[#allocation4 + $0x3]]
    %s173 = sld [smem:[#allocation4 + $0x80]]
    %s174 = sld [smem:[#allocation4 + $0x81]]
    %s175 = sld [smem:[#allocation4 + $0x82]]
    %s176 = sld [smem:[#allocation4 + $0x83]]
    %s177 = sld [smem:[#allocation4 + $0x100]]
    %s178 = sld [smem:[#allocation4 + $0x101]]
    %s179 = sld [smem:[#allocation4 + $0x102]]
    %s180 = sld [smem:[#allocation4 + $0x103]]
    %s181 = sld [smem:[#allocation4 + $0x180]]
    %s182 = sld [smem:[#allocation4 + $0x181]]
    %s183 = sld [smem:[#allocation4 + $0x182]]
    %s184 = sld [smem:[#allocation4 + $0x183]]
    %s185 = sld [smem:[#allocation4 + $0x200]]
    %s186 = sld [smem:[#allocation4 + $0x201]]
    %s187 = sld [smem:[#allocation4 + $0x202]]
    %s188 = sld [smem:[#allocation4 + $0x203]]
    %s189 = sld [smem:[#allocation4 + $0x280]]
    %s190 = sld [smem:[#allocation4 + $0x281]]
    %s191 = sld [smem:[#allocation4 + $0x282]]
    %s192 = sld [smem:[#allocation4 + $0x283]]
    %s193 = sld [smem:[#allocation4 + $0x300]]
    %s194 = sld [smem:[#allocation4 + $0x301]]
    %s195 = sld [smem:[#allocation4 + $0x302]]
    %s196 = sld [smem:[#allocation4 + $0x303]]
    %s197 = sld [smem:[#allocation4 + $0x380]]
    %s198 = sld [smem:[#allocation4 + $0x381]]
    %s199 = sld [smem:[#allocation4 + $0x382]]
    %s200 = sld [smem:[#allocation4 + $0x383]]
    %s201 = sld [smem:[#allocation6]]
    %s202 = sld [smem:[#allocation6 + $0x1]]
    %s203 = sld [smem:[#allocation6 + $0x2]]
    %s204 = sld [smem:[#allocation6 + $0x3]]
    %s205 = sld [smem:[#allocation6 + $0x4]]
    %s206 = sld [smem:[#allocation6 + $0x5]]
    %s207 = sld [smem:[#allocation6 + $0x6]]
    %s208 = sld [smem:[#allocation6 + $0x7]]
    %s209 = sld [smem:[#allocation8]]
    %s210 = sld [smem:[#allocation8 + $0x1]]
    %s211 = sld [smem:[#allocation8 + $0x2]]
    %s212 = sld [smem:[#allocation8 + $0x3]]
    %s213 = sld [smem:[#allocation8 + $0x4]]
    %s214 = sld [smem:[#allocation8 + $0x5]]
    %s215 = sld [smem:[#allocation8 + $0x6]]
    %s216 = sld [smem:[#allocation8 + $0x7]]
    %s217 = sld [smem:[#allocation8 + $0x80]]
    %s218 = sld [smem:[#allocation8 + $0x81]]
    %s219 = sld [smem:[#allocation8 + $0x82]]
    %s220 = sld [smem:[#allocation8 + $0x83]]
    %s221 = sld [smem:[#allocation8 + $0x84]]
    %s222 = sld [smem:[#allocation8 + $0x85]]
    %s223 = sld [smem:[#allocation8 + $0x86]]
    %s224 = sld [smem:[#allocation8 + $0x87]]
    %s225 = sld [smem:[#allocation9]]
    %s226 = sld [smem:[#allocation9 + $0x1]]
    %s227 = sld [smem:[#allocation11]]
    %s228 = sld [smem:[#allocation11 + $0x1]]
    %s229 = sld [smem:[#allocation11 + $0x80]]
    %s230 = sld [smem:[#allocation11 + $0x81]]
    %s231 = sld [smem:[#allocation11 + $0x100]]
    %s232 = sld [smem:[#allocation11 + $0x101]]
    %s233 = sld [smem:[#allocation11 + $0x180]]
    %s234 = sld [smem:[#allocation11 + $0x181]]
    %s235 = sld [smem:[#allocation11 + $0x200]]
    %s236 = sld [smem:[#allocation11 + $0x201]]
    %s237 = sld [smem:[#allocation11 + $0x280]]
    %s238 = sld [smem:[#allocation11 + $0x281]]
    %s239 = sld [smem:[#allocation11 + $0x300]]
    %s240 = sld [smem:[#allocation11 + $0x301]]
    %s241 = sld [smem:[#allocation11 + $0x380]]
    %s242 = sld [smem:[#allocation11 + $0x381]]
    %s243 = sld [smem:[#allocation12]]
    %s244 = sld [smem:[#allocation12 + $0x1]]
    %s245 = sld [smem:[#allocation12 + $0x2]]
    %s246 = sld [smem:[#allocation12 + $0x3]]
    %s247 = sld [smem:[#allocation12 + $0x4]]
    %s248 = sld [smem:[#allocation12 + $0x5]]
    %s249 = sld [smem:[#allocation12 + $0x6]]
    %s250 = sld [smem:[#allocation12 + $0x7]]
    %s251 = sld [smem:[#allocation14]]
    %s252 = sld [smem:[#allocation14 + $0x1]]
    %s253 = sld [smem:[#allocation14 + $0x2]]
    %s254 = sld [smem:[#allocation14 + $0x3]]
    %s255 = sld [smem:[#allocation14 + $0x4]]
    %s256 = sld [smem:[#allocation14 + $0x5]]
    %s257 = sld [smem:[#allocation14 + $0x6]]
    %s258 = sld [smem:[#allocation14 + $0x7]]
    %s259 = sld [smem:[#allocation2]]
    %s260 = sld [smem:[#allocation15]]
    %s261 = sld [smem:[#allocation15 + $0x1]]
    %s262 = sld [smem:[#allocation15 + $0x2]]
    %s263 = sld [smem:[#allocation15 + $0x3]]
    %s264 = sld [smem:[#allocation15 + $0x4]]
    %s265 = sld [smem:[#allocation15 + $0x5]]
    %s266 = sld [smem:[#allocation15 + $0x6]]
    %s267 = sld [smem:[#allocation15 + $0x7]]
    %s268 = sld [smem:[#allocation17]]
    %s269 = sld [smem:[#allocation17 + $0x1]]
    %s270 = sld [smem:[#allocation17 + $0x2]]
    %s271 = sld [smem:[#allocation17 + $0x3]]
    %s272 = sld [smem:[#allocation17 + $0x4]]
    %s273 = sld [smem:[#allocation17 + $0x5]]
    %s274 = sld [smem:[#allocation17 + $0x6]]
    %s275 = sld [smem:[#allocation17 + $0x7]]
    %s276 = sld [smem:[#allocation18]]
    %s277 = sld [smem:[#allocation18 + $0x1]]
    %s278 = sld [smem:[#allocation18 + $0x2]]
    %s279 = sld [smem:[#allocation18 + $0x3]]
    %s280 = sld [smem:[#allocation18 + $0x4]]
    %s281 = sld [smem:[#allocation18 + $0x5]]
    %s282 = sld [smem:[#allocation18 + $0x6]]
    %s283 = sld [smem:[#allocation18 + $0x7]]
    %s284 = sld [smem:[#allocation3]]
    %v285 = vld [vmem:[%s12] sm:$0x3]
    %v286 = vld [vmem:[%s12 + $0x8] sm:$0x3]
    %s287 = scalar_lea.vmem %s12, 2
    %v288 = vld [vmem:[%s287] sm:$0x3]
    %v289 = vld [vmem:[%s287 + $0x8] sm:$0x3]
    %s290 = scalar_lea.vmem %s12, 4
    %v291 = vld [vmem:[%s290] sm:$0x3]
    %v292 = vld [vmem:[%s290 + $0x8] sm:$0x3]
    %s293 = scalar_lea.vmem %s12, 6
    %v294 = vld [vmem:[%s293] sm:$0x3]
    %v295 = vld [vmem:[%s293 + $0x8] sm:$0x3]
    %v296 = vstv %s169
    %v297 = vmul.f32 %v296, %v285
    %v298 = vmul.f32 %v296, %v286
    %v299 = vstv %s201
    %v300 = vadd.f32 %v299, %v297
    %v301 = vadd.f32 %v299, %v298
    %v302 = vstv %s170
    %v303 = vmul.f32 %v302, %v288
    %v304 = vmul.f32 %v302, %v289
    %v305 = vadd.f32 %v300, %v303
    %v306 = vadd.f32 %v301, %v304
    %v307 = vstv %s171
    %v308 = vmul.f32 %v307, %v291
    %v309 = vmul.f32 %v307, %v292
    %v310 = vadd.f32 %v305, %v308
    %v311 = vadd.f32 %v306, %v309
    %v312 = vstv %s172
    %v313 = vmul.f32 %v312, %v294
    %v314 = vmul.f32 %v312, %v295
    %v315 = vadd.f32 %v310, %v313
    %v316 = vadd.f32 %v311, %v314
    %v317 = vmax.f32 %v315, 0.0
    %v318 = vmax.f32 %v316, 0.0
    %v319 = vstv %s209
    %v320 = vmul.f32 %v319, %v317
    %v321 = vmul.f32 %v319, %v318
    %v322 = vstv %s217
    %v323 = vmul.f32 %v322, %v317
    %v324 = vmul.f32 %v322, %v318
    %v325 = vstv %s173
    %v326 = vmul.f32 %v325, %v285
    %v327 = vmul.f32 %v325, %v286
    %v328 = vstv %s202
    %v329 = vadd.f32 %v328, %v326
    %v330 = vadd.f32 %v328, %v327
    %v331 = vstv %s174
    %v332 = vmul.f32 %v331, %v288
    %v333 = vmul.f32 %v331, %v289
    %v334 = vadd.f32 %v329, %v332
    %v335 = vadd.f32 %v330, %v333
    %v336 = vstv %s175
    %v337 = vmul.f32 %v336, %v291
    %v338 = vmul.f32 %v336, %v292
    %v339 = vadd.f32 %v334, %v337
    %v340 = vadd.f32 %v335, %v338
    %v341 = vstv %s176
    %v342 = vmul.f32 %v341, %v294
    %v343 = vmul.f32 %v341, %v295
    %v344 = vadd.f32 %v339, %v342
    %v345 = vadd.f32 %v340, %v343
    %v346 = vmax.f32 %v344, 0.0
    %v347 = vmax.f32 %v345, 0.0
    %v348 = vstv %s210
    %v349 = vmul.f32 %v348, %v346
    %v350 = vmul.f32 %v348, %v347
    %v351 = vadd.f32 %v320, %v349
    %v352 = vadd.f32 %v321, %v350
    %v353 = vstv %s218
    %v354 = vmul.f32 %v353, %v346
    %v355 = vmul.f32 %v353, %v347
    %v356 = vadd.f32 %v323, %v354
    %v357 = vadd.f32 %v324, %v355
    %v358 = vstv %s177
    %v359 = vmul.f32 %v358, %v285
    %v360 = vmul.f32 %v358, %v286
    %v361 = vstv %s203
    %v362 = vadd.f32 %v361, %v359
    %v363 = vadd.f32 %v361, %v360
    %v364 = vstv %s178
    %v365 = vmul.f32 %v364, %v288
    %v366 = vmul.f32 %v364, %v289
    %v367 = vadd.f32 %v362, %v365
    %v368 = vadd.f32 %v363, %v366
    %v369 = vstv %s179
    %v370 = vmul.f32 %v369, %v291
    %v371 = vmul.f32 %v369, %v292
    %v372 = vadd.f32 %v367, %v370
    %v373 = vadd.f32 %v368, %v371
    %v374 = vstv %s180
    %v375 = vmul.f32 %v374, %v294
    %v376 = vmul.f32 %v374, %v295
    %v377 = vadd.f32 %v372, %v375
    %v378 = vadd.f32 %v373, %v376
    %v379 = vmax.f32 %v377, 0.0
    %v380 = vmax.f32 %v378, 0.0
    %v381 = vstv %s211
    %v382 = vmul.f32 %v381, %v379
    %v383 = vmul.f32 %v381, %v380
    %v384 = vadd.f32 %v351, %v382
    %v385 = vadd.f32 %v352, %v383
    %v386 = vstv %s219
    %v387 = vmul.f32 %v386, %v379
    %v388 = vmul.f32 %v386, %v380
    %v389 = vadd.f32 %v356, %v387
    %v390 = vadd.f32 %v357, %v388
    %v391 = vstv %s181
    %v392 = vmul.f32 %v391, %v285
    %v393 = vmul.f32 %v391, %v286
    %v394 = vstv %s204
    %v395 = vadd.f32 %v394, %v392
    %v396 = vadd.f32 %v394, %v393
    %v397 = vstv %s182
    %v398 = vmul.f32 %v397, %v288
    %v399 = vmul.f32 %v397, %v289
    %v400 = vadd.f32 %v395, %v398
    %v401 = vadd.f32 %v396, %v399
    %v402 = vstv %s183
    %v403 = vmul.f32 %v402, %v291
    %v404 = vmul.f32 %v402, %v292
    %v405 = vadd.f32 %v400, %v403
    %v406 = vadd.f32 %v401, %v404
    %v407 = vstv %s184
    %v408 = vmul.f32 %v407, %v294
    %v409 = vmul.f32 %v407, %v295
    %v410 = vadd.f32 %v405, %v408
    %v411 = vadd.f32 %v406, %v409
    %v412 = vmax.f32 %v410, 0.0
    %v413 = vmax.f32 %v411, 0.0
    %v414 = vstv %s212
    %v415 = vmul.f32 %v414, %v412
    %v416 = vmul.f32 %v414, %v413
    %v417 = vadd.f32 %v384, %v415
    %v418 = vadd.f32 %v385, %v416
    %v419 = vstv %s220
    %v420 = vmul.f32 %v419, %v412
    %v421 = vmul.f32 %v419, %v413
    %v422 = vadd.f32 %v389, %v420
    %v423 = vadd.f32 %v390, %v421
    %v424 = vstv %s185
    %v425 = vmul.f32 %v424, %v285
    %v426 = vmul.f32 %v424, %v286
    %v427 = vstv %s205
    %v428 = vadd.f32 %v427, %v425
    %v429 = vadd.f32 %v427, %v426
    %v430 = vstv %s186
    %v431 = vmul.f32 %v430, %v288
    %v432 = vmul.f32 %v430, %v289
    %v433 = vadd.f32 %v428, %v431
    %v434 = vadd.f32 %v429, %v432
    %v435 = vstv %s187
    %v436 = vmul.f32 %v435, %v291
    %v437 = vmul.f32 %v435, %v292
    %v438 = vadd.f32 %v433, %v436
    %v439 = vadd.f32 %v434, %v437
    %v440 = vstv %s188
    %v441 = vmul.f32 %v440, %v294
    %v442 = vmul.f32 %v440, %v295
    %v443 = vadd.f32 %v438, %v441
    %v444 = vadd.f32 %v439, %v442
    %v445 = vmax.f32 %v443, 0.0
    %v446 = vmax.f32 %v444, 0.0
    %v447 = vstv %s213
    %v448 = vmul.f32 %v447, %v445
    %v449 = vmul.f32 %v447, %v446
    %v450 = vadd.f32 %v417, %v448
    %v451 = vadd.f32 %v418, %v449
    %v452 = vstv %s221
    %v453 = vmul.f32 %v452, %v445
    %v454 = vmul.f32 %v452, %v446
    %v455 = vadd.f32 %v422, %v453
    %v456 = vadd.f32 %v423, %v454
    %v457 = vstv %s189
    %v458 = vmul.f32 %v457, %v285
    %v459 = vmul.f32 %v457, %v286
    %v460 = vstv %s206
    %v461 = vadd.f32 %v460, %v458
    %v462 = vadd.f32 %v460, %v459
    %v463 = vstv %s190
    %v464 = vmul.f32 %v463, %v288
    %v465 = vmul.f32 %v463, %v289
    %v466 = vadd.f32 %v461, %v464
    %v467 = vadd.f32 %v462, %v465
    %v468 = vstv %s191
    %v469 = vmul.f32 %v468, %v291
    %v470 = vmul.f32 %v468, %v292
    %v471 = vadd.f32 %v466, %v469
    %v472 = vadd.f32 %v467, %v470
    %v473 = vstv %s192
    %v474 = vmul.f32 %v473, %v294
    %v475 = vmul.f32 %v473, %v295
    %v476 = vadd.f32 %v471, %v474
    %v477 = vadd.f32 %v472, %v475
    %v478 = vmax.f32 %v476, 0.0
    %v479 = vmax.f32 %v477, 0.0
    %v480 = vstv %s214
    %v481 = vmul.f32 %v480, %v478
    %v482 = vmul.f32 %v480, %v479
    %v483 = vadd.f32 %v450, %v481
    %v484 = vadd.f32 %v451, %v482
    %v485 = vstv %s222
    %v486 = vmul.f32 %v485, %v478
    %v487 = vmul.f32 %v485, %v479
    %v488 = vadd.f32 %v455, %v486
    %v489 = vadd.f32 %v456, %v487
    %v490 = vstv %s193
    %v491 = vmul.f32 %v490, %v285
    %v492 = vmul.f32 %v490, %v286
    %v493 = vstv %s207
    %v494 = vadd.f32 %v493, %v491
    %v495 = vadd.f32 %v493, %v492
    %v496 = vstv %s194
    %v497 = vmul.f32 %v496, %v288
    %v498 = vmul.f32 %v496, %v289
    %v499 = vadd.f32 %v494, %v497
    %v500 = vadd.f32 %v495, %v498
    %v501 = vstv %s195
    %v502 = vmul.f32 %v501, %v291
    %v503 = vmul.f32 %v501, %v292
    %v504 = vadd.f32 %v499, %v502
    %v505 = vadd.f32 %v500, %v503
    %v506 = vstv %s196
    %v507 = vmul.f32 %v506, %v294
    %v508 = vmul.f32 %v506, %v295
    %v509 = vadd.f32 %v504, %v507
    %v510 = vadd.f32 %v505, %v508
    %v511 = vmax.f32 %v509, 0.0
    %v512 = vmax.f32 %v510, 0.0
    %v513 = vstv %s215
    %v514 = vmul.f32 %v513, %v511
    %v515 = vmul.f32 %v513, %v512
    %v516 = vadd.f32 %v483, %v514
    %v517 = vadd.f32 %v484, %v515
    %v518 = vstv %s223
    %v519 = vmul.f32 %v518, %v511
    %v520 = vmul.f32 %v518, %v512
    %v521 = vadd.f32 %v488, %v519
    %v522 = vadd.f32 %v489, %v520
    %v523 = vstv %s197
    %v524 = vmul.f32 %v523, %v285
    %v525 = vmul.f32 %v523, %v286
    %v526 = vstv %s208
    %v527 = vadd.f32 %v526, %v524
    %v528 = vadd.f32 %v526, %v525
    %v529 = vstv %s198
    %v530 = vmul.f32 %v529, %v288
    %v531 = vmul.f32 %v529, %v289
    %v532 = vadd.f32 %v527, %v530
    %v533 = vadd.f32 %v528, %v531
    %v534 = vstv %s199
    %v535 = vmul.f32 %v534, %v291
    %v536 = vmul.f32 %v534, %v292
    %v537 = vadd.f32 %v532, %v535
    %v538 = vadd.f32 %v533, %v536
    %v539 = vstv %s200
    %v540 = vmul.f32 %v539, %v294
    %v541 = vmul.f32 %v539, %v295
    %v542 = vadd.f32 %v537, %v540
    %v543 = vadd.f32 %v538, %v541
    %v544 = vmax.f32 %v542, 0.0
    %v545 = vmax.f32 %v543, 0.0
    %v546 = vstv %s216
    %v547 = vmul.f32 %v546, %v544
    %v548 = vmul.f32 %v546, %v545
    %v549 = vadd.f32 %v516, %v547
    %v550 = vadd.f32 %v517, %v548
    %v551 = vstv %s224
    %v552 = vmul.f32 %v551, %v544
    %v553 = vmul.f32 %v551, %v545
    %v554 = vadd.f32 %v521, %v552
    %v555 = vadd.f32 %v522, %v553
    %v556 = vstv %s225
    %v557 = vadd.f32 %v549, %v556
    %v558 = vadd.f32 %v550, %v556
    %v559 = vxor.u32 %v557, 2147483648
    %v560 = vxor.u32 %v558, 2147483648
    %v561 = vmul.f32 %v559, 1.442695
    %v562 = vpow.pop %v561
    %v563 = vmul.f32 %v560, 1.442695
    %v564 = vpow.pop %v563
    %v565 = vadd.f32 %v562, 1.0
    %v566 = vadd.f32 %v564, 1.0
    %v567 = vrcp.pop %v565
    %v568 = vmul.f32 %v565, %v567
    %v569 = vsub.f32 1.0, %v568
    %v570 = vmul.f32 %v567, %v569
    %v571 = vadd.f32 %v567, %v570
    %vm572 = vweird.f32 %v565
    %vm573 = vweird.f32 %v567
    %vm574 = vmor %vm572, %vm573
    %v575 = vsel %vm574, %v567, %v571
    %v576 = vand.u32 2147483647, %v565
    %vm577 = vcmp.eq.f32.partialorder %v576, 8.507059e+37
    %v578 = vand.u32 %v565, 2147483648
    %v579 = vor.u32 1.1754944e-38, %v578
    %v580 = vsel %vm577, %v579, %v575
    %v581 = vmul.f32 1.0, %v580
    %v582 = vrcp.pop %v566
    %v583 = vmul.f32 %v566, %v582
    %v584 = vsub.f32 1.0, %v583
    %v585 = vmul.f32 %v582, %v584
    %v586 = vadd.f32 %v582, %v585
    %vm587 = vweird.f32 %v566
    %vm588 = vweird.f32 %v582
    %vm589 = vmor %vm587, %vm588
    %v590 = vsel %vm589, %v582, %v586
    %v591 = vand.u32 2147483647, %v566
    %vm592 = vcmp.eq.f32.partialorder %v591, 8.507059e+37
    %v593 = vand.u32 %v566, 2147483648
    %v594 = vor.u32 1.1754944e-38, %v593
    %v595 = vsel %vm592, %v594, %v590
    %v596 = vmul.f32 1.0, %v595
    %v597 = vstv %s226
    %v598 = vadd.f32 %v554, %v597
    %v599 = vadd.f32 %v555, %v597
    %v600 = vxor.u32 %v598, 2147483648
    %v601 = vxor.u32 %v599, 2147483648
    %v602 = vmul.f32 %v600, 1.442695
    %v603 = vpow.pop %v602
    %v604 = vmul.f32 %v601, 1.442695
    %v605 = vpow.pop %v604
    %v606 = vadd.f32 %v603, 1.0
    %v607 = vadd.f32 %v605, 1.0
    %v608 = vrcp.pop %v606
    %v609 = vmul.f32 %v606, %v608
    %v610 = vsub.f32 1.0, %v609
    %v611 = vmul.f32 %v608, %v610
    %v612 = vadd.f32 %v608, %v611
    %vm613 = vweird.f32 %v606
    %vm614 = vweird.f32 %v608
    %vm615 = vmor %vm613, %vm614
    %v616 = vsel %vm615, %v608, %v612
    %v617 = vand.u32 2147483647, %v606
    %vm618 = vcmp.eq.f32.partialorder %v617, 8.507059e+37
    %v619 = vand.u32 %v606, 2147483648
    %v620 = vor.u32 1.1754944e-38, %v619
    %v621 = vsel %vm618, %v620, %v616
    %v622 = vmul.f32 1.0, %v621
    %v623 = vrcp.pop %v607
    %v624 = vmul.f32 %v607, %v623
    %v625 = vsub.f32 1.0, %v624
    %v626 = vmul.f32 %v623, %v625
    %v627 = vadd.f32 %v623, %v626
    %vm628 = vweird.f32 %v607
    %vm629 = vweird.f32 %v623
    %vm630 = vmor %vm628, %vm629
    %v631 = vsel %vm630, %v623, %v627
    %v632 = vand.u32 2147483647, %v607
    %vm633 = vcmp.eq.f32.partialorder %v632, 8.507059e+37
    %v634 = vand.u32 %v607, 2147483648
    %v635 = vor.u32 1.1754944e-38, %v634
    %v636 = vsel %vm633, %v635, %v631
    %v637 = vmul.f32 1.0, %v636
    %v638 = vsub.f32 1.0, %v622
    %v639 = vsub.f32 1.0, %v637
    %v640 = vsub.f32 0.0, %v622
    %v641 = vsub.f32 0.0, %v637
    %v642 = vadd.f32 %v622, 1e-30
    %v643 = vadd.f32 %v637, 1e-30
    %v644 = vlog2.pop %v642
    %v645 = vmul.f32 %v644, 0.6931472
    %v646 = vlog2.pop %v643
    %v647 = vmul.f32 %v646, 0.6931472
    %v648 = vrcp.pop 0.6931472
    %v649 = vmul.f32 0.6931472, %v648
    %v650 = vsub.f32 1.0, %v649
    %v651 = vmul.f32 %v648, %v650
    %v652 = vadd.f32 %v648, %v651
    %vm653 = vweird.f32 %v648
    %v654 = vsel %vm653, %v648, %v652
    %v655 = vmul.f32 %v645, %v654
    %v656 = vmul.f32 %v647, %v654
    %v657 = vmul.f32 %v640, %v655
    %v658 = vmul.f32 %v641, %v656
    %v659 = vsub.f32 0.0, %v638
    %v660 = vsub.f32 0.0, %v639
    %v661 = vadd.f32 %v638, 1e-30
    %v662 = vadd.f32 %v639, 1e-30
    %v663 = vlog2.pop %v661
    %v664 = vmul.f32 %v663, 0.6931472
    %v665 = vlog2.pop %v662
    %v666 = vmul.f32 %v665, 0.6931472
    %v667 = vmul.f32 %v664, %v654
    %v668 = vmul.f32 %v666, %v654
    %v669 = vmul.f32 %v659, %v667
    %v670 = vmul.f32 %v660, %v668
    %v671 = vadd.f32 %v657, %v669
    %v672 = vadd.f32 %v658, %v670
    %673 = vst [vmem:[%s14] sm:$0x3] %v671
    %674 = vst [vmem:[%s14 + $0x2] sm:$0x3] %v672
    %v675 = vstv %s227
    %v676 = vmul.f32 %v675, %v657
    %v677 = vmul.f32 %v675, %v658
    %v678 = vstv %s243
    %v679 = vadd.f32 %v678, %v676
    %v680 = vadd.f32 %v678, %v677
    %v681 = vstv %s228
    %v682 = vmul.f32 %v681, %v669
    %v683 = vmul.f32 %v681, %v670
    %v684 = vadd.f32 %v679, %v682
    %v685 = vadd.f32 %v680, %v683
    %v686 = vmul.f32 %v684, 0.2
    %v687 = vmul.f32 %v685, 0.2
    %v688 = vmax.f32 %v684, %v686
    %v689 = vmax.f32 %v685, %v687
    %v690 = vstv %s260
    %v691 = vmul.f32 %v690, %v581
    %v692 = vmul.f32 %v690, %v596
    %v693 = vstv %s268
    %v694 = vadd.f32 %v693, %v691
    %v695 = vadd.f32 %v693, %v692
    %v696 = vmul.f32 %v694, 0.2
    %v697 = vmul.f32 %v695, 0.2
    %v698 = vmax.f32 %v694, %v696
    %v699 = vmax.f32 %v695, %v697
    %v700 = vstv %s251
    %v701 = vmul.f32 %v700, %v688
    %v702 = vmul.f32 %v700, %v689
    %v703 = vstv %s276
    %v704 = vmul.f32 %v703, %v698
    %v705 = vmul.f32 %v703, %v699
    %v706 = vstv %s229
    %v707 = vmul.f32 %v706, %v657
    %v708 = vmul.f32 %v706, %v658
    %v709 = vstv %s244
    %v710 = vadd.f32 %v709, %v707
    %v711 = vadd.f32 %v709, %v708
    %v712 = vstv %s230
    %v713 = vmul.f32 %v712, %v669
    %v714 = vmul.f32 %v712, %v670
    %v715 = vadd.f32 %v710, %v713
    %v716 = vadd.f32 %v711, %v714
    %v717 = vmul.f32 %v715, 0.2
    %v718 = vmul.f32 %v716, 0.2
    %v719 = vmax.f32 %v715, %v717
    %v720 = vmax.f32 %v716, %v718
    %v721 = vstv %s261
    %v722 = vmul.f32 %v721, %v581
    %v723 = vmul.f32 %v721, %v596
    %v724 = vstv %s269
    %v725 = vadd.f32 %v724, %v722
    %v726 = vadd.f32 %v724, %v723
    %v727 = vmul.f32 %v725, 0.2
    %v728 = vmul.f32 %v726, 0.2
    %v729 = vmax.f32 %v725, %v727
    %v730 = vmax.f32 %v726, %v728
    %v731 = vstv %s252
    %v732 = vmul.f32 %v731, %v719
    %v733 = vmul.f32 %v731, %v720
    %v734 = vadd.f32 %v701, %v732
    %v735 = vadd.f32 %v702, %v733
    %v736 = vstv %s277
    %v737 = vmul.f32 %v736, %v729
    %v738 = vmul.f32 %v736, %v730
    %v739 = vadd.f32 %v704, %v737
    %v740 = vadd.f32 %v705, %v738
    %v741 = vstv %s231
    %v742 = vmul.f32 %v741, %v657
    %v743 = vmul.f32 %v741, %v658
    %v744 = vstv %s245
    %v745 = vadd.f32 %v744, %v742
    %v746 = vadd.f32 %v744, %v743
    %v747 = vstv %s232
    %v748 = vmul.f32 %v747, %v669
    %v749 = vmul.f32 %v747, %v670
    %v750 = vadd.f32 %v745, %v748
    %v751 = vadd.f32 %v746, %v749
    %v752 = vmul.f32 %v750, 0.2
    %v753 = vmul.f32 %v751, 0.2
    %v754 = vmax.f32 %v750, %v752
    %v755 = vmax.f32 %v751, %v753
    %v756 = vstv %s262
    %v757 = vmul.f32 %v756, %v581
    %v758 = vmul.f32 %v756, %v596
    %v759 = vstv %s270
    %v760 = vadd.f32 %v759, %v757
    %v761 = vadd.f32 %v759, %v758
    %v762 = vmul.f32 %v760, 0.2
    %v763 = vmul.f32 %v761, 0.2
    %v764 = vmax.f32 %v760, %v762
    %v765 = vmax.f32 %v761, %v763
    %v766 = vstv %s253
    %v767 = vmul.f32 %v766, %v754
    %v768 = vmul.f32 %v766, %v755
    %v769 = vadd.f32 %v734, %v767
    %v770 = vadd.f32 %v735, %v768
    %v771 = vstv %s278
    %v772 = vmul.f32 %v771, %v764
    %v773 = vmul.f32 %v771, %v765
    %v774 = vadd.f32 %v739, %v772
    %v775 = vadd.f32 %v740, %v773
    %v776 = vstv %s233
    %v777 = vmul.f32 %v776, %v657
    %v778 = vmul.f32 %v776, %v658
    %v779 = vstv %s246
    %v780 = vadd.f32 %v779, %v777
    %v781 = vadd.f32 %v779, %v778
    %v782 = vstv %s234
    %v783 = vmul.f32 %v782, %v669
    %v784 = vmul.f32 %v782, %v670
    %v785 = vadd.f32 %v780, %v783
    %v786 = vadd.f32 %v781, %v784
    %v787 = vmul.f32 %v785, 0.2
    %v788 = vmul.f32 %v786, 0.2
    %v789 = vmax.f32 %v785, %v787
    %v790 = vmax.f32 %v786, %v788
    %v791 = vstv %s263
    %v792 = vmul.f32 %v791, %v581
    %v793 = vmul.f32 %v791, %v596
    %v794 = vstv %s271
    %v795 = vadd.f32 %v794, %v792
    %v796 = vadd.f32 %v794, %v793
    %v797 = vmul.f32 %v795, 0.2
    %v798 = vmul.f32 %v796, 0.2
    %v799 = vmax.f32 %v795, %v797
    %v800 = vmax.f32 %v796, %v798
    %v801 = vstv %s254
    %v802 = vmul.f32 %v801, %v789
    %v803 = vmul.f32 %v801, %v790
    %v804 = vadd.f32 %v769, %v802
    %v805 = vadd.f32 %v770, %v803
    %v806 = vstv %s279
    %v807 = vmul.f32 %v806, %v799
    %v808 = vmul.f32 %v806, %v800
    %v809 = vadd.f32 %v774, %v807
    %v810 = vadd.f32 %v775, %v808
    %v811 = vstv %s235
    %v812 = vmul.f32 %v811, %v657
    %v813 = vmul.f32 %v811, %v658
    %v814 = vstv %s247
    %v815 = vadd.f32 %v814, %v812
    %v816 = vadd.f32 %v814, %v813
    %v817 = vstv %s236
    %v818 = vmul.f32 %v817, %v669
    %v819 = vmul.f32 %v817, %v670
    %v820 = vadd.f32 %v815, %v818
    %v821 = vadd.f32 %v816, %v819
    %v822 = vmul.f32 %v820, 0.2
    %v823 = vmul.f32 %v821, 0.2
    %v824 = vmax.f32 %v820, %v822
    %v825 = vmax.f32 %v821, %v823
    %v826 = vstv %s264
    %v827 = vmul.f32 %v826, %v581
    %v828 = vmul.f32 %v826, %v596
    %v829 = vstv %s272
    %v830 = vadd.f32 %v829, %v827
    %v831 = vadd.f32 %v829, %v828
    %v832 = vmul.f32 %v830, 0.2
    %v833 = vmul.f32 %v831, 0.2
    %v834 = vmax.f32 %v830, %v832
    %v835 = vmax.f32 %v831, %v833
    %v836 = vstv %s255
    %v837 = vmul.f32 %v836, %v824
    %v838 = vmul.f32 %v836, %v825
    %v839 = vadd.f32 %v804, %v837
    %v840 = vadd.f32 %v805, %v838
    %v841 = vstv %s280
    %v842 = vmul.f32 %v841, %v834
    %v843 = vmul.f32 %v841, %v835
    %v844 = vadd.f32 %v809, %v842
    %v845 = vadd.f32 %v810, %v843
    %v846 = vstv %s237
    %v847 = vmul.f32 %v846, %v657
    %v848 = vmul.f32 %v846, %v658
    %v849 = vstv %s248
    %v850 = vadd.f32 %v849, %v847
    %v851 = vadd.f32 %v849, %v848
    %v852 = vstv %s238
    %v853 = vmul.f32 %v852, %v669
    %v854 = vmul.f32 %v852, %v670
    %v855 = vadd.f32 %v850, %v853
    %v856 = vadd.f32 %v851, %v854
    %v857 = vmul.f32 %v855, 0.2
    %v858 = vmul.f32 %v856, 0.2
    %v859 = vmax.f32 %v855, %v857
    %v860 = vmax.f32 %v856, %v858
    %v861 = vstv %s265
    %v862 = vmul.f32 %v861, %v581
    %v863 = vmul.f32 %v861, %v596
    %v864 = vstv %s273
    %v865 = vadd.f32 %v864, %v862
    %v866 = vadd.f32 %v864, %v863
    %v867 = vmul.f32 %v865, 0.2
    %v868 = vmul.f32 %v866, 0.2
    %v869 = vmax.f32 %v865, %v867
    %v870 = vmax.f32 %v866, %v868
    %v871 = vstv %s256
    %v872 = vmul.f32 %v871, %v859
    %v873 = vmul.f32 %v871, %v860
    %v874 = vadd.f32 %v839, %v872
    %v875 = vadd.f32 %v840, %v873
    %v876 = vstv %s281
    %v877 = vmul.f32 %v876, %v869
    %v878 = vmul.f32 %v876, %v870
    %v879 = vadd.f32 %v844, %v877
    %v880 = vadd.f32 %v845, %v878
    %v881 = vstv %s239
    %v882 = vmul.f32 %v881, %v657
    %v883 = vmul.f32 %v881, %v658
    %v884 = vstv %s249
    %v885 = vadd.f32 %v884, %v882
    %v886 = vadd.f32 %v884, %v883
    %v887 = vstv %s240
    %v888 = vmul.f32 %v887, %v669
    %v889 = vmul.f32 %v887, %v670
    %v890 = vadd.f32 %v885, %v888
    %v891 = vadd.f32 %v886, %v889
    %v892 = vmul.f32 %v890, 0.2
    %v893 = vmul.f32 %v891, 0.2
    %v894 = vmax.f32 %v890, %v892
    %v895 = vmax.f32 %v891, %v893
    %v896 = vstv %s266
    %v897 = vmul.f32 %v896, %v581
    %v898 = vmul.f32 %v896, %v596
    %v899 = vstv %s274
    %v900 = vadd.f32 %v899, %v897
    %v901 = vadd.f32 %v899, %v898
    %v902 = vmul.f32 %v900, 0.2
    %v903 = vmul.f32 %v901, 0.2
    %v904 = vmax.f32 %v900, %v902
    %v905 = vmax.f32 %v901, %v903
    %v906 = vstv %s257
    %v907 = vmul.f32 %v906, %v894
    %v908 = vmul.f32 %v906, %v895
    %v909 = vadd.f32 %v874, %v907
    %v910 = vadd.f32 %v875, %v908
    %v911 = vstv %s282
    %v912 = vmul.f32 %v911, %v904
    %v913 = vmul.f32 %v911, %v905
    %v914 = vadd.f32 %v879, %v912
    %v915 = vadd.f32 %v880, %v913
    %v916 = vstv %s241
    %v917 = vmul.f32 %v916, %v657
    %v918 = vmul.f32 %v916, %v658
    %v919 = vstv %s250
    %v920 = vadd.f32 %v919, %v917
    %v921 = vadd.f32 %v919, %v918
    %v922 = vstv %s242
    %v923 = vmul.f32 %v922, %v669
    %v924 = vmul.f32 %v922, %v670
    %v925 = vadd.f32 %v920, %v923
    %v926 = vadd.f32 %v921, %v924
    %v927 = vmul.f32 %v925, 0.2
    %v928 = vmul.f32 %v926, 0.2
    %v929 = vmax.f32 %v925, %v927
    %v930 = vmax.f32 %v926, %v928
    %v931 = vstv %s267
    %v932 = vmul.f32 %v931, %v581
    %v933 = vmul.f32 %v931, %v596
    %v934 = vstv %s275
    %v935 = vadd.f32 %v934, %v932
    %v936 = vadd.f32 %v934, %v933
    %v937 = vmul.f32 %v935, 0.2
    %v938 = vmul.f32 %v936, 0.2
    %v939 = vmax.f32 %v935, %v937
    %v940 = vmax.f32 %v936, %v938
    %v941 = vstv %s258
    %v942 = vmul.f32 %v941, %v929
    %v943 = vmul.f32 %v941, %v930
    %v944 = vadd.f32 %v909, %v942
    %v945 = vadd.f32 %v910, %v943
    %v946 = vstv %s283
    %v947 = vmul.f32 %v946, %v939
    %v948 = vmul.f32 %v946, %v940
    %v949 = vadd.f32 %v914, %v947
    %v950 = vadd.f32 %v915, %v948
    %v951 = vstv %s259
    %v952 = vadd.f32 %v944, %v951
    %v953 = vadd.f32 %v945, %v951
    %v954 = vstv %s284
    %v955 = vadd.f32 %v949, %v954
    %v956 = vadd.f32 %v950, %v954
    %v957 = vsub.f32 1.0, %v952
    %v958 = vsub.f32 1.0, %v953
    %v959 = vmax.f32 %v957, 0.0
    %v960 = vmax.f32 %v958, 0.0
    %vm961 = vcmask 1041408
    %v962 = vsel %vm961, %v959, 0.0
    %v963 = vrot.slane %v962, 4
    %v964 = vadd.f32 %v962, %v963
    %v965 = vrot.slane %v964, 2
    %v966 = vadd.f32 %v964, %v965
    %v967 = vrot.slane %v966, 1
    %v968 = vadd.f32 %v966, %v967
    %v969 = vsel %vm961, %v960, 0.0
    %v970 = vrot.slane %v969, 4
    %v971 = vadd.f32 %v969, %v970
    %v972 = vrot.slane %v971, 2
    %v973 = vadd.f32 %v971, %v972
    %v974 = vrot.slane %v973, 1
    %v975 = vadd.f32 %v973, %v974
    %v976 = vsub.f32 1.0, %v955
    %v977 = vsub.f32 1.0, %v956
    %v978 = vmax.f32 %v976, 0.0
    %v979 = vmax.f32 %v977, 0.0
    %v980 = vsel %vm961, %v978, 0.0
    %v981 = vrot.slane %v980, 4
    %v982 = vadd.f32 %v980, %v981
    %v983 = vrot.slane %v982, 2
    %v984 = vadd.f32 %v982, %v983
    %v985 = vrot.slane %v984, 1
    %v986 = vadd.f32 %v984, %v985
    %v987 = vsel %vm961, %v979, 0.0
    %v988 = vrot.slane %v987, 4
    %v989 = vadd.f32 %v987, %v988
    %v990 = vrot.slane %v989, 2
    %v991 = vadd.f32 %v989, %v990
    %v992 = vrot.slane %v991, 1
    %v993 = vadd.f32 %v991, %v992
    %v994 = vld [vmem:[%s13] sm:$0x3]
    %v995 = vld [vmem:[%s13 + $0x8] sm:$0x3]
    %s996 = scalar_lea.vmem %s13, 2
    %v997 = vld [vmem:[%s996] sm:$0x3]
    %v998 = vld [vmem:[%s996 + $0x8] sm:$0x3]
    %s999 = scalar_lea.vmem %s13, 4
    %v1000 = vld [vmem:[%s999] sm:$0x3]
    %v1001 = vld [vmem:[%s999 + $0x8] sm:$0x3]
    %s1002 = scalar_lea.vmem %s13, 6
    %v1003 = vld [vmem:[%s1002] sm:$0x3]
    %v1004 = vld [vmem:[%s1002 + $0x8] sm:$0x3]
    %v1005 = vmul.f32 %v296, %v994
    %v1006 = vmul.f32 %v296, %v995
    %v1007 = vadd.f32 %v299, %v1005
    %v1008 = vadd.f32 %v299, %v1006
    %v1009 = vmul.f32 %v302, %v997
    %v1010 = vmul.f32 %v302, %v998
    %v1011 = vadd.f32 %v1007, %v1009
    %v1012 = vadd.f32 %v1008, %v1010
    %v1013 = vmul.f32 %v307, %v1000
    %v1014 = vmul.f32 %v307, %v1001
    %v1015 = vadd.f32 %v1011, %v1013
    %v1016 = vadd.f32 %v1012, %v1014
    %v1017 = vmul.f32 %v312, %v1003
    %v1018 = vmul.f32 %v312, %v1004
    %v1019 = vadd.f32 %v1015, %v1017
    %v1020 = vadd.f32 %v1016, %v1018
    %v1021 = vmax.f32 %v1019, 0.0
    %v1022 = vmax.f32 %v1020, 0.0
    %v1023 = vmul.f32 %v319, %v1021
    %v1024 = vmul.f32 %v319, %v1022
    %v1025 = vmul.f32 %v322, %v1021
    %v1026 = vmul.f32 %v322, %v1022
    %v1027 = vmul.f32 %v325, %v994
    %v1028 = vmul.f32 %v325, %v995
    %v1029 = vadd.f32 %v328, %v1027
    %v1030 = vadd.f32 %v328, %v1028
    %v1031 = vmul.f32 %v331, %v997
    %v1032 = vmul.f32 %v331, %v998
    %v1033 = vadd.f32 %v1029, %v1031
    %v1034 = vadd.f32 %v1030, %v1032
    %v1035 = vmul.f32 %v336, %v1000
    %v1036 = vmul.f32 %v336, %v1001
    %v1037 = vadd.f32 %v1033, %v1035
    %v1038 = vadd.f32 %v1034, %v1036
    %v1039 = vmul.f32 %v341, %v1003
    %v1040 = vmul.f32 %v341, %v1004
    %v1041 = vadd.f32 %v1037, %v1039
    %v1042 = vadd.f32 %v1038, %v1040
    %v1043 = vmax.f32 %v1041, 0.0
    %v1044 = vmax.f32 %v1042, 0.0
    %v1045 = vmul.f32 %v348, %v1043
    %v1046 = vmul.f32 %v348, %v1044
    %v1047 = vadd.f32 %v1023, %v1045
    %v1048 = vadd.f32 %v1024, %v1046
    %v1049 = vmul.f32 %v353, %v1043
    %v1050 = vmul.f32 %v353, %v1044
    %v1051 = vadd.f32 %v1025, %v1049
    %v1052 = vadd.f32 %v1026, %v1050
    %v1053 = vmul.f32 %v358, %v994
    %v1054 = vmul.f32 %v358, %v995
    %v1055 = vadd.f32 %v361, %v1053
    %v1056 = vadd.f32 %v361, %v1054
    %v1057 = vmul.f32 %v364, %v997
    %v1058 = vmul.f32 %v364, %v998
    %v1059 = vadd.f32 %v1055, %v1057
    %v1060 = vadd.f32 %v1056, %v1058
    %v1061 = vmul.f32 %v369, %v1000
    %v1062 = vmul.f32 %v369, %v1001
    %v1063 = vadd.f32 %v1059, %v1061
    %v1064 = vadd.f32 %v1060, %v1062
    %v1065 = vmul.f32 %v374, %v1003
    %v1066 = vmul.f32 %v374, %v1004
    %v1067 = vadd.f32 %v1063, %v1065
    %v1068 = vadd.f32 %v1064, %v1066
    %v1069 = vmax.f32 %v1067, 0.0
    %v1070 = vmax.f32 %v1068, 0.0
    %v1071 = vmul.f32 %v381, %v1069
    %v1072 = vmul.f32 %v381, %v1070
    %v1073 = vadd.f32 %v1047, %v1071
    %v1074 = vadd.f32 %v1048, %v1072
    %v1075 = vmul.f32 %v386, %v1069
    %v1076 = vmul.f32 %v386, %v1070
    %v1077 = vadd.f32 %v1051, %v1075
    %v1078 = vadd.f32 %v1052, %v1076
    %v1079 = vmul.f32 %v391, %v994
    %v1080 = vmul.f32 %v391, %v995
    %v1081 = vadd.f32 %v394, %v1079
    %v1082 = vadd.f32 %v394, %v1080
    %v1083 = vmul.f32 %v397, %v997
    %v1084 = vmul.f32 %v397, %v998
    %v1085 = vadd.f32 %v1081, %v1083
    %v1086 = vadd.f32 %v1082, %v1084
    %v1087 = vmul.f32 %v402, %v1000
    %v1088 = vmul.f32 %v402, %v1001
    %v1089 = vadd.f32 %v1085, %v1087
    %v1090 = vadd.f32 %v1086, %v1088
    %v1091 = vmul.f32 %v407, %v1003
    %v1092 = vmul.f32 %v407, %v1004
    %v1093 = vadd.f32 %v1089, %v1091
    %v1094 = vadd.f32 %v1090, %v1092
    %v1095 = vmax.f32 %v1093, 0.0
    %v1096 = vmax.f32 %v1094, 0.0
    %v1097 = vmul.f32 %v414, %v1095
    %v1098 = vmul.f32 %v414, %v1096
    %v1099 = vadd.f32 %v1073, %v1097
    %v1100 = vadd.f32 %v1074, %v1098
    %v1101 = vmul.f32 %v419, %v1095
    %v1102 = vmul.f32 %v419, %v1096
    %v1103 = vadd.f32 %v1077, %v1101
    %v1104 = vadd.f32 %v1078, %v1102
    %v1105 = vmul.f32 %v424, %v994
    %v1106 = vmul.f32 %v424, %v995
    %v1107 = vadd.f32 %v427, %v1105
    %v1108 = vadd.f32 %v427, %v1106
    %v1109 = vmul.f32 %v430, %v997
    %v1110 = vmul.f32 %v430, %v998
    %v1111 = vadd.f32 %v1107, %v1109
    %v1112 = vadd.f32 %v1108, %v1110
    %v1113 = vmul.f32 %v435, %v1000
    %v1114 = vmul.f32 %v435, %v1001
    %v1115 = vadd.f32 %v1111, %v1113
    %v1116 = vadd.f32 %v1112, %v1114
    %v1117 = vmul.f32 %v440, %v1003
    %v1118 = vmul.f32 %v440, %v1004
    %v1119 = vadd.f32 %v1115, %v1117
    %v1120 = vadd.f32 %v1116, %v1118
    %v1121 = vmax.f32 %v1119, 0.0
    %v1122 = vmax.f32 %v1120, 0.0
    %v1123 = vmul.f32 %v447, %v1121
    %v1124 = vmul.f32 %v447, %v1122
    %v1125 = vadd.f32 %v1099, %v1123
    %v1126 = vadd.f32 %v1100, %v1124
    %v1127 = vmul.f32 %v452, %v1121
    %v1128 = vmul.f32 %v452, %v1122
    %v1129 = vadd.f32 %v1103, %v1127
    %v1130 = vadd.f32 %v1104, %v1128
    %v1131 = vmul.f32 %v457, %v994
    %v1132 = vmul.f32 %v457, %v995
    %v1133 = vadd.f32 %v460, %v1131
    %v1134 = vadd.f32 %v460, %v1132
    %v1135 = vmul.f32 %v463, %v997
    %v1136 = vmul.f32 %v463, %v998
    %v1137 = vadd.f32 %v1133, %v1135
    %v1138 = vadd.f32 %v1134, %v1136
    %v1139 = vmul.f32 %v468, %v1000
    %v1140 = vmul.f32 %v468, %v1001
    %v1141 = vadd.f32 %v1137, %v1139
    %v1142 = vadd.f32 %v1138, %v1140
    %v1143 = vmul.f32 %v473, %v1003
    %v1144 = vmul.f32 %v473, %v1004
    %v1145 = vadd.f32 %v1141, %v1143
    %v1146 = vadd.f32 %v1142, %v1144
    %v1147 = vmax.f32 %v1145, 0.0
    %v1148 = vmax.f32 %v1146, 0.0
    %v1149 = vmul.f32 %v480, %v1147
    %v1150 = vmul.f32 %v480, %v1148
    %v1151 = vadd.f32 %v1125, %v1149
    %v1152 = vadd.f32 %v1126, %v1150
    %v1153 = vmul.f32 %v485, %v1147
    %v1154 = vmul.f32 %v485, %v1148
    %v1155 = vadd.f32 %v1129, %v1153
    %v1156 = vadd.f32 %v1130, %v1154
    %v1157 = vmul.f32 %v490, %v994
    %v1158 = vmul.f32 %v490, %v995
    %v1159 = vadd.f32 %v493, %v1157
    %v1160 = vadd.f32 %v493, %v1158
    %v1161 = vmul.f32 %v496, %v997
    %v1162 = vmul.f32 %v496, %v998
    %v1163 = vadd.f32 %v1159, %v1161
    %v1164 = vadd.f32 %v1160, %v1162
    %v1165 = vmul.f32 %v501, %v1000
    %v1166 = vmul.f32 %v501, %v1001
    %v1167 = vadd.f32 %v1163, %v1165
    %v1168 = vadd.f32 %v1164, %v1166
    %v1169 = vmul.f32 %v506, %v1003
    %v1170 = vmul.f32 %v506, %v1004
    %v1171 = vadd.f32 %v1167, %v1169
    %v1172 = vadd.f32 %v1168, %v1170
    %v1173 = vmax.f32 %v1171, 0.0
    %v1174 = vmax.f32 %v1172, 0.0
    %v1175 = vmul.f32 %v513, %v1173
    %v1176 = vmul.f32 %v513, %v1174
    %v1177 = vadd.f32 %v1151, %v1175
    %v1178 = vadd.f32 %v1152, %v1176
    %v1179 = vmul.f32 %v518, %v1173
    %v1180 = vmul.f32 %v518, %v1174
    %v1181 = vadd.f32 %v1155, %v1179
    %v1182 = vadd.f32 %v1156, %v1180
    %v1183 = vmul.f32 %v523, %v994
    %v1184 = vmul.f32 %v523, %v995
    %v1185 = vadd.f32 %v526, %v1183
    %v1186 = vadd.f32 %v526, %v1184
    %v1187 = vmul.f32 %v529, %v997
    %v1188 = vmul.f32 %v529, %v998
    %v1189 = vadd.f32 %v1185, %v1187
    %v1190 = vadd.f32 %v1186, %v1188
    %v1191 = vmul.f32 %v534, %v1000
    %v1192 = vmul.f32 %v534, %v1001
    %v1193 = vadd.f32 %v1189, %v1191
    %v1194 = vadd.f32 %v1190, %v1192
    %v1195 = vmul.f32 %v539, %v1003
    %v1196 = vmul.f32 %v539, %v1004
    %v1197 = vadd.f32 %v1193, %v1195
    %v1198 = vadd.f32 %v1194, %v1196
    %v1199 = vmax.f32 %v1197, 0.0
    %v1200 = vmax.f32 %v1198, 0.0
    %v1201 = vmul.f32 %v546, %v1199
    %v1202 = vmul.f32 %v546, %v1200
    %v1203 = vadd.f32 %v1177, %v1201
    %v1204 = vadd.f32 %v1178, %v1202
    %v1205 = vmul.f32 %v551, %v1199
    %v1206 = vmul.f32 %v551, %v1200
    %v1207 = vadd.f32 %v1181, %v1205
    %v1208 = vadd.f32 %v1182, %v1206
    %v1209 = vadd.f32 %v1203, %v556
    %v1210 = vadd.f32 %v1204, %v556
    %v1211 = vxor.u32 %v1209, 2147483648
    %v1212 = vxor.u32 %v1210, 2147483648
    %v1213 = vmul.f32 %v1211, 1.442695
    %v1214 = vpow.pop %v1213
    %v1215 = vmul.f32 %v1212, 1.442695
    %v1216 = vpow.pop %v1215
    %v1217 = vadd.f32 %v1214, 1.0
    %v1218 = vadd.f32 %v1216, 1.0
    %v1219 = vrcp.pop %v1217
    %v1220 = vmul.f32 %v1217, %v1219
    %v1221 = vsub.f32 1.0, %v1220
    %v1222 = vmul.f32 %v1219, %v1221
    %v1223 = vadd.f32 %v1219, %v1222
    %vm1224 = vweird.f32 %v1217
    %vm1225 = vweird.f32 %v1219
    %vm1226 = vmor %vm1224, %vm1225
    %v1227 = vsel %vm1226, %v1219, %v1223
    %v1228 = vand.u32 2147483647, %v1217
    %vm1229 = vcmp.eq.f32.partialorder %v1228, 8.507059e+37
    %v1230 = vand.u32 %v1217, 2147483648
    %v1231 = vor.u32 1.1754944e-38, %v1230
    %v1232 = vsel %vm1229, %v1231, %v1227
    %v1233 = vmul.f32 1.0, %v1232
    %v1234 = vrcp.pop %v1218
    %v1235 = vmul.f32 %v1218, %v1234
    %v1236 = vsub.f32 1.0, %v1235
    %v1237 = vmul.f32 %v1234, %v1236
    %v1238 = vadd.f32 %v1234, %v1237
    %vm1239 = vweird.f32 %v1218
    %vm1240 = vweird.f32 %v1234
    %vm1241 = vmor %vm1239, %vm1240
    %v1242 = vsel %vm1241, %v1234, %v1238
    %v1243 = vand.u32 2147483647, %v1218
    %vm1244 = vcmp.eq.f32.partialorder %v1243, 8.507059e+37
    %v1245 = vand.u32 %v1218, 2147483648
    %v1246 = vor.u32 1.1754944e-38, %v1245
    %v1247 = vsel %vm1244, %v1246, %v1242
    %v1248 = vmul.f32 1.0, %v1247
    %v1249 = vadd.f32 %v1207, %v597
    %v1250 = vadd.f32 %v1208, %v597
    %v1251 = vxor.u32 %v1249, 2147483648
    %v1252 = vxor.u32 %v1250, 2147483648
    %v1253 = vmul.f32 %v1251, 1.442695
    %v1254 = vpow.pop %v1253
    %v1255 = vmul.f32 %v1252, 1.442695
    %v1256 = vpow.pop %v1255
    %v1257 = vadd.f32 %v1254, 1.0
    %v1258 = vadd.f32 %v1256, 1.0
    %v1259 = vrcp.pop %v1257
    %v1260 = vmul.f32 %v1257, %v1259
    %v1261 = vsub.f32 1.0, %v1260
    %v1262 = vmul.f32 %v1259, %v1261
    %v1263 = vadd.f32 %v1259, %v1262
    %vm1264 = vweird.f32 %v1257
    %vm1265 = vweird.f32 %v1259
    %vm1266 = vmor %vm1264, %vm1265
    %v1267 = vsel %vm1266, %v1259, %v1263
    %v1268 = vand.u32 2147483647, %v1257
    %vm1269 = vcmp.eq.f32.partialorder %v1268, 8.507059e+37
    %v1270 = vand.u32 %v1257, 2147483648
    %v1271 = vor.u32 1.1754944e-38, %v1270
    %v1272 = vsel %vm1269, %v1271, %v1267
    %v1273 = vmul.f32 1.0, %v1272
    %v1274 = vrcp.pop %v1258
    %v1275 = vmul.f32 %v1258, %v1274
    %v1276 = vsub.f32 1.0, %v1275
    %v1277 = vmul.f32 %v1274, %v1276
    %v1278 = vadd.f32 %v1274, %v1277
    %vm1279 = vweird.f32 %v1258
    %vm1280 = vweird.f32 %v1274
    %vm1281 = vmor %vm1279, %vm1280
    %v1282 = vsel %vm1281, %v1274, %v1278
    %v1283 = vand.u32 2147483647, %v1258
    %vm1284 = vcmp.eq.f32.partialorder %v1283, 8.507059e+37
    %v1285 = vand.u32 %v1258, 2147483648
    %v1286 = vor.u32 1.1754944e-38, %v1285
    %v1287 = vsel %vm1284, %v1286, %v1282
    %v1288 = vmul.f32 1.0, %v1287
    %v1289 = vsub.f32 1.0, %v1273
    %v1290 = vsub.f32 1.0, %v1288
    %v1291 = vsub.f32 0.0, %v1273
    %v1292 = vsub.f32 0.0, %v1288
    %v1293 = vadd.f32 %v1273, 1e-30
    %v1294 = vadd.f32 %v1288, 1e-30
    %v1295 = vlog2.pop %v1293
    %v1296 = vmul.f32 %v1295, 0.6931472
    %v1297 = vlog2.pop %v1294
    %v1298 = vmul.f32 %v1297, 0.6931472
    %v1299 = vmul.f32 %v1296, %v654
    %v1300 = vmul.f32 %v1298, %v654
    %v1301 = vmul.f32 %v1291, %v1299
    %v1302 = vmul.f32 %v1292, %v1300
    %v1303 = vsub.f32 0.0, %v1289
    %v1304 = vsub.f32 0.0, %v1290
    %v1305 = vadd.f32 %v1289, 1e-30
    %v1306 = vadd.f32 %v1290, 1e-30
    %v1307 = vlog2.pop %v1305
    %v1308 = vmul.f32 %v1307, 0.6931472
    %v1309 = vlog2.pop %v1306
    %v1310 = vmul.f32 %v1309, 0.6931472
    %v1311 = vmul.f32 %v1308, %v654
    %v1312 = vmul.f32 %v1310, %v654
    %v1313 = vmul.f32 %v1303, %v1311
    %v1314 = vmul.f32 %v1304, %v1312
    %v1315 = vadd.f32 %v1301, %v1313
    %v1316 = vadd.f32 %v1302, %v1314
    %1317 = vst [vmem:[%s15] sm:$0x3] %v1315
    %1318 = vst [vmem:[%s15 + $0x2] sm:$0x3] %v1316
    %v1319 = vmul.f32 %v675, %v1301
    %v1320 = vmul.f32 %v675, %v1302
    %v1321 = vadd.f32 %v678, %v1319
    %v1322 = vadd.f32 %v678, %v1320
    %v1323 = vmul.f32 %v681, %v1313
    %v1324 = vmul.f32 %v681, %v1314
    %v1325 = vadd.f32 %v1321, %v1323
    %v1326 = vadd.f32 %v1322, %v1324
    %v1327 = vmul.f32 %v1325, 0.2
    %v1328 = vmul.f32 %v1326, 0.2
    %v1329 = vmax.f32 %v1325, %v1327
    %v1330 = vmax.f32 %v1326, %v1328
    %v1331 = vmul.f32 %v690, %v1233
    %v1332 = vmul.f32 %v690, %v1248
    %v1333 = vadd.f32 %v693, %v1331
    %v1334 = vadd.f32 %v693, %v1332
    %v1335 = vmul.f32 %v1333, 0.2
    %v1336 = vmul.f32 %v1334, 0.2
    %v1337 = vmax.f32 %v1333, %v1335
    %v1338 = vmax.f32 %v1334, %v1336
    %v1339 = vmul.f32 %v700, %v1329
    %v1340 = vmul.f32 %v700, %v1330
    %v1341 = vmul.f32 %v703, %v1337
    %v1342 = vmul.f32 %v703, %v1338
    %v1343 = vmul.f32 %v706, %v1301
    %v1344 = vmul.f32 %v706, %v1302
    %v1345 = vadd.f32 %v709, %v1343
    %v1346 = vadd.f32 %v709, %v1344
    %v1347 = vmul.f32 %v712, %v1313
    %v1348 = vmul.f32 %v712, %v1314
    %v1349 = vadd.f32 %v1345, %v1347
    %v1350 = vadd.f32 %v1346, %v1348
    %v1351 = vmul.f32 %v1349, 0.2
    %v1352 = vmul.f32 %v1350, 0.2
    %v1353 = vmax.f32 %v1349, %v1351
    %v1354 = vmax.f32 %v1350, %v1352
    %v1355 = vmul.f32 %v721, %v1233
    %v1356 = vmul.f32 %v721, %v1248
    %v1357 = vadd.f32 %v724, %v1355
    %v1358 = vadd.f32 %v724, %v1356
    %v1359 = vmul.f32 %v1357, 0.2
    %v1360 = vmul.f32 %v1358, 0.2
    %v1361 = vmax.f32 %v1357, %v1359
    %v1362 = vmax.f32 %v1358, %v1360
    %v1363 = vmul.f32 %v731, %v1353
    %v1364 = vmul.f32 %v731, %v1354
    %v1365 = vadd.f32 %v1339, %v1363
    %v1366 = vadd.f32 %v1340, %v1364
    %v1367 = vmul.f32 %v736, %v1361
    %v1368 = vmul.f32 %v736, %v1362
    %v1369 = vadd.f32 %v1341, %v1367
    %v1370 = vadd.f32 %v1342, %v1368
    %v1371 = vmul.f32 %v741, %v1301
    %v1372 = vmul.f32 %v741, %v1302
    %v1373 = vadd.f32 %v744, %v1371
    %v1374 = vadd.f32 %v744, %v1372
    %v1375 = vmul.f32 %v747, %v1313
    %v1376 = vmul.f32 %v747, %v1314
    %v1377 = vadd.f32 %v1373, %v1375
    %v1378 = vadd.f32 %v1374, %v1376
    %v1379 = vmul.f32 %v1377, 0.2
    %v1380 = vmul.f32 %v1378, 0.2
    %v1381 = vmax.f32 %v1377, %v1379
    %v1382 = vmax.f32 %v1378, %v1380
    %v1383 = vmul.f32 %v756, %v1233
    %v1384 = vmul.f32 %v756, %v1248
    %v1385 = vadd.f32 %v759, %v1383
    %v1386 = vadd.f32 %v759, %v1384
    %v1387 = vmul.f32 %v1385, 0.2
    %v1388 = vmul.f32 %v1386, 0.2
    %v1389 = vmax.f32 %v1385, %v1387
    %v1390 = vmax.f32 %v1386, %v1388
    %v1391 = vmul.f32 %v766, %v1381
    %v1392 = vmul.f32 %v766, %v1382
    %v1393 = vadd.f32 %v1365, %v1391
    %v1394 = vadd.f32 %v1366, %v1392
    %v1395 = vmul.f32 %v771, %v1389
    %v1396 = vmul.f32 %v771, %v1390
    %v1397 = vadd.f32 %v1369, %v1395
    %v1398 = vadd.f32 %v1370, %v1396
    %v1399 = vmul.f32 %v776, %v1301
    %v1400 = vmul.f32 %v776, %v1302
    %v1401 = vadd.f32 %v779, %v1399
    %v1402 = vadd.f32 %v779, %v1400
    %v1403 = vmul.f32 %v782, %v1313
    %v1404 = vmul.f32 %v782, %v1314
    %v1405 = vadd.f32 %v1401, %v1403
    %v1406 = vadd.f32 %v1402, %v1404
    %v1407 = vmul.f32 %v1405, 0.2
    %v1408 = vmul.f32 %v1406, 0.2
    %v1409 = vmax.f32 %v1405, %v1407
    %v1410 = vmax.f32 %v1406, %v1408
    %v1411 = vmul.f32 %v791, %v1233
    %v1412 = vmul.f32 %v791, %v1248
    %v1413 = vadd.f32 %v794, %v1411
    %v1414 = vadd.f32 %v794, %v1412
    %v1415 = vmul.f32 %v1413, 0.2
    %v1416 = vmul.f32 %v1414, 0.2
    %v1417 = vmax.f32 %v1413, %v1415
    %v1418 = vmax.f32 %v1414, %v1416
    %v1419 = vmul.f32 %v801, %v1409
    %v1420 = vmul.f32 %v801, %v1410
    %v1421 = vadd.f32 %v1393, %v1419
    %v1422 = vadd.f32 %v1394, %v1420
    %v1423 = vmul.f32 %v806, %v1417
    %v1424 = vmul.f32 %v806, %v1418
    %v1425 = vadd.f32 %v1397, %v1423
    %v1426 = vadd.f32 %v1398, %v1424
    %v1427 = vmul.f32 %v811, %v1301
    %v1428 = vmul.f32 %v811, %v1302
    %v1429 = vadd.f32 %v814, %v1427
    %v1430 = vadd.f32 %v814, %v1428
    %v1431 = vmul.f32 %v817, %v1313
    %v1432 = vmul.f32 %v817, %v1314
    %v1433 = vadd.f32 %v1429, %v1431
    %v1434 = vadd.f32 %v1430, %v1432
    %v1435 = vmul.f32 %v1433, 0.2
    %v1436 = vmul.f32 %v1434, 0.2
    %v1437 = vmax.f32 %v1433, %v1435
    %v1438 = vmax.f32 %v1434, %v1436
    %v1439 = vmul.f32 %v826, %v1233
    %v1440 = vmul.f32 %v826, %v1248
    %v1441 = vadd.f32 %v829, %v1439
    %v1442 = vadd.f32 %v829, %v1440
    %v1443 = vmul.f32 %v1441, 0.2
    %v1444 = vmul.f32 %v1442, 0.2
    %v1445 = vmax.f32 %v1441, %v1443
    %v1446 = vmax.f32 %v1442, %v1444
    %v1447 = vmul.f32 %v836, %v1437
    %v1448 = vmul.f32 %v836, %v1438
    %v1449 = vadd.f32 %v1421, %v1447
    %v1450 = vadd.f32 %v1422, %v1448
    %v1451 = vmul.f32 %v841, %v1445
    %v1452 = vmul.f32 %v841, %v1446
    %v1453 = vadd.f32 %v1425, %v1451
    %v1454 = vadd.f32 %v1426, %v1452
    %v1455 = vmul.f32 %v846, %v1301
    %v1456 = vmul.f32 %v846, %v1302
    %v1457 = vadd.f32 %v849, %v1455
    %v1458 = vadd.f32 %v849, %v1456
    %v1459 = vmul.f32 %v852, %v1313
    %v1460 = vmul.f32 %v852, %v1314
    %v1461 = vadd.f32 %v1457, %v1459
    %v1462 = vadd.f32 %v1458, %v1460
    %v1463 = vmul.f32 %v1461, 0.2
    %v1464 = vmul.f32 %v1462, 0.2
    %v1465 = vmax.f32 %v1461, %v1463
    %v1466 = vmax.f32 %v1462, %v1464
    %v1467 = vmul.f32 %v861, %v1233
    %v1468 = vmul.f32 %v861, %v1248
    %v1469 = vadd.f32 %v864, %v1467
    %v1470 = vadd.f32 %v864, %v1468
    %v1471 = vmul.f32 %v1469, 0.2
    %v1472 = vmul.f32 %v1470, 0.2
    %v1473 = vmax.f32 %v1469, %v1471
    %v1474 = vmax.f32 %v1470, %v1472
    %v1475 = vmul.f32 %v871, %v1465
    %v1476 = vmul.f32 %v871, %v1466
    %v1477 = vadd.f32 %v1449, %v1475
    %v1478 = vadd.f32 %v1450, %v1476
    %v1479 = vmul.f32 %v876, %v1473
    %v1480 = vmul.f32 %v876, %v1474
    %v1481 = vadd.f32 %v1453, %v1479
    %v1482 = vadd.f32 %v1454, %v1480
    %v1483 = vmul.f32 %v881, %v1301
    %v1484 = vmul.f32 %v881, %v1302
    %v1485 = vadd.f32 %v884, %v1483
    %v1486 = vadd.f32 %v884, %v1484
    %v1487 = vmul.f32 %v887, %v1313
    %v1488 = vmul.f32 %v887, %v1314
    %v1489 = vadd.f32 %v1485, %v1487
    %v1490 = vadd.f32 %v1486, %v1488
    %v1491 = vmul.f32 %v1489, 0.2
    %v1492 = vmul.f32 %v1490, 0.2
    %v1493 = vmax.f32 %v1489, %v1491
    %v1494 = vmax.f32 %v1490, %v1492
    %v1495 = vmul.f32 %v896, %v1233
    %v1496 = vmul.f32 %v896, %v1248
    %v1497 = vadd.f32 %v899, %v1495
    %v1498 = vadd.f32 %v899, %v1496
    %v1499 = vmul.f32 %v1497, 0.2
    %v1500 = vmul.f32 %v1498, 0.2
    %v1501 = vmax.f32 %v1497, %v1499
    %v1502 = vmax.f32 %v1498, %v1500
    %v1503 = vmul.f32 %v906, %v1493
    %v1504 = vmul.f32 %v906, %v1494
    %v1505 = vadd.f32 %v1477, %v1503
    %v1506 = vadd.f32 %v1478, %v1504
    %v1507 = vmul.f32 %v911, %v1501
    %v1508 = vmul.f32 %v911, %v1502
    %v1509 = vadd.f32 %v1481, %v1507
    %v1510 = vadd.f32 %v1482, %v1508
    %v1511 = vmul.f32 %v916, %v1301
    %v1512 = vmul.f32 %v916, %v1302
    %v1513 = vadd.f32 %v919, %v1511
    %v1514 = vadd.f32 %v919, %v1512
    %v1515 = vmul.f32 %v922, %v1313
    %v1516 = vmul.f32 %v922, %v1314
    %v1517 = vadd.f32 %v1513, %v1515
    %v1518 = vadd.f32 %v1514, %v1516
    %v1519 = vmul.f32 %v1517, 0.2
    %v1520 = vmul.f32 %v1518, 0.2
    %v1521 = vmax.f32 %v1517, %v1519
    %v1522 = vmax.f32 %v1518, %v1520
    %v1523 = vmul.f32 %v931, %v1233
    %v1524 = vmul.f32 %v931, %v1248
    %v1525 = vadd.f32 %v934, %v1523
    %v1526 = vadd.f32 %v934, %v1524
    %v1527 = vmul.f32 %v1525, 0.2
    %v1528 = vmul.f32 %v1526, 0.2
    %v1529 = vmax.f32 %v1525, %v1527
    %v1530 = vmax.f32 %v1526, %v1528
    %v1531 = vmul.f32 %v941, %v1521
    %v1532 = vmul.f32 %v941, %v1522
    %v1533 = vadd.f32 %v1505, %v1531
    %v1534 = vadd.f32 %v1506, %v1532
    %v1535 = vmul.f32 %v946, %v1529
    %v1536 = vmul.f32 %v946, %v1530
    %v1537 = vadd.f32 %v1509, %v1535
    %v1538 = vadd.f32 %v1510, %v1536
    %v1539 = vadd.f32 %v1533, %v951
    %v1540 = vadd.f32 %v1534, %v951
    %v1541 = vadd.f32 %v1537, %v954
    %v1542 = vadd.f32 %v1538, %v954
    %v1543 = vadd.f32 %v1539, 1.0
    %v1544 = vadd.f32 %v1540, 1.0
    %v1545 = vmax.f32 %v1543, 0.0
    %v1546 = vmax.f32 %v1544, 0.0
    %v1547 = vsel %vm961, %v1545, 0.0
    %v1548 = vrot.slane %v1547, 4
    %v1549 = vadd.f32 %v1547, %v1548
    %v1550 = vrot.slane %v1549, 2
    %v1551 = vadd.f32 %v1549, %v1550
    %v1552 = vrot.slane %v1551, 1
    %v1553 = vadd.f32 %v1551, %v1552
    %v1554 = vsel %vm961, %v1546, 0.0
    %v1555 = vrot.slane %v1554, 4
    %v1556 = vadd.f32 %v1554, %v1555
    %v1557 = vrot.slane %v1556, 2
    %v1558 = vadd.f32 %v1556, %v1557
    %v1559 = vrot.slane %v1558, 1
    %v1560 = vadd.f32 %v1558, %v1559
    %v1561 = vadd.f32 %v1541, 1.0
    %v1562 = vadd.f32 %v1542, 1.0
    %v1563 = vmax.f32 %v1561, 0.0
    %v1564 = vmax.f32 %v1562, 0.0
    %v1565 = vsel %vm961, %v1563, 0.0
    %v1566 = vrot.slane %v1565, 4
    %v1567 = vadd.f32 %v1565, %v1566
    %v1568 = vrot.slane %v1567, 2
    %v1569 = vadd.f32 %v1567, %v1568
    %v1570 = vrot.slane %v1569, 1
    %v1571 = vadd.f32 %v1569, %v1570
    %v1572 = vsel %vm961, %v1564, 0.0
    %v1573 = vrot.slane %v1572, 4
    %v1574 = vadd.f32 %v1572, %v1573
    %v1575 = vrot.slane %v1574, 2
    %v1576 = vadd.f32 %v1574, %v1575
    %v1577 = vrot.slane %v1576, 1
    %v1578 = vadd.f32 %v1576, %v1577
    %v1579 = vsel %vm961, %v1539, 0.0
    %v1580 = vrot.slane %v1579, 4
    %v1581 = vadd.f32 %v1579, %v1580
    %v1582 = vrot.slane %v1581, 2
    %v1583 = vadd.f32 %v1581, %v1582
    %v1584 = vrot.slane %v1583, 1
    %v1585 = vadd.f32 %v1583, %v1584
    %v1586 = vsel %vm961, %v1540, 0.0
    %v1587 = vrot.slane %v1586, 4
    %v1588 = vadd.f32 %v1586, %v1587
    %v1589 = vrot.slane %v1588, 2
    %v1590 = vadd.f32 %v1588, %v1589
    %v1591 = vrot.slane %v1590, 1
    %v1592 = vadd.f32 %v1590, %v1591
    %v1593 = vsub.f32 0.0, %v1585
    %v1594 = vsub.f32 0.0, %v1592
    %v1595 = vsel %vm961, %v1541, 0.0
    %v1596 = vrot.slane %v1595, 4
    %v1597 = vadd.f32 %v1595, %v1596
    %v1598 = vrot.slane %v1597, 2
    %v1599 = vadd.f32 %v1597, %v1598
    %v1600 = vrot.slane %v1599, 1
    %v1601 = vadd.f32 %v1599, %v1600
    %v1602 = vsel %vm961, %v1542, 0.0
    %v1603 = vrot.slane %v1602, 4
    %v1604 = vadd.f32 %v1602, %v1603
    %v1605 = vrot.slane %v1604, 2
    %v1606 = vadd.f32 %v1604, %v1605
    %v1607 = vrot.slane %v1606, 1
    %v1608 = vadd.f32 %v1606, %v1607
    %v1609 = vsub.f32 0.0, %v1601
    %v1610 = vsub.f32 0.0, %v1608
    %v1611 = vadd.f32 %v968, %v1553
    %v1612 = vadd.f32 %v975, %v1560
    %v1613 = vadd.f32 %v986, %v1571
    %v1614 = vadd.f32 %v993, %v1578
    %vm1617 = vcmask 1041409
    %v1618 = vsel %vm1617, %v1612, %v1611
    %vm1622 = vcmask 1043459
    %v1623 = vsel %vm1622, %v1614, %v1613
    %vm1627 = vcmask 1045509
    %v1628 = vsel %vm1627, %v1594, %v1593
    %vm1632 = vcmask 1047559
    %v1633 = vsel %vm1632, %v1610, %v1609
    %v1635 = vsel %vm961, %v1618, %v1623
    %vm1636 = vcmask 1043456
    %v1637 = vsel %vm1636, %v1635, %v1628
    %vm1638 = vcmask 1045504
    %v1639 = vsel %vm1638, %v1637, %v1633
    %1640 = vst [vmem:[%s16] sm:$0xff] %v1639
    // Predicated region
    $region98: #{segmentation_model_forward.1} parent=1 // pred_check
      _
    $region99: #{segmentation_model_forward.1} parent=1 // pred_check_branch
      %1642 = sbr.rel (0) target = $region101
    $region100: #{segmentation_model_forward.1} parent=1 // pred_region
      _
    $region101: #{segmentation_model_forward.1} parent=1 // pred_fallthru
      _
    // Predicated region
    $region102: #{segmentation_model_forward.1} parent=1 // pred_check
      _
    $region103: #{segmentation_model_forward.1} parent=1 // pred_check_branch
      %1644 = sbr.rel (0) target = $region105
    $region104: #{segmentation_model_forward.1} parent=1 // pred_region
      _
    $region105: #{segmentation_model_forward.1} parent=1 // pred_fallthru
      _
    // Predicated region
    $region106: #{segmentation_model_forward.1} parent=1 // pred_check
      _
    $region107: #{segmentation_model_forward.1} parent=1 // pred_check_branch
      %1646 = sbr.rel (0) target = $region109
    $region108: #{segmentation_model_forward.1} parent=1 // pred_region
      _
    $region109: #{segmentation_model_forward.1} parent=1 // pred_fallthru
      _
    // Predicated region
    $region110: #{segmentation_model_forward.1} parent=1 // pred_check
      _
    $region111: #{segmentation_model_forward.1} parent=1 // pred_check_branch
      %1648 = sbr.rel (0) target = $region113
    $region112: #{segmentation_model_forward.1} parent=1 // pred_region
      _
    $region113: #{segmentation_model_forward.1} parent=1 // pred_fallthru
      _
    // Predicated region
    $region114: #{segmentation_model_forward.1} parent=1 // pred_check
      _
    $region115: #{segmentation_model_forward.1} parent=1 // pred_check_branch
      %1650 = sbr.rel (0) target = $region117
    $region116: #{segmentation_model_forward.1} parent=1 // pred_region
      _
    $region117: #{segmentation_model_forward.1} parent=1 // pred_fallthru
      _
    // Predicated region
    $region118: #{segmentation_model_forward.1} parent=1 // pred_check
      _
    $region119: #{segmentation_model_forward.1} parent=1 // pred_check_branch
      %1652 = sbr.rel (0) target = $region121
    $region120: #{segmentation_model_forward.1} parent=1 // pred_region
      _
    $region121: #{segmentation_model_forward.1} parent=1 // pred_fallthru
      _
    %1653 = vsyncpa [#allocation5], 1
    %1654 = vsyncpa [#allocation7], 1
    %1655 = vsyncpa [#allocation10], 1
    %1656 = vsyncpa [#allocation13], 1
    %1657 = vsyncpa [#allocation16], 1
    %1658 = vsyncpa [#allocation19], 1

</llo_original>
